<compile_context>
chip_gen: v6e
topology: v6e:2x2x1
jax: 0.10.0
libtpu: 0.0.40
codegen_flags: <defaults>
</compile_context>

<pallas_src>
import math

import jax
import jax.numpy as jnp
from jax.experimental import pallas as pl
from jax.experimental.pallas import tpu as pltpu

# ----------------------------- model config (small) -----------------------------
VOCAB_SIZE = 64
N_LAYERS   = 2
NUM_HEADS  = 4
D_MODEL    = 128
D_FF       = 256
MAX_SEQ    = 64
LN_EPS     = 1e-5
EMB_SCALE  = math.sqrt(D_MODEL)
ATT_SCALE  = 1.0 / math.sqrt(D_MODEL // NUM_HEADS)


# ----------------------------------- kernel -------------------------------------
def _layernorm(x, gamma, beta):
    # biased-variance LayerNorm, eps inside rsqrt (matches nn.LayerNorm)
    mu = jnp.mean(x, axis=-1, keepdims=True)
    xc = x - mu
    var = jnp.mean(xc * xc, axis=-1, keepdims=True)
    return xc * jax.lax.rsqrt(var + LN_EPS) * gamma + beta


def _fused_forward_kernel(emb_ref, pe_ref,
                          wqkv_ref, bqkv_ref, wo_ref, bo_ref,
                          g1_ref, be1_ref, w1_ref, b1_ref,
                          w2_ref, b2_ref, g2_ref, be2_ref,
                          wfc_ref, bfc_ref, wc_ref, bc_ref,
                          o_ref):
    """One grid step == one batch element; everything stays in VMEM/vregs."""
    S, D = pe_ref.shape
    H = NUM_HEADS
    Dh = D // H

    # embedding scale + sinusoidal positional encoding
    # TODO(synk): dropout (p=0.1) omitted — inference semantics (identity).
    x = emb_ref[0] * EMB_SCALE + pe_ref[...]                               # (S, D)

    for li in range(N_LAYERS):                                             # static unroll
        # ---- fused QKV projection: one (S,D) x (D,3D) MXU pass ----
        qkv = jnp.dot(x, wqkv_ref[li],
                      preferred_element_type=jnp.float32) + bqkv_ref[li]   # (S, 3D)

        # ---- multi-head attention: heads are static lane slices ----
        heads = []
        for h in range(H):
            qh = qkv[:, h * Dh:(h + 1) * Dh]
            kh = qkv[:, D + h * Dh:D + (h + 1) * Dh]
            vh = qkv[:, 2 * D + h * Dh:2 * D + (h + 1) * Dh]
            s = jax.lax.dot_general(                                       # q @ k^T
                qh, kh, (((1,), (1,)), ((), ())),
                preferred_element_type=jnp.float32) * ATT_SCALE            # (S, S)
            s = s - jnp.max(s, axis=-1, keepdims=True)
            p = jnp.exp(s)
            p = p / jnp.sum(p, axis=-1, keepdims=True)
            heads.append(jnp.dot(p, vh, preferred_element_type=jnp.float32))
        a = jnp.concatenate(heads, axis=-1)                                # (S, D)

        # ---- output projection + post-norm residual ----
        attn_out = jnp.dot(a, wo_ref[li],
                           preferred_element_type=jnp.float32) + bo_ref[li]
        x = _layernorm(x + attn_out, g1_ref[li], be1_ref[li])

        # ---- feed-forward (ReLU) + post-norm residual ----
        # TODO(synk): optional bf16 cast of MXU inputs (f32 accumulate) left out
        #             to keep bit-fidelity with the f32 PyTorch reference.
        hdn = jnp.maximum(
            jnp.dot(x, w1_ref[li], preferred_element_type=jnp.float32) + b1_ref[li],
            0.0)
        ff = jnp.dot(hdn, w2_ref[li], preferred_element_type=jnp.float32) + b2_ref[li]
        x = _layernorm(x + ff, g2_ref[li], be2_ref[li])

    # ---- head epilogue: mean over sequence -> fc -> classifier -> sigmoid ----
    xm = jnp.mean(x, axis=0, keepdims=True)                                # (1, D)
    hfc = jnp.dot(xm, wfc_ref[...], preferred_element_type=jnp.float32) + bfc_ref[...]
    y = jnp.dot(hfc, wc_ref[...], preferred_element_type=jnp.float32) + bc_ref[...]
    o_ref[0] = jax.nn.sigmoid(y)                                           # (1, 1)


# --------------------------------- forward wrapper --------------------------------
def discriminator_forward(tokens, params):
    B, S = tokens.shape
    D = D_MODEL

    emb = jnp.take(params["emb"], tokens, axis=0)          # (B, S, D) gather (glue)
    pe = params["pe"][:S]                                  # (S, D)
    stk = params["stacked"]

    weight_args = (stk["wqkv"], stk["bqkv"], stk["wo"], stk["bo"],
                   stk["g1"], stk["be1"], stk["w1"], stk["b1"],
                   stk["w2"], stk["b2"], stk["g2"], stk["be2"],
                   params["wfc"], params["bfc"], params["wc"], params["bc"])

    def full_spec(arr):
        nd = arr.ndim
        return pl.BlockSpec(arr.shape, lambda b, _nd=nd: (0,) * _nd)

    in_specs = ([pl.BlockSpec((1, S, D), lambda b: (b, 0, 0)),   # per-batch activations
                 full_spec(pe)]
                + [full_spec(w) for w in weight_args])           # weights: constant block

    out = pl.pallas_call(
        _fused_forward_kernel,
        out_shape=jax.ShapeDtypeStruct((B, 1, 1), jnp.float32),
        grid=(B,),
        in_specs=in_specs,
        out_specs=pl.BlockSpec((1, 1, 1), lambda b: (b, 0, 0)),
        compiler_params=pltpu.CompilerParams(
            dimension_semantics=("parallel",)),                  # v7x: one seq per TC
    )(emb, pe, *weight_args)
    return out.reshape(B, 1)


# ----------------------------------- parameters -----------------------------------
def init_params(key):
    def nrm(k, shape, scale=0.02):
        return scale * jax.random.normal(k, shape, dtype=jnp.float32)

    keys = jax.random.split(key, 4 + N_LAYERS)
    params = {"emb": nrm(keys[0], (VOCAB_SIZE, D_MODEL))}

    # sinusoidal positional encoding table
    pos = jnp.arange(MAX_SEQ, dtype=jnp.float32)[:, None]
    div = jnp.exp(jnp.arange(0, D_MODEL, 2, dtype=jnp.float32)
                  * (-math.log(10000.0) / D_MODEL))
    pe = jnp.zeros((MAX_SEQ, D_MODEL), dtype=jnp.float32)
    pe = pe.at[:, 0::2].set(jnp.sin(pos * div))
    pe = pe.at[:, 1::2].set(jnp.cos(pos * div))
    params["pe"] = pe                                           # (MAX_SEQ, D)

    per = {k: [] for k in ["wqkv", "bqkv", "wo", "bo", "g1", "be1",
                           "w1", "b1", "w2", "b2", "g2", "be2"]}
    for li in range(N_LAYERS):
        lk = jax.random.split(keys[1 + li], 8)
        wq = nrm(lk[0], (D_MODEL, D_MODEL))
        wk = nrm(lk[1], (D_MODEL, D_MODEL))
        wv = nrm(lk[2], (D_MODEL, D_MODEL))
        per["wqkv"].append(jnp.concatenate([wq, wk, wv], axis=1))        # (D, 3D)
        per["bqkv"].append(jnp.zeros((1, 3 * D_MODEL), jnp.float32))
        per["wo"].append(nrm(lk[3], (D_MODEL, D_MODEL)))
        per["bo"].append(jnp.zeros((1, D_MODEL), jnp.float32))
        per["g1"].append(jnp.ones((1, D_MODEL), jnp.float32))
        per["be1"].append(jnp.zeros((1, D_MODEL), jnp.float32))
        per["w1"].append(nrm(lk[4], (D_MODEL, D_FF)))
        per["b1"].append(jnp.zeros((1, D_FF), jnp.float32))
        per["w2"].append(nrm(lk[5], (D_FF, D_MODEL)))
        per["b2"].append(jnp.zeros((1, D_MODEL), jnp.float32))
        per["g2"].append(jnp.ones((1, D_MODEL), jnp.float32))
        per["be2"].append(jnp.zeros((1, D_MODEL), jnp.float32))
    params["stacked"] = {k: jnp.stack(v, axis=0) for k, v in per.items()}

    params["wfc"] = nrm(keys[1 + N_LAYERS], (D_MODEL, D_MODEL))
    params["bfc"] = jnp.zeros((1, D_MODEL), jnp.float32)
    params["wc"]  = nrm(keys[2 + N_LAYERS], (D_MODEL, 1))
    params["bc"]  = jnp.zeros((1, 1), jnp.float32)
    return params


# -------------------------------------- main ---------------------------------------
if __name__ == "__main__":
    key = jax.random.PRNGKey(0)
    pkey, tkey = jax.random.split(key)
    params = init_params(pkey)

    B, S = 2, 16
    tokens = jax.random.randint(tkey, (B, S), 0, VOCAB_SIZE, dtype=jnp.int32)

    fwd = jax.jit(discriminator_forward)
    out = jax.block_until_ready(fwd(tokens, params))          # (B, 1) probabilities
    assert out.shape == (B, 1)
    assert bool(jnp.all(jnp.isfinite(out)))
    assert bool(jnp.all((out >= 0.0) & (out <= 1.0)))
    print("KERNEL_OK")
</pallas_src>

<mosaic_0001>
module attributes {stable_mosaic.version = 11 : i64} {
  func.func @_fused_forward_kernel(%arg0: i32, %arg1: memref<1x16x128xf32, #tpu.memory_space<vmem>>, %arg2: memref<16x128xf32, #tpu.memory_space<vmem>>, %arg3: memref<2x128x384xf32, #tpu.memory_space<vmem>>, %arg4: memref<2x1x384xf32, #tpu.memory_space<vmem>>, %arg5: memref<2x128x128xf32, #tpu.memory_space<vmem>>, %arg6: memref<2x1x128xf32, #tpu.memory_space<vmem>>, %arg7: memref<2x1x128xf32, #tpu.memory_space<vmem>>, %arg8: memref<2x1x128xf32, #tpu.memory_space<vmem>>, %arg9: memref<2x128x256xf32, #tpu.memory_space<vmem>>, %arg10: memref<2x1x256xf32, #tpu.memory_space<vmem>>, %arg11: memref<2x256x128xf32, #tpu.memory_space<vmem>>, %arg12: memref<2x1x128xf32, #tpu.memory_space<vmem>>, %arg13: memref<2x1x128xf32, #tpu.memory_space<vmem>>, %arg14: memref<2x1x128xf32, #tpu.memory_space<vmem>>, %arg15: memref<128x128xf32, #tpu.memory_space<vmem>>, %arg16: memref<1x128xf32, #tpu.memory_space<vmem>>, %arg17: memref<128x1xf32, #tpu.memory_space<vmem>>, %arg18: memref<1x1xf32, #tpu.memory_space<vmem>>, %arg19: memref<1x1x1xf32, #tpu.memory_space<vmem>>) attributes {dimension_semantics = [#tpu.dimension_semantics<parallel>], iteration_bounds = array<i64: 2>, scalar_prefetch = 0 : i64, scratch_operands = 0 : i64, tpu.core_type = #tpu.core_type<tc>, window_params = [{transform_indices = @transform_0, window_bounds = array<i64: 1, 16, 128>}, {pipeline_mode = #tpu.pipeline_mode<synchronous>, transform_indices = @transform_1, window_bounds = array<i64: 16, 128>}, {pipeline_mode = #tpu.pipeline_mode<synchronous>, transform_indices = @transform_2, window_bounds = array<i64: 2, 128, 384>}, {pipeline_mode = #tpu.pipeline_mode<synchronous>, transform_indices = @transform_3, window_bounds = array<i64: 2, 1, 384>}, {pipeline_mode = #tpu.pipeline_mode<synchronous>, transform_indices = @transform_4, window_bounds = array<i64: 2, 128, 128>}, {pipeline_mode = #tpu.pipeline_mode<synchronous>, transform_indices = @transform_5, window_bounds = array<i64: 2, 1, 128>}, {pipeline_mode = #tpu.pipeline_mode<synchronous>, transform_indices = @transform_6, window_bounds = array<i64: 2, 1, 128>}, {pipeline_mode = #tpu.pipeline_mode<synchronous>, transform_indices = @transform_7, window_bounds = array<i64: 2, 1, 128>}, {pipeline_mode = #tpu.pipeline_mode<synchronous>, transform_indices = @transform_8, window_bounds = array<i64: 2, 128, 256>}, {pipeline_mode = #tpu.pipeline_mode<synchronous>, transform_indices = @transform_9, window_bounds = array<i64: 2, 1, 256>}, {pipeline_mode = #tpu.pipeline_mode<synchronous>, transform_indices = @transform_10, window_bounds = array<i64: 2, 256, 128>}, {pipeline_mode = #tpu.pipeline_mode<synchronous>, transform_indices = @transform_11, window_bounds = array<i64: 2, 1, 128>}, {pipeline_mode = #tpu.pipeline_mode<synchronous>, transform_indices = @transform_12, window_bounds = array<i64: 2, 1, 128>}, {pipeline_mode = #tpu.pipeline_mode<synchronous>, transform_indices = @transform_13, window_bounds = array<i64: 2, 1, 128>}, {pipeline_mode = #tpu.pipeline_mode<synchronous>, transform_indices = @transform_14, window_bounds = array<i64: 128, 128>}, {pipeline_mode = #tpu.pipeline_mode<synchronous>, transform_indices = @transform_15, window_bounds = array<i64: 1, 128>}, {pipeline_mode = #tpu.pipeline_mode<synchronous>, transform_indices = @transform_16, window_bounds = array<i64: 128, 1>}, {pipeline_mode = #tpu.pipeline_mode<synchronous>, transform_indices = @transform_17, window_bounds = array<i64: 1, 1>}, {transform_indices = @transform_18, window_bounds = array<i64: 1, 1, 1>}]} {
    %c0 = arith.constant 0 : index
    %c0_0 = arith.constant 0 : index
    %c0_1 = arith.constant 0 : index
    %0 = vector.load %arg1[%c0, %c0_0, %c0_1] : memref<1x16x128xf32, #tpu.memory_space<vmem>>, vector<1x16x128xf32>
    %1 = vector.shape_cast %0 : vector<1x16x128xf32> to vector<16x128xf32>
    %cst = arith.constant 11.3137083 : f32
    %2 = vector.broadcast %cst : f32 to vector<16x128xf32>
    %3 = arith.mulf %1, %2 : vector<16x128xf32>
    %c0_2 = arith.constant 0 : index
    %c0_3 = arith.constant 0 : index
    %4 = vector.load %arg2[%c0_2, %c0_3] : memref<16x128xf32, #tpu.memory_space<vmem>>, vector<16x128xf32>
    %5 = arith.addf %3, %4 : vector<16x128xf32>
    %c0_4 = arith.constant 0 : index
    %c0_5 = arith.constant 0 : index
    %c0_6 = arith.constant 0 : index
    %6 = vector.load %arg3[%c0_4, %c0_5, %c0_6] : memref<2x128x384xf32, #tpu.memory_space<vmem>>, vector<1x128x384xf32>
    %7 = vector.shape_cast %6 : vector<1x128x384xf32> to vector<128x384xf32>
    %cst_7 = arith.constant dense<0.000000e+00> : vector<16x384xf32>
    %8 = tpu.matmul %5, %7, %cst_7 {dimension_numbers = #tpu.dot_dimension_numbers<[1], [0], [0], [1], [0, 0, 1, 1], [], []>} : vector<16x128xf32>, vector<128x384xf32>, vector<16x384xf32> -> vector<16x384xf32>
    %c0_8 = arith.constant 0 : index
    %c0_9 = arith.constant 0 : index
    %c0_10 = arith.constant 0 : index
    %9 = vector.load %arg4[%c0_8, %c0_9, %c0_10] : memref<2x1x384xf32, #tpu.memory_space<vmem>>, vector<1x1x384xf32>
    %10 = vector.shape_cast %9 : vector<1x1x384xf32> to vector<1x384xf32>
    %11 = vector.broadcast %10 : vector<1x384xf32> to vector<16x384xf32>
    %12 = arith.addf %8, %11 : vector<16x384xf32>
    %13 = vector.extract_strided_slice %12 {offsets = [0, 0], sizes = [16, 32], strides = [1, 1]} : vector<16x384xf32> to vector<16x32xf32>
    %14 = vector.extract_strided_slice %12 {offsets = [0, 128], sizes = [16, 32], strides = [1, 1]} : vector<16x384xf32> to vector<16x32xf32>
    %15 = vector.extract_strided_slice %12 {offsets = [0, 256], sizes = [16, 32], strides = [1, 1]} : vector<16x384xf32> to vector<16x32xf32>
    %cst_11 = arith.constant dense<0.000000e+00> : vector<16x16xf32>
    %16 = tpu.matmul %13, %14, %cst_11 {dimension_numbers = #tpu.dot_dimension_numbers<[1], [1], [0], [0], [0, 0, 1, 0], [], []>} : vector<16x32xf32>, vector<16x32xf32>, vector<16x16xf32> -> vector<16x16xf32>
    %cst_12 = arith.constant 0.176776692 : f32
    %17 = vector.broadcast %cst_12 : f32 to vector<16x16xf32>
    %18 = arith.mulf %16, %17 : vector<16x16xf32>
    %cst_13 = arith.constant dense<0xFF800000> : vector<16xf32>
    %19 = vector.multi_reduction <maximumf>, %18, %cst_13 [1] : vector<16x16xf32> to vector<16xf32>
    %20 = vector.shape_cast %19 : vector<16xf32> to vector<16x1xf32>
    %21 = vector.broadcast %20 : vector<16x1xf32> to vector<16x16xf32>
    %22 = arith.subf %18, %21 : vector<16x16xf32>
    %23 = math.exp %22 : vector<16x16xf32>
    %cst_14 = arith.constant dense<0.000000e+00> : vector<16xf32>
    %24 = vector.multi_reduction <add>, %23, %cst_14 [1] : vector<16x16xf32> to vector<16xf32>
    %25 = vector.shape_cast %24 : vector<16xf32> to vector<16x1xf32>
    %26 = vector.broadcast %25 : vector<16x1xf32> to vector<16x16xf32>
    %27 = arith.divf %23, %26 : vector<16x16xf32>
    %cst_15 = arith.constant dense<0.000000e+00> : vector<16x32xf32>
    %28 = tpu.matmul %27, %15, %cst_15 {dimension_numbers = #tpu.dot_dimension_numbers<[1], [0], [0], [1], [0, 0, 1, 1], [], []>} : vector<16x16xf32>, vector<16x32xf32>, vector<16x32xf32> -> vector<16x32xf32>
    %29 = vector.extract_strided_slice %12 {offsets = [0, 32], sizes = [16, 32], strides = [1, 1]} : vector<16x384xf32> to vector<16x32xf32>
    %30 = vector.extract_strided_slice %12 {offsets = [0, 160], sizes = [16, 32], strides = [1, 1]} : vector<16x384xf32> to vector<16x32xf32>
    %31 = vector.extract_strided_slice %12 {offsets = [0, 288], sizes = [16, 32], strides = [1, 1]} : vector<16x384xf32> to vector<16x32xf32>
    %cst_16 = arith.constant dense<0.000000e+00> : vector<16x16xf32>
    %32 = tpu.matmul %29, %30, %cst_16 {dimension_numbers = #tpu.dot_dimension_numbers<[1], [1], [0], [0], [0, 0, 1, 0], [], []>} : vector<16x32xf32>, vector<16x32xf32>, vector<16x16xf32> -> vector<16x16xf32>
    %cst_17 = arith.constant 0.176776692 : f32
    %33 = vector.broadcast %cst_17 : f32 to vector<16x16xf32>
    %34 = arith.mulf %32, %33 : vector<16x16xf32>
    %cst_18 = arith.constant dense<0xFF800000> : vector<16xf32>
    %35 = vector.multi_reduction <maximumf>, %34, %cst_18 [1] : vector<16x16xf32> to vector<16xf32>
    %36 = vector.shape_cast %35 : vector<16xf32> to vector<16x1xf32>
    %37 = vector.broadcast %36 : vector<16x1xf32> to vector<16x16xf32>
    %38 = arith.subf %34, %37 : vector<16x16xf32>
    %39 = math.exp %38 : vector<16x16xf32>
    %cst_19 = arith.constant dense<0.000000e+00> : vector<16xf32>
    %40 = vector.multi_reduction <add>, %39, %cst_19 [1] : vector<16x16xf32> to vector<16xf32>
    %41 = vector.shape_cast %40 : vector<16xf32> to vector<16x1xf32>
    %42 = vector.broadcast %41 : vector<16x1xf32> to vector<16x16xf32>
    %43 = arith.divf %39, %42 : vector<16x16xf32>
    %cst_20 = arith.constant dense<0.000000e+00> : vector<16x32xf32>
    %44 = tpu.matmul %43, %31, %cst_20 {dimension_numbers = #tpu.dot_dimension_numbers<[1], [0], [0], [1], [0, 0, 1, 1], [], []>} : vector<16x16xf32>, vector<16x32xf32>, vector<16x32xf32> -> vector<16x32xf32>
    %45 = vector.extract_strided_slice %12 {offsets = [0, 64], sizes = [16, 32], strides = [1, 1]} : vector<16x384xf32> to vector<16x32xf32>
    %46 = vector.extract_strided_slice %12 {offsets = [0, 192], sizes = [16, 32], strides = [1, 1]} : vector<16x384xf32> to vector<16x32xf32>
    %47 = vector.extract_strided_slice %12 {offsets = [0, 320], sizes = [16, 32], strides = [1, 1]} : vector<16x384xf32> to vector<16x32xf32>
    %cst_21 = arith.constant dense<0.000000e+00> : vector<16x16xf32>
    %48 = tpu.matmul %45, %46, %cst_21 {dimension_numbers = #tpu.dot_dimension_numbers<[1], [1], [0], [0], [0, 0, 1, 0], [], []>} : vector<16x32xf32>, vector<16x32xf32>, vector<16x16xf32> -> vector<16x16xf32>
    %cst_22 = arith.constant 0.176776692 : f32
    %49 = vector.broadcast %cst_22 : f32 to vector<16x16xf32>
    %50 = arith.mulf %48, %49 : vector<16x16xf32>
    %cst_23 = arith.constant dense<0xFF800000> : vector<16xf32>
    %51 = vector.multi_reduction <maximumf>, %50, %cst_23 [1] : vector<16x16xf32> to vector<16xf32>
    %52 = vector.shape_cast %51 : vector<16xf32> to vector<16x1xf32>
    %53 = vector.broadcast %52 : vector<16x1xf32> to vector<16x16xf32>
    %54 = arith.subf %50, %53 : vector<16x16xf32>
    %55 = math.exp %54 : vector<16x16xf32>
    %cst_24 = arith.constant dense<0.000000e+00> : vector<16xf32>
    %56 = vector.multi_reduction <add>, %55, %cst_24 [1] : vector<16x16xf32> to vector<16xf32>
    %57 = vector.shape_cast %56 : vector<16xf32> to vector<16x1xf32>
    %58 = vector.broadcast %57 : vector<16x1xf32> to vector<16x16xf32>
    %59 = arith.divf %55, %58 : vector<16x16xf32>
    %cst_25 = arith.constant dense<0.000000e+00> : vector<16x32xf32>
    %60 = tpu.matmul %59, %47, %cst_25 {dimension_numbers = #tpu.dot_dimension_numbers<[1], [0], [0], [1], [0, 0, 1, 1], [], []>} : vector<16x16xf32>, vector<16x32xf32>, vector<16x32xf32> -> vector<16x32xf32>
    %61 = vector.extract_strided_slice %12 {offsets = [0, 96], sizes = [16, 32], strides = [1, 1]} : vector<16x384xf32> to vector<16x32xf32>
    %62 = vector.extract_strided_slice %12 {offsets = [0, 224], sizes = [16, 32], strides = [1, 1]} : vector<16x384xf32> to vector<16x32xf32>
    %63 = vector.extract_strided_slice %12 {offsets = [0, 352], sizes = [16, 32], strides = [1, 1]} : vector<16x384xf32> to vector<16x32xf32>
    %cst_26 = arith.constant dense<0.000000e+00> : vector<16x16xf32>
    %64 = tpu.matmul %61, %62, %cst_26 {dimension_numbers = #tpu.dot_dimension_numbers<[1], [1], [0], [0], [0, 0, 1, 0], [], []>} : vector<16x32xf32>, vector<16x32xf32>, vector<16x16xf32> -> vector<16x16xf32>
    %cst_27 = arith.constant 0.176776692 : f32
    %65 = vector.broadcast %cst_27 : f32 to vector<16x16xf32>
    %66 = arith.mulf %64, %65 : vector<16x16xf32>
    %cst_28 = arith.constant dense<0xFF800000> : vector<16xf32>
    %67 = vector.multi_reduction <maximumf>, %66, %cst_28 [1] : vector<16x16xf32> to vector<16xf32>
    %68 = vector.shape_cast %67 : vector<16xf32> to vector<16x1xf32>
    %69 = vector.broadcast %68 : vector<16x1xf32> to vector<16x16xf32>
    %70 = arith.subf %66, %69 : vector<16x16xf32>
    %71 = math.exp %70 : vector<16x16xf32>
    %cst_29 = arith.constant dense<0.000000e+00> : vector<16xf32>
    %72 = vector.multi_reduction <add>, %71, %cst_29 [1] : vector<16x16xf32> to vector<16xf32>
    %73 = vector.shape_cast %72 : vector<16xf32> to vector<16x1xf32>
    %74 = vector.broadcast %73 : vector<16x1xf32> to vector<16x16xf32>
    %75 = arith.divf %71, %74 : vector<16x16xf32>
    %cst_30 = arith.constant dense<0.000000e+00> : vector<16x32xf32>
    %76 = tpu.matmul %75, %63, %cst_30 {dimension_numbers = #tpu.dot_dimension_numbers<[1], [0], [0], [1], [0, 0, 1, 1], [], []>} : vector<16x16xf32>, vector<16x32xf32>, vector<16x32xf32> -> vector<16x32xf32>
    %77 = tpu.concatenate %28, %44, %60, %76 in 1 : vector<16x32xf32>, vector<16x32xf32>, vector<16x32xf32>, vector<16x32xf32> -> vector<16x128xf32>
    %c0_31 = arith.constant 0 : index
    %c0_32 = arith.constant 0 : index
    %c0_33 = arith.constant 0 : index
    %78 = vector.load %arg5[%c0_31, %c0_32, %c0_33] : memref<2x128x128xf32, #tpu.memory_space<vmem>>, vector<1x128x128xf32>
    %79 = vector.shape_cast %78 : vector<1x128x128xf32> to vector<128x128xf32>
    %cst_34 = arith.constant dense<0.000000e+00> : vector<16x128xf32>
    %80 = tpu.matmul %77, %79, %cst_34 {dimension_numbers = #tpu.dot_dimension_numbers<[1], [0], [0], [1], [0, 0, 1, 1], [], []>} : vector<16x128xf32>, vector<128x128xf32>, vector<16x128xf32> -> vector<16x128xf32>
    %c0_35 = arith.constant 0 : index
    %c0_36 = arith.constant 0 : index
    %c0_37 = arith.constant 0 : index
    %81 = vector.load %arg6[%c0_35, %c0_36, %c0_37] : memref<2x1x128xf32, #tpu.memory_space<vmem>>, vector<1x1x128xf32>
    %82 = vector.shape_cast %81 : vector<1x1x128xf32> to vector<1x128xf32>
    %83 = vector.broadcast %82 : vector<1x128xf32> to vector<16x128xf32>
    %84 = arith.addf %80, %83 : vector<16x128xf32>
    %85 = arith.addf %5, %84 : vector<16x128xf32>
    %c0_38 = arith.constant 0 : index
    %c0_39 = arith.constant 0 : index
    %c0_40 = arith.constant 0 : index
    %86 = vector.load %arg7[%c0_38, %c0_39, %c0_40] : memref<2x1x128xf32, #tpu.memory_space<vmem>>, vector<1x1x128xf32>
    %87 = vector.shape_cast %86 : vector<1x1x128xf32> to vector<1x128xf32>
    %c0_41 = arith.constant 0 : index
    %c0_42 = arith.constant 0 : index
    %c0_43 = arith.constant 0 : index
    %88 = vector.load %arg8[%c0_41, %c0_42, %c0_43] : memref<2x1x128xf32, #tpu.memory_space<vmem>>, vector<1x1x128xf32>
    %89 = vector.shape_cast %88 : vector<1x1x128xf32> to vector<1x128xf32>
    %cst_44 = arith.constant dense<0.000000e+00> : vector<16xf32>
    %90 = vector.multi_reduction <add>, %85, %cst_44 [1] : vector<16x128xf32> to vector<16xf32>
    %91 = vector.shape_cast %90 : vector<16xf32> to vector<16x1xf32>
    %cst_45 = arith.constant 1.280000e+02 : f32
    %92 = vector.broadcast %cst_45 : f32 to vector<16x1xf32>
    %93 = arith.divf %91, %92 : vector<16x1xf32>
    %94 = vector.broadcast %93 : vector<16x1xf32> to vector<16x128xf32>
    %95 = arith.subf %85, %94 : vector<16x128xf32>
    %96 = arith.mulf %95, %95 : vector<16x128xf32>
    %cst_46 = arith.constant dense<0.000000e+00> : vector<16xf32>
    %97 = vector.multi_reduction <add>, %96, %cst_46 [1] : vector<16x128xf32> to vector<16xf32>
    %98 = vector.shape_cast %97 : vector<16xf32> to vector<16x1xf32>
    %cst_47 = arith.constant 1.280000e+02 : f32
    %99 = vector.broadcast %cst_47 : f32 to vector<16x1xf32>
    %100 = arith.divf %98, %99 : vector<16x1xf32>
    %cst_48 = arith.constant 9.99999974E-6 : f32
    %101 = vector.broadcast %cst_48 : f32 to vector<16x1xf32>
    %102 = arith.addf %100, %101 : vector<16x1xf32>
    %103 = math.rsqrt %102 : vector<16x1xf32>
    %104 = vector.broadcast %103 : vector<16x1xf32> to vector<16x128xf32>
    %105 = arith.mulf %95, %104 : vector<16x128xf32>
    %106 = vector.broadcast %87 : vector<1x128xf32> to vector<16x128xf32>
    %107 = arith.mulf %105, %106 : vector<16x128xf32>
    %108 = vector.broadcast %89 : vector<1x128xf32> to vector<16x128xf32>
    %109 = arith.addf %107, %108 : vector<16x128xf32>
    %c0_49 = arith.constant 0 : index
    %c0_50 = arith.constant 0 : index
    %c0_51 = arith.constant 0 : index
    %110 = vector.load %arg9[%c0_49, %c0_50, %c0_51] : memref<2x128x256xf32, #tpu.memory_space<vmem>>, vector<1x128x256xf32>
    %111 = vector.shape_cast %110 : vector<1x128x256xf32> to vector<128x256xf32>
    %cst_52 = arith.constant dense<0.000000e+00> : vector<16x256xf32>
    %112 = tpu.matmul %109, %111, %cst_52 {dimension_numbers = #tpu.dot_dimension_numbers<[1], [0], [0], [1], [0, 0, 1, 1], [], []>} : vector<16x128xf32>, vector<128x256xf32>, vector<16x256xf32> -> vector<16x256xf32>
    %c0_53 = arith.constant 0 : index
    %c0_54 = arith.constant 0 : index
    %c0_55 = arith.constant 0 : index
    %113 = vector.load %arg10[%c0_53, %c0_54, %c0_55] : memref<2x1x256xf32, #tpu.memory_space<vmem>>, vector<1x1x256xf32>
    %114 = vector.shape_cast %113 : vector<1x1x256xf32> to vector<1x256xf32>
    %115 = vector.broadcast %114 : vector<1x256xf32> to vector<16x256xf32>
    %116 = arith.addf %112, %115 : vector<16x256xf32>
    %cst_56 = arith.constant 0.000000e+00 : f32
    %117 = vector.broadcast %cst_56 : f32 to vector<16x256xf32>
    %118 = arith.maximumf %116, %117 : vector<16x256xf32>
    %c0_57 = arith.constant 0 : index
    %c0_58 = arith.constant 0 : index
    %c0_59 = arith.constant 0 : index
    %119 = vector.load %arg11[%c0_57, %c0_58, %c0_59] : memref<2x256x128xf32, #tpu.memory_space<vmem>>, vector<1x256x128xf32>
    %120 = vector.shape_cast %119 : vector<1x256x128xf32> to vector<256x128xf32>
    %cst_60 = arith.constant dense<0.000000e+00> : vector<16x128xf32>
    %121 = tpu.matmul %118, %120, %cst_60 {dimension_numbers = #tpu.dot_dimension_numbers<[1], [0], [0], [1], [0, 0, 1, 1], [], []>} : vector<16x256xf32>, vector<256x128xf32>, vector<16x128xf32> -> vector<16x128xf32>
    %c0_61 = arith.constant 0 : index
    %c0_62 = arith.constant 0 : index
    %c0_63 = arith.constant 0 : index
    %122 = vector.load %arg12[%c0_61, %c0_62, %c0_63] : memref<2x1x128xf32, #tpu.memory_space<vmem>>, vector<1x1x128xf32>
    %123 = vector.shape_cast %122 : vector<1x1x128xf32> to vector<1x128xf32>
    %124 = vector.broadcast %123 : vector<1x128xf32> to vector<16x128xf32>
    %125 = arith.addf %121, %124 : vector<16x128xf32>
    %126 = arith.addf %109, %125 : vector<16x128xf32>
    %c0_64 = arith.constant 0 : index
    %c0_65 = arith.constant 0 : index
    %c0_66 = arith.constant 0 : index
    %127 = vector.load %arg13[%c0_64, %c0_65, %c0_66] : memref<2x1x128xf32, #tpu.memory_space<vmem>>, vector<1x1x128xf32>
    %128 = vector.shape_cast %127 : vector<1x1x128xf32> to vector<1x128xf32>
    %c0_67 = arith.constant 0 : index
    %c0_68 = arith.constant 0 : index
    %c0_69 = arith.constant 0 : index
    %129 = vector.load %arg14[%c0_67, %c0_68, %c0_69] : memref<2x1x128xf32, #tpu.memory_space<vmem>>, vector<1x1x128xf32>
    %130 = vector.shape_cast %129 : vector<1x1x128xf32> to vector<1x128xf32>
    %cst_70 = arith.constant dense<0.000000e+00> : vector<16xf32>
    %131 = vector.multi_reduction <add>, %126, %cst_70 [1] : vector<16x128xf32> to vector<16xf32>
    %132 = vector.shape_cast %131 : vector<16xf32> to vector<16x1xf32>
    %cst_71 = arith.constant 1.280000e+02 : f32
    %133 = vector.broadcast %cst_71 : f32 to vector<16x1xf32>
    %134 = arith.divf %132, %133 : vector<16x1xf32>
    %135 = vector.broadcast %134 : vector<16x1xf32> to vector<16x128xf32>
    %136 = arith.subf %126, %135 : vector<16x128xf32>
    %137 = arith.mulf %136, %136 : vector<16x128xf32>
    %cst_72 = arith.constant dense<0.000000e+00> : vector<16xf32>
    %138 = vector.multi_reduction <add>, %137, %cst_72 [1] : vector<16x128xf32> to vector<16xf32>
    %139 = vector.shape_cast %138 : vector<16xf32> to vector<16x1xf32>
    %cst_73 = arith.constant 1.280000e+02 : f32
    %140 = vector.broadcast %cst_73 : f32 to vector<16x1xf32>
    %141 = arith.divf %139, %140 : vector<16x1xf32>
    %cst_74 = arith.constant 9.99999974E-6 : f32
    %142 = vector.broadcast %cst_74 : f32 to vector<16x1xf32>
    %143 = arith.addf %141, %142 : vector<16x1xf32>
    %144 = math.rsqrt %143 : vector<16x1xf32>
    %145 = vector.broadcast %144 : vector<16x1xf32> to vector<16x128xf32>
    %146 = arith.mulf %136, %145 : vector<16x128xf32>
    %147 = vector.broadcast %128 : vector<1x128xf32> to vector<16x128xf32>
    %148 = arith.mulf %146, %147 : vector<16x128xf32>
    %149 = vector.broadcast %130 : vector<1x128xf32> to vector<16x128xf32>
    %150 = arith.addf %148, %149 : vector<16x128xf32>
    %c1 = arith.constant 1 : index
    %c0_75 = arith.constant 0 : index
    %c0_76 = arith.constant 0 : index
    %151 = vector.load %arg3[%c1, %c0_75, %c0_76] : memref<2x128x384xf32, #tpu.memory_space<vmem>>, vector<1x128x384xf32>
    %152 = vector.shape_cast %151 : vector<1x128x384xf32> to vector<128x384xf32>
    %cst_77 = arith.constant dense<0.000000e+00> : vector<16x384xf32>
    %153 = tpu.matmul %150, %152, %cst_77 {dimension_numbers = #tpu.dot_dimension_numbers<[1], [0], [0], [1], [0, 0, 1, 1], [], []>} : vector<16x128xf32>, vector<128x384xf32>, vector<16x384xf32> -> vector<16x384xf32>
    %c1_78 = arith.constant 1 : index
    %c0_79 = arith.constant 0 : index
    %c0_80 = arith.constant 0 : index
    %154 = vector.load %arg4[%c1_78, %c0_79, %c0_80] : memref<2x1x384xf32, #tpu.memory_space<vmem>>, vector<1x1x384xf32>
    %155 = vector.shape_cast %154 : vector<1x1x384xf32> to vector<1x384xf32>
    %156 = vector.broadcast %155 : vector<1x384xf32> to vector<16x384xf32>
    %157 = arith.addf %153, %156 : vector<16x384xf32>
    %158 = vector.extract_strided_slice %157 {offsets = [0, 0], sizes = [16, 32], strides = [1, 1]} : vector<16x384xf32> to vector<16x32xf32>
    %159 = vector.extract_strided_slice %157 {offsets = [0, 128], sizes = [16, 32], strides = [1, 1]} : vector<16x384xf32> to vector<16x32xf32>
    %160 = vector.extract_strided_slice %157 {offsets = [0, 256], sizes = [16, 32], strides = [1, 1]} : vector<16x384xf32> to vector<16x32xf32>
    %cst_81 = arith.constant dense<0.000000e+00> : vector<16x16xf32>
    %161 = tpu.matmul %158, %159, %cst_81 {dimension_numbers = #tpu.dot_dimension_numbers<[1], [1], [0], [0], [0, 0, 1, 0], [], []>} : vector<16x32xf32>, vector<16x32xf32>, vector<16x16xf32> -> vector<16x16xf32>
    %cst_82 = arith.constant 0.176776692 : f32
    %162 = vector.broadcast %cst_82 : f32 to vector<16x16xf32>
    %163 = arith.mulf %161, %162 : vector<16x16xf32>
    %cst_83 = arith.constant dense<0xFF800000> : vector<16xf32>
    %164 = vector.multi_reduction <maximumf>, %163, %cst_83 [1] : vector<16x16xf32> to vector<16xf32>
    %165 = vector.shape_cast %164 : vector<16xf32> to vector<16x1xf32>
    %166 = vector.broadcast %165 : vector<16x1xf32> to vector<16x16xf32>
    %167 = arith.subf %163, %166 : vector<16x16xf32>
    %168 = math.exp %167 : vector<16x16xf32>
    %cst_84 = arith.constant dense<0.000000e+00> : vector<16xf32>
    %169 = vector.multi_reduction <add>, %168, %cst_84 [1] : vector<16x16xf32> to vector<16xf32>
    %170 = vector.shape_cast %169 : vector<16xf32> to vector<16x1xf32>
    %171 = vector.broadcast %170 : vector<16x1xf32> to vector<16x16xf32>
    %172 = arith.divf %168, %171 : vector<16x16xf32>
    %cst_85 = arith.constant dense<0.000000e+00> : vector<16x32xf32>
    %173 = tpu.matmul %172, %160, %cst_85 {dimension_numbers = #tpu.dot_dimension_numbers<[1], [0], [0], [1], [0, 0, 1, 1], [], []>} : vector<16x16xf32>, vector<16x32xf32>, vector<16x32xf32> -> vector<16x32xf32>
    %174 = vector.extract_strided_slice %157 {offsets = [0, 32], sizes = [16, 32], strides = [1, 1]} : vector<16x384xf32> to vector<16x32xf32>
    %175 = vector.extract_strided_slice %157 {offsets = [0, 160], sizes = [16, 32], strides = [1, 1]} : vector<16x384xf32> to vector<16x32xf32>
    %176 = vector.extract_strided_slice %157 {offsets = [0, 288], sizes = [16, 32], strides = [1, 1]} : vector<16x384xf32> to vector<16x32xf32>
    %cst_86 = arith.constant dense<0.000000e+00> : vector<16x16xf32>
    %177 = tpu.matmul %174, %175, %cst_86 {dimension_numbers = #tpu.dot_dimension_numbers<[1], [1], [0], [0], [0, 0, 1, 0], [], []>} : vector<16x32xf32>, vector<16x32xf32>, vector<16x16xf32> -> vector<16x16xf32>
    %cst_87 = arith.constant 0.176776692 : f32
    %178 = vector.broadcast %cst_87 : f32 to vector<16x16xf32>
    %179 = arith.mulf %177, %178 : vector<16x16xf32>
    %cst_88 = arith.constant dense<0xFF800000> : vector<16xf32>
    %180 = vector.multi_reduction <maximumf>, %179, %cst_88 [1] : vector<16x16xf32> to vector<16xf32>
    %181 = vector.shape_cast %180 : vector<16xf32> to vector<16x1xf32>
    %182 = vector.broadcast %181 : vector<16x1xf32> to vector<16x16xf32>
    %183 = arith.subf %179, %182 : vector<16x16xf32>
    %184 = math.exp %183 : vector<16x16xf32>
    %cst_89 = arith.constant dense<0.000000e+00> : vector<16xf32>
    %185 = vector.multi_reduction <add>, %184, %cst_89 [1] : vector<16x16xf32> to vector<16xf32>
    %186 = vector.shape_cast %185 : vector<16xf32> to vector<16x1xf32>
    %187 = vector.broadcast %186 : vector<16x1xf32> to vector<16x16xf32>
    %188 = arith.divf %184, %187 : vector<16x16xf32>
    %cst_90 = arith.constant dense<0.000000e+00> : vector<16x32xf32>
    %189 = tpu.matmul %188, %176, %cst_90 {dimension_numbers = #tpu.dot_dimension_numbers<[1], [0], [0], [1], [0, 0, 1, 1], [], []>} : vector<16x16xf32>, vector<16x32xf32>, vector<16x32xf32> -> vector<16x32xf32>
    %190 = vector.extract_strided_slice %157 {offsets = [0, 64], sizes = [16, 32], strides = [1, 1]} : vector<16x384xf32> to vector<16x32xf32>
    %191 = vector.extract_strided_slice %157 {offsets = [0, 192], sizes = [16, 32], strides = [1, 1]} : vector<16x384xf32> to vector<16x32xf32>
    %192 = vector.extract_strided_slice %157 {offsets = [0, 320], sizes = [16, 32], strides = [1, 1]} : vector<16x384xf32> to vector<16x32xf32>
    %cst_91 = arith.constant dense<0.000000e+00> : vector<16x16xf32>
    %193 = tpu.matmul %190, %191, %cst_91 {dimension_numbers = #tpu.dot_dimension_numbers<[1], [1], [0], [0], [0, 0, 1, 0], [], []>} : vector<16x32xf32>, vector<16x32xf32>, vector<16x16xf32> -> vector<16x16xf32>
    %cst_92 = arith.constant 0.176776692 : f32
    %194 = vector.broadcast %cst_92 : f32 to vector<16x16xf32>
    %195 = arith.mulf %193, %194 : vector<16x16xf32>
    %cst_93 = arith.constant dense<0xFF800000> : vector<16xf32>
    %196 = vector.multi_reduction <maximumf>, %195, %cst_93 [1] : vector<16x16xf32> to vector<16xf32>
    %197 = vector.shape_cast %196 : vector<16xf32> to vector<16x1xf32>
    %198 = vector.broadcast %197 : vector<16x1xf32> to vector<16x16xf32>
    %199 = arith.subf %195, %198 : vector<16x16xf32>
    %200 = math.exp %199 : vector<16x16xf32>
    %cst_94 = arith.constant dense<0.000000e+00> : vector<16xf32>
    %201 = vector.multi_reduction <add>, %200, %cst_94 [1] : vector<16x16xf32> to vector<16xf32>
    %202 = vector.shape_cast %201 : vector<16xf32> to vector<16x1xf32>
    %203 = vector.broadcast %202 : vector<16x1xf32> to vector<16x16xf32>
    %204 = arith.divf %200, %203 : vector<16x16xf32>
    %cst_95 = arith.constant dense<0.000000e+00> : vector<16x32xf32>
    %205 = tpu.matmul %204, %192, %cst_95 {dimension_numbers = #tpu.dot_dimension_numbers<[1], [0], [0], [1], [0, 0, 1, 1], [], []>} : vector<16x16xf32>, vector<16x32xf32>, vector<16x32xf32> -> vector<16x32xf32>
    %206 = vector.extract_strided_slice %157 {offsets = [0, 96], sizes = [16, 32], strides = [1, 1]} : vector<16x384xf32> to vector<16x32xf32>
    %207 = vector.extract_strided_slice %157 {offsets = [0, 224], sizes = [16, 32], strides = [1, 1]} : vector<16x384xf32> to vector<16x32xf32>
    %208 = vector.extract_strided_slice %157 {offsets = [0, 352], sizes = [16, 32], strides = [1, 1]} : vector<16x384xf32> to vector<16x32xf32>
    %cst_96 = arith.constant dense<0.000000e+00> : vector<16x16xf32>
    %209 = tpu.matmul %206, %207, %cst_96 {dimension_numbers = #tpu.dot_dimension_numbers<[1], [1], [0], [0], [0, 0, 1, 0], [], []>} : vector<16x32xf32>, vector<16x32xf32>, vector<16x16xf32> -> vector<16x16xf32>
    %cst_97 = arith.constant 0.176776692 : f32
    %210 = vector.broadcast %cst_97 : f32 to vector<16x16xf32>
    %211 = arith.mulf %209, %210 : vector<16x16xf32>
    %cst_98 = arith.constant dense<0xFF800000> : vector<16xf32>
    %212 = vector.multi_reduction <maximumf>, %211, %cst_98 [1] : vector<16x16xf32> to vector<16xf32>
    %213 = vector.shape_cast %212 : vector<16xf32> to vector<16x1xf32>
    %214 = vector.broadcast %213 : vector<16x1xf32> to vector<16x16xf32>
    %215 = arith.subf %211, %214 : vector<16x16xf32>
    %216 = math.exp %215 : vector<16x16xf32>
    %cst_99 = arith.constant dense<0.000000e+00> : vector<16xf32>
    %217 = vector.multi_reduction <add>, %216, %cst_99 [1] : vector<16x16xf32> to vector<16xf32>
    %218 = vector.shape_cast %217 : vector<16xf32> to vector<16x1xf32>
    %219 = vector.broadcast %218 : vector<16x1xf32> to vector<16x16xf32>
    %220 = arith.divf %216, %219 : vector<16x16xf32>
    %cst_100 = arith.constant dense<0.000000e+00> : vector<16x32xf32>
    %221 = tpu.matmul %220, %208, %cst_100 {dimension_numbers = #tpu.dot_dimension_numbers<[1], [0], [0], [1], [0, 0, 1, 1], [], []>} : vector<16x16xf32>, vector<16x32xf32>, vector<16x32xf32> -> vector<16x32xf32>
    %222 = tpu.concatenate %173, %189, %205, %221 in 1 : vector<16x32xf32>, vector<16x32xf32>, vector<16x32xf32>, vector<16x32xf32> -> vector<16x128xf32>
    %c1_101 = arith.constant 1 : index
    %c0_102 = arith.constant 0 : index
    %c0_103 = arith.constant 0 : index
    %223 = vector.load %arg5[%c1_101, %c0_102, %c0_103] : memref<2x128x128xf32, #tpu.memory_space<vmem>>, vector<1x128x128xf32>
    %224 = vector.shape_cast %223 : vector<1x128x128xf32> to vector<128x128xf32>
    %cst_104 = arith.constant dense<0.000000e+00> : vector<16x128xf32>
    %225 = tpu.matmul %222, %224, %cst_104 {dimension_numbers = #tpu.dot_dimension_numbers<[1], [0], [0], [1], [0, 0, 1, 1], [], []>} : vector<16x128xf32>, vector<128x128xf32>, vector<16x128xf32> -> vector<16x128xf32>
    %c1_105 = arith.constant 1 : index
    %c0_106 = arith.constant 0 : index
    %c0_107 = arith.constant 0 : index
    %226 = vector.load %arg6[%c1_105, %c0_106, %c0_107] : memref<2x1x128xf32, #tpu.memory_space<vmem>>, vector<1x1x128xf32>
    %227 = vector.shape_cast %226 : vector<1x1x128xf32> to vector<1x128xf32>
    %228 = vector.broadcast %227 : vector<1x128xf32> to vector<16x128xf32>
    %229 = arith.addf %225, %228 : vector<16x128xf32>
    %230 = arith.addf %150, %229 : vector<16x128xf32>
    %c1_108 = arith.constant 1 : index
    %c0_109 = arith.constant 0 : index
    %c0_110 = arith.constant 0 : index
    %231 = vector.load %arg7[%c1_108, %c0_109, %c0_110] : memref<2x1x128xf32, #tpu.memory_space<vmem>>, vector<1x1x128xf32>
    %232 = vector.shape_cast %231 : vector<1x1x128xf32> to vector<1x128xf32>
    %c1_111 = arith.constant 1 : index
    %c0_112 = arith.constant 0 : index
    %c0_113 = arith.constant 0 : index
    %233 = vector.load %arg8[%c1_111, %c0_112, %c0_113] : memref<2x1x128xf32, #tpu.memory_space<vmem>>, vector<1x1x128xf32>
    %234 = vector.shape_cast %233 : vector<1x1x128xf32> to vector<1x128xf32>
    %cst_114 = arith.constant dense<0.000000e+00> : vector<16xf32>
    %235 = vector.multi_reduction <add>, %230, %cst_114 [1] : vector<16x128xf32> to vector<16xf32>
    %236 = vector.shape_cast %235 : vector<16xf32> to vector<16x1xf32>
    %cst_115 = arith.constant 1.280000e+02 : f32
    %237 = vector.broadcast %cst_115 : f32 to vector<16x1xf32>
    %238 = arith.divf %236, %237 : vector<16x1xf32>
    %239 = vector.broadcast %238 : vector<16x1xf32> to vector<16x128xf32>
    %240 = arith.subf %230, %239 : vector<16x128xf32>
    %241 = arith.mulf %240, %240 : vector<16x128xf32>
    %cst_116 = arith.constant dense<0.000000e+00> : vector<16xf32>
    %242 = vector.multi_reduction <add>, %241, %cst_116 [1] : vector<16x128xf32> to vector<16xf32>
    %243 = vector.shape_cast %242 : vector<16xf32> to vector<16x1xf32>
    %cst_117 = arith.constant 1.280000e+02 : f32
    %244 = vector.broadcast %cst_117 : f32 to vector<16x1xf32>
    %245 = arith.divf %243, %244 : vector<16x1xf32>
    %cst_118 = arith.constant 9.99999974E-6 : f32
    %246 = vector.broadcast %cst_118 : f32 to vector<16x1xf32>
    %247 = arith.addf %245, %246 : vector<16x1xf32>
    %248 = math.rsqrt %247 : vector<16x1xf32>
    %249 = vector.broadcast %248 : vector<16x1xf32> to vector<16x128xf32>
    %250 = arith.mulf %240, %249 : vector<16x128xf32>
    %251 = vector.broadcast %232 : vector<1x128xf32> to vector<16x128xf32>
    %252 = arith.mulf %250, %251 : vector<16x128xf32>
    %253 = vector.broadcast %234 : vector<1x128xf32> to vector<16x128xf32>
    %254 = arith.addf %252, %253 : vector<16x128xf32>
    %c1_119 = arith.constant 1 : index
    %c0_120 = arith.constant 0 : index
    %c0_121 = arith.constant 0 : index
    %255 = vector.load %arg9[%c1_119, %c0_120, %c0_121] : memref<2x128x256xf32, #tpu.memory_space<vmem>>, vector<1x128x256xf32>
    %256 = vector.shape_cast %255 : vector<1x128x256xf32> to vector<128x256xf32>
    %cst_122 = arith.constant dense<0.000000e+00> : vector<16x256xf32>
    %257 = tpu.matmul %254, %256, %cst_122 {dimension_numbers = #tpu.dot_dimension_numbers<[1], [0], [0], [1], [0, 0, 1, 1], [], []>} : vector<16x128xf32>, vector<128x256xf32>, vector<16x256xf32> -> vector<16x256xf32>
    %c1_123 = arith.constant 1 : index
    %c0_124 = arith.constant 0 : index
    %c0_125 = arith.constant 0 : index
    %258 = vector.load %arg10[%c1_123, %c0_124, %c0_125] : memref<2x1x256xf32, #tpu.memory_space<vmem>>, vector<1x1x256xf32>
    %259 = vector.shape_cast %258 : vector<1x1x256xf32> to vector<1x256xf32>
    %260 = vector.broadcast %259 : vector<1x256xf32> to vector<16x256xf32>
    %261 = arith.addf %257, %260 : vector<16x256xf32>
    %cst_126 = arith.constant 0.000000e+00 : f32
    %262 = vector.broadcast %cst_126 : f32 to vector<16x256xf32>
    %263 = arith.maximumf %261, %262 : vector<16x256xf32>
    %c1_127 = arith.constant 1 : index
    %c0_128 = arith.constant 0 : index
    %c0_129 = arith.constant 0 : index
    %264 = vector.load %arg11[%c1_127, %c0_128, %c0_129] : memref<2x256x128xf32, #tpu.memory_space<vmem>>, vector<1x256x128xf32>
    %265 = vector.shape_cast %264 : vector<1x256x128xf32> to vector<256x128xf32>
    %cst_130 = arith.constant dense<0.000000e+00> : vector<16x128xf32>
    %266 = tpu.matmul %263, %265, %cst_130 {dimension_numbers = #tpu.dot_dimension_numbers<[1], [0], [0], [1], [0, 0, 1, 1], [], []>} : vector<16x256xf32>, vector<256x128xf32>, vector<16x128xf32> -> vector<16x128xf32>
    %c1_131 = arith.constant 1 : index
    %c0_132 = arith.constant 0 : index
    %c0_133 = arith.constant 0 : index
    %267 = vector.load %arg12[%c1_131, %c0_132, %c0_133] : memref<2x1x128xf32, #tpu.memory_space<vmem>>, vector<1x1x128xf32>
    %268 = vector.shape_cast %267 : vector<1x1x128xf32> to vector<1x128xf32>
    %269 = vector.broadcast %268 : vector<1x128xf32> to vector<16x128xf32>
    %270 = arith.addf %266, %269 : vector<16x128xf32>
    %271 = arith.addf %254, %270 : vector<16x128xf32>
    %c1_134 = arith.constant 1 : index
    %c0_135 = arith.constant 0 : index
    %c0_136 = arith.constant 0 : index
    %272 = vector.load %arg13[%c1_134, %c0_135, %c0_136] : memref<2x1x128xf32, #tpu.memory_space<vmem>>, vector<1x1x128xf32>
    %273 = vector.shape_cast %272 : vector<1x1x128xf32> to vector<1x128xf32>
    %c1_137 = arith.constant 1 : index
    %c0_138 = arith.constant 0 : index
    %c0_139 = arith.constant 0 : index
    %274 = vector.load %arg14[%c1_137, %c0_138, %c0_139] : memref<2x1x128xf32, #tpu.memory_space<vmem>>, vector<1x1x128xf32>
    %275 = vector.shape_cast %274 : vector<1x1x128xf32> to vector<1x128xf32>
    %cst_140 = arith.constant dense<0.000000e+00> : vector<16xf32>
    %276 = vector.multi_reduction <add>, %271, %cst_140 [1] : vector<16x128xf32> to vector<16xf32>
    %277 = vector.shape_cast %276 : vector<16xf32> to vector<16x1xf32>
    %cst_141 = arith.constant 1.280000e+02 : f32
    %278 = vector.broadcast %cst_141 : f32 to vector<16x1xf32>
    %279 = arith.divf %277, %278 : vector<16x1xf32>
    %280 = vector.broadcast %279 : vector<16x1xf32> to vector<16x128xf32>
    %281 = arith.subf %271, %280 : vector<16x128xf32>
    %282 = arith.mulf %281, %281 : vector<16x128xf32>
    %cst_142 = arith.constant dense<0.000000e+00> : vector<16xf32>
    %283 = vector.multi_reduction <add>, %282, %cst_142 [1] : vector<16x128xf32> to vector<16xf32>
    %284 = vector.shape_cast %283 : vector<16xf32> to vector<16x1xf32>
    %cst_143 = arith.constant 1.280000e+02 : f32
    %285 = vector.broadcast %cst_143 : f32 to vector<16x1xf32>
    %286 = arith.divf %284, %285 : vector<16x1xf32>
    %cst_144 = arith.constant 9.99999974E-6 : f32
    %287 = vector.broadcast %cst_144 : f32 to vector<16x1xf32>
    %288 = arith.addf %286, %287 : vector<16x1xf32>
    %289 = math.rsqrt %288 : vector<16x1xf32>
    %290 = vector.broadcast %289 : vector<16x1xf32> to vector<16x128xf32>
    %291 = arith.mulf %281, %290 : vector<16x128xf32>
    %292 = vector.broadcast %273 : vector<1x128xf32> to vector<16x128xf32>
    %293 = arith.mulf %291, %292 : vector<16x128xf32>
    %294 = vector.broadcast %275 : vector<1x128xf32> to vector<16x128xf32>
    %295 = arith.addf %293, %294 : vector<16x128xf32>
    %cst_145 = arith.constant dense<0.000000e+00> : vector<128xf32>
    %296 = vector.multi_reduction <add>, %295, %cst_145 [0] : vector<16x128xf32> to vector<128xf32>
    %297 = vector.shape_cast %296 : vector<128xf32> to vector<1x128xf32>
    %cst_146 = arith.constant 1.600000e+01 : f32
    %298 = vector.broadcast %cst_146 : f32 to vector<1x128xf32>
    %299 = arith.divf %297, %298 : vector<1x128xf32>
    %c0_147 = arith.constant 0 : index
    %c0_148 = arith.constant 0 : index
    %300 = vector.load %arg15[%c0_147, %c0_148] : memref<128x128xf32, #tpu.memory_space<vmem>>, vector<128x128xf32>
    %cst_149 = arith.constant dense<0.000000e+00> : vector<1x128xf32>
    %301 = tpu.matmul %299, %300, %cst_149 {dimension_numbers = #tpu.dot_dimension_numbers<[1], [0], [0], [1], [0, 0, 1, 1], [], []>} : vector<1x128xf32>, vector<128x128xf32>, vector<1x128xf32> -> vector<1x128xf32>
    %c0_150 = arith.constant 0 : index
    %c0_151 = arith.constant 0 : index
    %302 = vector.load %arg16[%c0_150, %c0_151] : memref<1x128xf32, #tpu.memory_space<vmem>>, vector<1x128xf32>
    %303 = arith.addf %301, %302 : vector<1x128xf32>
    %c0_152 = arith.constant 0 : index
    %c0_153 = arith.constant 0 : index
    %304 = vector.load %arg17[%c0_152, %c0_153] : memref<128x1xf32, #tpu.memory_space<vmem>>, vector<128x1xf32>
    %cst_154 = arith.constant dense<0.000000e+00> : vector<1x1xf32>
    %305 = tpu.matmul %303, %304, %cst_154 {dimension_numbers = #tpu.dot_dimension_numbers<[1], [0], [0], [1], [0, 0, 1, 1], [], []>} : vector<1x128xf32>, vector<128x1xf32>, vector<1x1xf32> -> vector<1x1xf32>
    %c0_155 = arith.constant 0 : index
    %c0_156 = arith.constant 0 : index
    %306 = vector.load %arg18[%c0_155, %c0_156] : memref<1x1xf32, #tpu.memory_space<vmem>>, vector<1x1xf32>
    %307 = arith.addf %305, %306 : vector<1x1xf32>
    %308 = arith.negf %307 : vector<1x1xf32>
    %309 = math.exp %308 : vector<1x1xf32>
    %cst_157 = arith.constant 1.000000e+00 : f32
    %310 = vector.broadcast %cst_157 : f32 to vector<1x1xf32>
    %311 = arith.addf %310, %309 : vector<1x1xf32>
    %312 = arith.divf %310, %311 : vector<1x1xf32>
    %c0_158 = arith.constant 0 : index
    %c0_159 = arith.constant 0 : index
    %c0_160 = arith.constant 0 : index
    %313 = vector.load %arg19[%c0_158, %c0_159, %c0_160] : memref<1x1x1xf32, #tpu.memory_space<vmem>>, vector<1x1x1xf32>
    %314 = vector.shape_cast %313 : vector<1x1x1xf32> to vector<1x1xf32>
    %315 = vector.shape_cast %312 : vector<1x1xf32> to vector<1x1x1xf32>
    tpu.vector_store %arg19[%c0_158, %c0_159, %c0_160], %315 {strides = array<i32>} : memref<1x1x1xf32, #tpu.memory_space<vmem>>, vector<1x1x1xf32>,
    return
  }
  func.func @transform_0(%arg0: i32) -> (i32, i32, i32) {
    %c0_i32 = arith.constant 0 : i32
    %c0_i32_0 = arith.constant 0 : i32
    %c0_i32_1 = arith.constant 0 : i32
    return %arg0, %c0_i32, %c0_i32_0 : i32, i32, i32
  }
  func.func @transform_1(%arg0: i32) -> (i32, i32) {
    %c0_i32 = arith.constant 0 : i32
    %c0_i32_0 = arith.constant 0 : i32
    %c0_i32_1 = arith.constant 0 : i32
    return %c0_i32, %c0_i32_0 : i32, i32
  }
  func.func @transform_2(%arg0: i32) -> (i32, i32, i32) {
    %c0_i32 = arith.constant 0 : i32
    %c0_i32_0 = arith.constant 0 : i32
    %c0_i32_1 = arith.constant 0 : i32
    %c0_i32_2 = arith.constant 0 : i32
    return %c0_i32, %c0_i32_0, %c0_i32_1 : i32, i32, i32
  }
  func.func @transform_3(%arg0: i32) -> (i32, i32, i32) {
    %c0_i32 = arith.constant 0 : i32
    %c0_i32_0 = arith.constant 0 : i32
    %c0_i32_1 = arith.constant 0 : i32
    %c0_i32_2 = arith.constant 0 : i32
    return %c0_i32, %c0_i32_0, %c0_i32_1 : i32, i32, i32
  }
  func.func @transform_4(%arg0: i32) -> (i32, i32, i32) {
    %c0_i32 = arith.constant 0 : i32
    %c0_i32_0 = arith.constant 0 : i32
    %c0_i32_1 = arith.constant 0 : i32
    %c0_i32_2 = arith.constant 0 : i32
    return %c0_i32, %c0_i32_0, %c0_i32_1 : i32, i32, i32
  }
  func.func @transform_5(%arg0: i32) -> (i32, i32, i32) {
    %c0_i32 = arith.constant 0 : i32
    %c0_i32_0 = arith.constant 0 : i32
    %c0_i32_1 = arith.constant 0 : i32
    %c0_i32_2 = arith.constant 0 : i32
    return %c0_i32, %c0_i32_0, %c0_i32_1 : i32, i32, i32
  }
  func.func @transform_6(%arg0: i32) -> (i32, i32, i32) {
    %c0_i32 = arith.constant 0 : i32
    %c0_i32_0 = arith.constant 0 : i32
    %c0_i32_1 = arith.constant 0 : i32
    %c0_i32_2 = arith.constant 0 : i32
    return %c0_i32, %c0_i32_0, %c0_i32_1 : i32, i32, i32
  }
  func.func @transform_7(%arg0: i32) -> (i32, i32, i32) {
    %c0_i32 = arith.constant 0 : i32
    %c0_i32_0 = arith.constant 0 : i32
    %c0_i32_1 = arith.constant 0 : i32
    %c0_i32_2 = arith.constant 0 : i32
    return %c0_i32, %c0_i32_0, %c0_i32_1 : i32, i32, i32
  }
  func.func @transform_8(%arg0: i32) -> (i32, i32, i32) {
    %c0_i32 = arith.constant 0 : i32
    %c0_i32_0 = arith.constant 0 : i32
    %c0_i32_1 = arith.constant 0 : i32
    %c0_i32_2 = arith.constant 0 : i32
    return %c0_i32, %c0_i32_0, %c0_i32_1 : i32, i32, i32
  }
  func.func @transform_9(%arg0: i32) -> (i32, i32, i32) {
    %c0_i32 = arith.constant 0 : i32
    %c0_i32_0 = arith.constant 0 : i32
    %c0_i32_1 = arith.constant 0 : i32
    %c0_i32_2 = arith.constant 0 : i32
    return %c0_i32, %c0_i32_0, %c0_i32_1 : i32, i32, i32
  }
  func.func @transform_10(%arg0: i32) -> (i32, i32, i32) {
    %c0_i32 = arith.constant 0 : i32
    %c0_i32_0 = arith.constant 0 : i32
    %c0_i32_1 = arith.constant 0 : i32
    %c0_i32_2 = arith.constant 0 : i32
    return %c0_i32, %c0_i32_0, %c0_i32_1 : i32, i32, i32
  }
  func.func @transform_11(%arg0: i32) -> (i32, i32, i32) {
    %c0_i32 = arith.constant 0 : i32
    %c0_i32_0 = arith.constant 0 : i32
    %c0_i32_1 = arith.constant 0 : i32
    %c0_i32_2 = arith.constant 0 : i32
    return %c0_i32, %c0_i32_0, %c0_i32_1 : i32, i32, i32
  }
  func.func @transform_12(%arg0: i32) -> (i32, i32, i32) {
    %c0_i32 = arith.constant 0 : i32
    %c0_i32_0 = arith.constant 0 : i32
    %c0_i32_1 = arith.constant 0 : i32
    %c0_i32_2 = arith.constant 0 : i32
    return %c0_i32, %c0_i32_0, %c0_i32_1 : i32, i32, i32
  }
  func.func @transform_13(%arg0: i32) -> (i32, i32, i32) {
    %c0_i32 = arith.constant 0 : i32
    %c0_i32_0 = arith.constant 0 : i32
    %c0_i32_1 = arith.constant 0 : i32
    %c0_i32_2 = arith.constant 0 : i32
    return %c0_i32, %c0_i32_0, %c0_i32_1 : i32, i32, i32
  }
  func.func @transform_14(%arg0: i32) -> (i32, i32) {
    %c0_i32 = arith.constant 0 : i32
    %c0_i32_0 = arith.constant 0 : i32
    %c0_i32_1 = arith.constant 0 : i32
    return %c0_i32, %c0_i32_0 : i32, i32
  }
  func.func @transform_15(%arg0: i32) -> (i32, i32) {
    %c0_i32 = arith.constant 0 : i32
    %c0_i32_0 = arith.constant 0 : i32
    %c0_i32_1 = arith.constant 0 : i32
    return %c0_i32, %c0_i32_0 : i32, i32
  }
  func.func @transform_16(%arg0: i32) -> (i32, i32) {
    %c0_i32 = arith.constant 0 : i32
    %c0_i32_0 = arith.constant 0 : i32
    %c0_i32_1 = arith.constant 0 : i32
    return %c0_i32, %c0_i32_0 : i32, i32
  }
  func.func @transform_17(%arg0: i32) -> (i32, i32) {
    %c0_i32 = arith.constant 0 : i32
    %c0_i32_0 = arith.constant 0 : i32
    %c0_i32_1 = arith.constant 0 : i32
    return %c0_i32, %c0_i32_0 : i32, i32
  }
  func.func @transform_18(%arg0: i32) -> (i32, i32, i32) {
    %c0_i32 = arith.constant 0 : i32
    %c0_i32_0 = arith.constant 0 : i32
    %c0_i32_1 = arith.constant 0 : i32
    return %arg0, %c0_i32, %c0_i32_0 : i32, i32, i32
  }
}

</mosaic_0001>

<llo_original>
// kernel: discriminator_forward.1
$region0: #{discriminator_forward.1}
  #allocation0 [shape = 'u32[]', space=smem, size = 0x4, offset = 0x4, fixed_abs, tag = 'smem constant byte address 0x4 - core index']
  #allocation1 [shape = 'u32[144,128]{1,0:T(1,128)}', space=vmem, size = 0x12000, scoped, tag = 'internal scratch']
  #allocation2 [shape = 'f32[1,1]{1,0:T(1,128)S(1)}', space=vmem, size = 0x200, scoped, tag = 'scoped memory for discriminator_forward.1']
  %s0 = inlined_call_operand.vmem [shape: f32[2,16,128], index: 0, kind: input, shape index: {}]
  %s1 = inlined_call_operand.vmem [shape: f32[16,128], index: 1, kind: input, shape index: {}]
  %s2 = inlined_call_operand.hbm [shape: f32[2,128,384], index: 2, kind: input, shape index: {}]
  %s3 = inlined_call_operand.vmem [shape: f32[2,1,384], index: 3, kind: input, shape index: {}]
  %s4 = inlined_call_operand.hbm [shape: f32[2,128,128], index: 4, kind: input, shape index: {}]
  %s5 = inlined_call_operand.vmem [shape: f32[2,1,128], index: 5, kind: input, shape index: {}]
  %s6 = inlined_call_operand.vmem [shape: f32[2,1,128], index: 6, kind: input, shape index: {}]
  %s7 = inlined_call_operand.vmem [shape: f32[2,1,128], index: 7, kind: input, shape index: {}]
  %s8 = inlined_call_operand.vmem [shape: f32[2,128,256], index: 8, kind: input, shape index: {}]
  %s9 = inlined_call_operand.vmem [shape: f32[2,1,256], index: 9, kind: input, shape index: {}]
  %s10 = inlined_call_operand.hbm [shape: f32[2,256,128], index: 10, kind: input, shape index: {}]
  %s11 = inlined_call_operand.vmem [shape: f32[2,1,128], index: 11, kind: input, shape index: {}]
  %s12 = inlined_call_operand.vmem [shape: f32[2,1,128], index: 12, kind: input, shape index: {}]
  %s13 = inlined_call_operand.vmem [shape: f32[2,1,128], index: 13, kind: input, shape index: {}]
  %s14 = inlined_call_operand.hbm [shape: f32[128,128], index: 14, kind: input, shape index: {}]
  %s15 = inlined_call_operand.vmem [shape: f32[1,128], index: 15, kind: input, shape index: {}]
  %s16 = inlined_call_operand.vmem [shape: f32[128,1], index: 16, kind: input, shape index: {}]
  %s17 = inlined_call_operand.<no memory space> [shape: f32[1,1], index: 17, kind: input, shape index: {}]
  %s18 = inlined_call_operand.vmem [shape: f32[2,1,1], index: 18, kind: output, shape index: {}]
  %s19 = sld [smem:[#allocation0]]
  $region121: #{discriminator_forward.1} parent=0
    _
  %s21 = ssub.s32 1, %s19
  %s22 = scalar_select 0, %s21, %s19
  %v23 = vstv %s17
  %24 = vst [vmem:[#allocation2] sm:$0x1] %v23
  $region1: #{discriminator_forward.1} parent=0
    #allocation3 [shape = 'u8[393216]{0}', space=vmem, size = 0x60000, scoped, tag = 'input window, operand 2, single buffered']
    #allocation4 [shape = 's32[2]{0}', space=sflag, size = 0x8, scoped, tag = 'scoped memory for discriminator_forward.1']
    #allocation5 [shape = 'u8[131072]{0}', space=vmem, size = 0x20000, scoped, tag = 'input window, operand 4, single buffered']
    #allocation6 [shape = 's32[1]{0}', space=sflag, size = 0x4, scoped, tag = 'scoped memory for discriminator_forward.1']
    #allocation7 [shape = 'u8[262144]{0}', space=vmem, size = 0x40000, scoped, tag = 'input window, operand 10, single buffered']
    #allocation8 [shape = 'u8[65536]{0}', space=vmem, size = 0x10000, scoped, tag = 'input window, operand 14, single buffered']
    #allocation9 [shape = 's32[1]{0}', space=sflag, size = 0x4, scoped, tag = 'scoped memory for discriminator_forward.1']
    %25 = vsyncpa [#allocation4], 0
    %26 = vsyncpa [#allocation6], 0
    %27 = vsyncpa [#allocation9], 0
    loop: start=0, step=1, limit=4
    $region2: #{discriminator_forward.1} parent=1 // loop_pre_header
      _
    $region3: #{discriminator_forward.1} parent=1 // loop_header
      %s29 = sphi 0, %s33
      %p30 = scmp.ge.s32.totalorder %s29, 4
      %s39 = sphi 0, %s41
      %s42 = sphi 0, %s39
      %s43 = sphi 0, %s42
      %s59 = sphi 0, %s43
      %s63 = sphi 0, %s63
      %s65 = sphi 0, %s63
      %s66 = sphi 0, %s65
      %s80 = sphi 0, %s66
      %s84 = sphi 0, %s84
      %s86 = sphi 0, %s84
      %s87 = sphi 0, %s86
      %s101 = sphi 0, %s87
      %s105 = sphi 0, %s105
      %s107 = sphi 0, %s105
      %s108 = sphi 0, %s107
      %s122 = sphi 0, %s108
      %s126 = sphi 0, %s126
      %s128 = sphi 0, %s126
      %s129 = sphi 0, %s128
      %s143 = sphi 0, %s129
      %s147 = sphi 0, %s147
      %s149 = sphi 0, %s147
      %s150 = sphi 0, %s149
      %s164 = sphi 0, %s150
      %s168 = sphi 0, %s168
      %s170 = sphi 0, %s168
      %s171 = sphi 0, %s170
      %s185 = sphi 0, %s171
      %s189 = sphi 0, %s189
      %s191 = sphi 0, %s189
      %s192 = sphi 0, %s191
      %s206 = sphi 0, %s192
      %s210 = sphi 0, %s210
      %s212 = sphi 0, %s210
      %s213 = sphi 0, %s212
      %s227 = sphi 0, %s213
      %s231 = sphi 0, %s231
      %s233 = sphi 0, %s231
      %s234 = sphi 0, %s233
      %s248 = sphi 0, %s234
      %s252 = sphi 0, %s252
      %s254 = sphi 0, %s252
      %s255 = sphi 0, %s254
      %s269 = sphi 0, %s255
      %s273 = sphi 0, %s273
      %s275 = sphi 0, %s273
      %s276 = sphi 0, %s275
      %s290 = sphi 0, %s276
      %s294 = sphi 0, %s294
      %s296 = sphi 0, %s294
      %s297 = sphi 0, %s296
      %s311 = sphi 0, %s297
      %s315 = sphi 0, %s315
      %s317 = sphi 0, %s315
      %s318 = sphi 0, %s317
      %s332 = sphi 0, %s318
      %s336 = sphi 0, %s336
      %s338 = sphi 0, %s336
      %s339 = sphi 0, %s338
      %s353 = sphi 0, %s339
      %s357 = sphi 0, %s357
      %s359 = sphi 0, %s357
      %s360 = sphi 0, %s359
      %s374 = sphi 0, %s360
      %s378 = sphi 0, %s378
      %s380 = sphi 0, %s378
      %s381 = sphi 0, %s380
      %s395 = sphi 0, %s381
      %s399 = sphi 0, %s399
      %s401 = sphi 0, %s399
      %s402 = sphi 0, %s401
      %s416 = sphi 0, %s402
      %s422 = sphi 0, %s424
      %s425 = sphi 0, %s422
      %s426 = sphi 0, %s425
      %s442 = sphi 0, %s426
    $region4: #{discriminator_forward.1} parent=1 // loop_header_branch
      %32 = sbr.rel (%p30) target = $region8
    $region5: #{discriminator_forward.1} parent=1 // loop_body
      %s34 = ssub.s32 %s29, 1
      %s35 = ssub.s32 %s29, 2
      %s36 = sadd.s32 %s29, 1
      %s37 = ssub.s32 %s29, %s36
      %p38 = scmp.eq.s32.totalorder %s37, 0
      %s40 = sadd.s32 %s39, 1
      %s41 = scalar_select %p38, %s39, %s40
      %p44 = pneg %p38
      %p45 = scmp.eq.s32.totalorder %s29, 1
      %p46 = por %p44, %p45
      %p47 = scmp.ne.s32.totalorder %s39, %s42
      %p48 = scmp.eq.s32.totalorder %s29, 0
      %p49 = por %p47, %p48
      %p50 = scmp.ne.s32.totalorder %s39, %s42
      %p51 = scmp.eq.s32.totalorder %s34, 1
      %p52 = por %p50, %p51
      %p53 = scmp.ne.s32.totalorder %s42, %s43
      %p54 = scmp.eq.s32.totalorder %s34, 0
      %p55 = por %p53, %p54
      %p56 = scmp.ne.s32.totalorder %s42, %s43
      %p57 = scmp.eq.s32.totalorder %s35, 1
      %p58 = por %p56, %p57
      %p60 = scmp.ne.s32.totalorder %s43, %s59
      %p61 = scmp.eq.s32.totalorder %s35, 0
      %p62 = por %p60, %p61
      %s64 = sadd.s32 %s63, 1
      %p67 = scmp.eq.s32.totalorder %s29, 1
      %p68 = scmp.ne.s32.totalorder %s63, %s65
      %p69 = scmp.eq.s32.totalorder %s29, 0
      %p70 = por %p68, %p69
      %p71 = scmp.ne.s32.totalorder %s63, %s65
      %p72 = scmp.eq.s32.totalorder %s34, 1
      %p73 = por %p71, %p72
      %p74 = scmp.ne.s32.totalorder %s65, %s66
      %p75 = scmp.eq.s32.totalorder %s34, 0
      %p76 = por %p74, %p75
      %p77 = scmp.ne.s32.totalorder %s65, %s66
      %p78 = scmp.eq.s32.totalorder %s35, 1
      %p79 = por %p77, %p78
      %p81 = scmp.ne.s32.totalorder %s66, %s80
      %p82 = scmp.eq.s32.totalorder %s35, 0
      %p83 = por %p81, %p82
      %s85 = sadd.s32 %s84, 1
      %p88 = scmp.eq.s32.totalorder %s29, 1
      %p89 = scmp.ne.s32.totalorder %s84, %s86
      %p90 = scmp.eq.s32.totalorder %s29, 0
      %p91 = por %p89, %p90
      %p92 = scmp.ne.s32.totalorder %s84, %s86
      %p93 = scmp.eq.s32.totalorder %s34, 1
      %p94 = por %p92, %p93
      %p95 = scmp.ne.s32.totalorder %s86, %s87
      %p96 = scmp.eq.s32.totalorder %s34, 0
      %p97 = por %p95, %p96
      %p98 = scmp.ne.s32.totalorder %s86, %s87
      %p99 = scmp.eq.s32.totalorder %s35, 1
      %p100 = por %p98, %p99
      %p102 = scmp.ne.s32.totalorder %s87, %s101
      %p103 = scmp.eq.s32.totalorder %s35, 0
      %p104 = por %p102, %p103
      %s106 = sadd.s32 %s105, 1
      %p109 = scmp.eq.s32.totalorder %s29, 1
      %p110 = scmp.ne.s32.totalorder %s105, %s107
      %p111 = scmp.eq.s32.totalorder %s29, 0
      %p112 = por %p110, %p111
      %p113 = scmp.ne.s32.totalorder %s105, %s107
      %p114 = scmp.eq.s32.totalorder %s34, 1
      %p115 = por %p113, %p114
      %p116 = scmp.ne.s32.totalorder %s107, %s108
      %p117 = scmp.eq.s32.totalorder %s34, 0
      %p118 = por %p116, %p117
      %p119 = scmp.ne.s32.totalorder %s107, %s108
      %p120 = scmp.eq.s32.totalorder %s35, 1
      %p121 = por %p119, %p120
      %p123 = scmp.ne.s32.totalorder %s108, %s122
      %p124 = scmp.eq.s32.totalorder %s35, 0
      %p125 = por %p123, %p124
      %s127 = sadd.s32 %s126, 1
      %p130 = scmp.eq.s32.totalorder %s29, 1
      %p131 = scmp.ne.s32.totalorder %s126, %s128
      %p132 = scmp.eq.s32.totalorder %s29, 0
      %p133 = por %p131, %p132
      %p134 = scmp.ne.s32.totalorder %s126, %s128
      %p135 = scmp.eq.s32.totalorder %s34, 1
      %p136 = por %p134, %p135
      %p137 = scmp.ne.s32.totalorder %s128, %s129
      %p138 = scmp.eq.s32.totalorder %s34, 0
      %p139 = por %p137, %p138
      %p140 = scmp.ne.s32.totalorder %s128, %s129
      %p141 = scmp.eq.s32.totalorder %s35, 1
      %p142 = por %p140, %p141
      %p144 = scmp.ne.s32.totalorder %s129, %s143
      %p145 = scmp.eq.s32.totalorder %s35, 0
      %p146 = por %p144, %p145
      %s148 = sadd.s32 %s147, 1
      %p151 = scmp.eq.s32.totalorder %s29, 1
      %p152 = scmp.ne.s32.totalorder %s147, %s149
      %p153 = scmp.eq.s32.totalorder %s29, 0
      %p154 = por %p152, %p153
      %p155 = scmp.ne.s32.totalorder %s147, %s149
      %p156 = scmp.eq.s32.totalorder %s34, 1
      %p157 = por %p155, %p156
      %p158 = scmp.ne.s32.totalorder %s149, %s150
      %p159 = scmp.eq.s32.totalorder %s34, 0
      %p160 = por %p158, %p159
      %p161 = scmp.ne.s32.totalorder %s149, %s150
      %p162 = scmp.eq.s32.totalorder %s35, 1
      %p163 = por %p161, %p162
      %p165 = scmp.ne.s32.totalorder %s150, %s164
      %p166 = scmp.eq.s32.totalorder %s35, 0
      %p167 = por %p165, %p166
      %s169 = sadd.s32 %s168, 1
      %p172 = scmp.eq.s32.totalorder %s29, 1
      %p173 = scmp.ne.s32.totalorder %s168, %s170
      %p174 = scmp.eq.s32.totalorder %s29, 0
      %p175 = por %p173, %p174
      %p176 = scmp.ne.s32.totalorder %s168, %s170
      %p177 = scmp.eq.s32.totalorder %s34, 1
      %p178 = por %p176, %p177
      %p179 = scmp.ne.s32.totalorder %s170, %s171
      %p180 = scmp.eq.s32.totalorder %s34, 0
      %p181 = por %p179, %p180
      %p182 = scmp.ne.s32.totalorder %s170, %s171
      %p183 = scmp.eq.s32.totalorder %s35, 1
      %p184 = por %p182, %p183
      %p186 = scmp.ne.s32.totalorder %s171, %s185
      %p187 = scmp.eq.s32.totalorder %s35, 0
      %p188 = por %p186, %p187
      %s190 = sadd.s32 %s189, 1
      %p193 = scmp.eq.s32.totalorder %s29, 1
      %p194 = scmp.ne.s32.totalorder %s189, %s191
      %p195 = scmp.eq.s32.totalorder %s29, 0
      %p196 = por %p194, %p195
      %p197 = scmp.ne.s32.totalorder %s189, %s191
      %p198 = scmp.eq.s32.totalorder %s34, 1
      %p199 = por %p197, %p198
      %p200 = scmp.ne.s32.totalorder %s191, %s192
      %p201 = scmp.eq.s32.totalorder %s34, 0
      %p202 = por %p200, %p201
      %p203 = scmp.ne.s32.totalorder %s191, %s192
      %p204 = scmp.eq.s32.totalorder %s35, 1
      %p205 = por %p203, %p204
      %p207 = scmp.ne.s32.totalorder %s192, %s206
      %p208 = scmp.eq.s32.totalorder %s35, 0
      %p209 = por %p207, %p208
      %s211 = sadd.s32 %s210, 1
      %p214 = scmp.eq.s32.totalorder %s29, 1
      %p215 = scmp.ne.s32.totalorder %s210, %s212
      %p216 = scmp.eq.s32.totalorder %s29, 0
      %p217 = por %p215, %p216
      %p218 = scmp.ne.s32.totalorder %s210, %s212
      %p219 = scmp.eq.s32.totalorder %s34, 1
      %p220 = por %p218, %p219
      %p221 = scmp.ne.s32.totalorder %s212, %s213
      %p222 = scmp.eq.s32.totalorder %s34, 0
      %p223 = por %p221, %p222
      %p224 = scmp.ne.s32.totalorder %s212, %s213
      %p225 = scmp.eq.s32.totalorder %s35, 1
      %p226 = por %p224, %p225
      %p228 = scmp.ne.s32.totalorder %s213, %s227
      %p229 = scmp.eq.s32.totalorder %s35, 0
      %p230 = por %p228, %p229
      %s232 = sadd.s32 %s231, 1
      %p235 = scmp.eq.s32.totalorder %s29, 1
      %p236 = scmp.ne.s32.totalorder %s231, %s233
      %p237 = scmp.eq.s32.totalorder %s29, 0
      %p238 = por %p236, %p237
      %p239 = scmp.ne.s32.totalorder %s231, %s233
      %p240 = scmp.eq.s32.totalorder %s34, 1
      %p241 = por %p239, %p240
      %p242 = scmp.ne.s32.totalorder %s233, %s234
      %p243 = scmp.eq.s32.totalorder %s34, 0
      %p244 = por %p242, %p243
      %p245 = scmp.ne.s32.totalorder %s233, %s234
      %p246 = scmp.eq.s32.totalorder %s35, 1
      %p247 = por %p245, %p246
      %p249 = scmp.ne.s32.totalorder %s234, %s248
      %p250 = scmp.eq.s32.totalorder %s35, 0
      %p251 = por %p249, %p250
      %s253 = sadd.s32 %s252, 1
      %p256 = scmp.eq.s32.totalorder %s29, 1
      %p257 = scmp.ne.s32.totalorder %s252, %s254
      %p258 = scmp.eq.s32.totalorder %s29, 0
      %p259 = por %p257, %p258
      %p260 = scmp.ne.s32.totalorder %s252, %s254
      %p261 = scmp.eq.s32.totalorder %s34, 1
      %p262 = por %p260, %p261
      %p263 = scmp.ne.s32.totalorder %s254, %s255
      %p264 = scmp.eq.s32.totalorder %s34, 0
      %p265 = por %p263, %p264
      %p266 = scmp.ne.s32.totalorder %s254, %s255
      %p267 = scmp.eq.s32.totalorder %s35, 1
      %p268 = por %p266, %p267
      %p270 = scmp.ne.s32.totalorder %s255, %s269
      %p271 = scmp.eq.s32.totalorder %s35, 0
      %p272 = por %p270, %p271
      %s274 = sadd.s32 %s273, 1
      %p277 = scmp.eq.s32.totalorder %s29, 1
      %p278 = scmp.ne.s32.totalorder %s273, %s275
      %p279 = scmp.eq.s32.totalorder %s29, 0
      %p280 = por %p278, %p279
      %p281 = scmp.ne.s32.totalorder %s273, %s275
      %p282 = scmp.eq.s32.totalorder %s34, 1
      %p283 = por %p281, %p282
      %p284 = scmp.ne.s32.totalorder %s275, %s276
      %p285 = scmp.eq.s32.totalorder %s34, 0
      %p286 = por %p284, %p285
      %p287 = scmp.ne.s32.totalorder %s275, %s276
      %p288 = scmp.eq.s32.totalorder %s35, 1
      %p289 = por %p287, %p288
      %p291 = scmp.ne.s32.totalorder %s276, %s290
      %p292 = scmp.eq.s32.totalorder %s35, 0
      %p293 = por %p291, %p292
      %s295 = sadd.s32 %s294, 1
      %p298 = scmp.eq.s32.totalorder %s29, 1
      %p299 = scmp.ne.s32.totalorder %s294, %s296
      %p300 = scmp.eq.s32.totalorder %s29, 0
      %p301 = por %p299, %p300
      %p302 = scmp.ne.s32.totalorder %s294, %s296
      %p303 = scmp.eq.s32.totalorder %s34, 1
      %p304 = por %p302, %p303
      %p305 = scmp.ne.s32.totalorder %s296, %s297
      %p306 = scmp.eq.s32.totalorder %s34, 0
      %p307 = por %p305, %p306
      %p308 = scmp.ne.s32.totalorder %s296, %s297
      %p309 = scmp.eq.s32.totalorder %s35, 1
      %p310 = por %p308, %p309
      %p312 = scmp.ne.s32.totalorder %s297, %s311
      %p313 = scmp.eq.s32.totalorder %s35, 0
      %p314 = por %p312, %p313
      %s316 = sadd.s32 %s315, 1
      %p319 = scmp.eq.s32.totalorder %s29, 1
      %p320 = scmp.ne.s32.totalorder %s315, %s317
      %p321 = scmp.eq.s32.totalorder %s29, 0
      %p322 = por %p320, %p321
      %p323 = scmp.ne.s32.totalorder %s315, %s317
      %p324 = scmp.eq.s32.totalorder %s34, 1
      %p325 = por %p323, %p324
      %p326 = scmp.ne.s32.totalorder %s317, %s318
      %p327 = scmp.eq.s32.totalorder %s34, 0
      %p328 = por %p326, %p327
      %p329 = scmp.ne.s32.totalorder %s317, %s318
      %p330 = scmp.eq.s32.totalorder %s35, 1
      %p331 = por %p329, %p330
      %p333 = scmp.ne.s32.totalorder %s318, %s332
      %p334 = scmp.eq.s32.totalorder %s35, 0
      %p335 = por %p333, %p334
      %s337 = sadd.s32 %s336, 1
      %p340 = scmp.eq.s32.totalorder %s29, 1
      %p341 = scmp.ne.s32.totalorder %s336, %s338
      %p342 = scmp.eq.s32.totalorder %s29, 0
      %p343 = por %p341, %p342
      %p344 = scmp.ne.s32.totalorder %s336, %s338
      %p345 = scmp.eq.s32.totalorder %s34, 1
      %p346 = por %p344, %p345
      %p347 = scmp.ne.s32.totalorder %s338, %s339
      %p348 = scmp.eq.s32.totalorder %s34, 0
      %p349 = por %p347, %p348
      %p350 = scmp.ne.s32.totalorder %s338, %s339
      %p351 = scmp.eq.s32.totalorder %s35, 1
      %p352 = por %p350, %p351
      %p354 = scmp.ne.s32.totalorder %s339, %s353
      %p355 = scmp.eq.s32.totalorder %s35, 0
      %p356 = por %p354, %p355
      %s358 = sadd.s32 %s357, 1
      %p361 = scmp.eq.s32.totalorder %s29, 1
      %p362 = scmp.ne.s32.totalorder %s357, %s359
      %p363 = scmp.eq.s32.totalorder %s29, 0
      %p364 = por %p362, %p363
      %p365 = scmp.ne.s32.totalorder %s357, %s359
      %p366 = scmp.eq.s32.totalorder %s34, 1
      %p367 = por %p365, %p366
      %p368 = scmp.ne.s32.totalorder %s359, %s360
      %p369 = scmp.eq.s32.totalorder %s34, 0
      %p370 = por %p368, %p369
      %p371 = scmp.ne.s32.totalorder %s359, %s360
      %p372 = scmp.eq.s32.totalorder %s35, 1
      %p373 = por %p371, %p372
      %p375 = scmp.ne.s32.totalorder %s360, %s374
      %p376 = scmp.eq.s32.totalorder %s35, 0
      %p377 = por %p375, %p376
      %s379 = sadd.s32 %s378, 1
      %p382 = scmp.eq.s32.totalorder %s29, 1
      %p383 = scmp.ne.s32.totalorder %s378, %s380
      %p384 = scmp.eq.s32.totalorder %s29, 0
      %p385 = por %p383, %p384
      %p386 = scmp.ne.s32.totalorder %s378, %s380
      %p387 = scmp.eq.s32.totalorder %s34, 1
      %p388 = por %p386, %p387
      %p389 = scmp.ne.s32.totalorder %s380, %s381
      %p390 = scmp.eq.s32.totalorder %s34, 0
      %p391 = por %p389, %p390
      %p392 = scmp.ne.s32.totalorder %s380, %s381
      %p393 = scmp.eq.s32.totalorder %s35, 1
      %p394 = por %p392, %p393
      %p396 = scmp.ne.s32.totalorder %s381, %s395
      %p397 = scmp.eq.s32.totalorder %s35, 0
      %p398 = por %p396, %p397
      %s400 = sadd.s32 %s399, 1
      %p403 = scmp.eq.s32.totalorder %s29, 1
      %p404 = scmp.ne.s32.totalorder %s399, %s401
      %p405 = scmp.eq.s32.totalorder %s29, 0
      %p406 = por %p404, %p405
      %p407 = scmp.ne.s32.totalorder %s399, %s401
      %p408 = scmp.eq.s32.totalorder %s34, 1
      %p409 = por %p407, %p408
      %p410 = scmp.ne.s32.totalorder %s401, %s402
      %p411 = scmp.eq.s32.totalorder %s34, 0
      %p412 = por %p410, %p411
      %p413 = scmp.ne.s32.totalorder %s401, %s402
      %p414 = scmp.eq.s32.totalorder %s35, 1
      %p415 = por %p413, %p414
      %p417 = scmp.ne.s32.totalorder %s402, %s416
      %p418 = scmp.eq.s32.totalorder %s35, 0
      %p419 = por %p417, %p418
      %s420 = ssub.s32 %s29, %s36
      %p421 = scmp.eq.s32.totalorder %s420, 0
      %s423 = sadd.s32 %s422, 1
      %s424 = scalar_select %p421, %s422, %s423
      %p427 = pneg %p421
      %p428 = scmp.eq.s32.totalorder %s29, 1
      %p429 = por %p427, %p428
      %p430 = scmp.ne.s32.totalorder %s422, %s425
      %p431 = scmp.eq.s32.totalorder %s29, 0
      %p432 = por %p430, %p431
      %p433 = scmp.ne.s32.totalorder %s422, %s425
      %p434 = scmp.eq.s32.totalorder %s34, 1
      %p435 = por %p433, %p434
      %p436 = scmp.ne.s32.totalorder %s425, %s426
      %p437 = scmp.eq.s32.totalorder %s34, 0
      %p438 = por %p436, %p437
      %p439 = scmp.ne.s32.totalorder %s425, %s426
      %p440 = scmp.eq.s32.totalorder %s35, 1
      %p441 = por %p439, %p440
      %p443 = scmp.ne.s32.totalorder %s426, %s442
      %p444 = scmp.eq.s32.totalorder %s35, 0
      %p445 = por %p443, %p444
      %p446 = scmp.le.s32.totalorder 1, %s29
      %p447 = scmp.lt.s32.totalorder %s29, 3
      %p448 = pnand %p446, %p447
      %p449 = pneg %p448
      // Predicated region
      $region9: #{discriminator_forward.1} parent=5 // pred_check
        _
      $region10: #{discriminator_forward.1} parent=5 // pred_check_branch
        %451 = sbr.rel (%p448) target = $region12
      $region11: #{discriminator_forward.1} parent=5 // pred_region
        %s452 = ssub.s32 %s29, 1
        // Predicated region
        $region13: #{discriminator_forward.1} parent=11 // pred_check
          %p453 = pneg %p76
        $region14: #{discriminator_forward.1} parent=11 // pred_check_branch
          %455 = sbr.rel (%p453) target = $region16
        $region15: #{discriminator_forward.1} parent=11 // pred_region
          _
        $region16: #{discriminator_forward.1} parent=11 // pred_fallthru
          _
        // Predicated region
        $region17: #{discriminator_forward.1} parent=11 // pred_check
          %p456 = pneg %p97
        $region18: #{discriminator_forward.1} parent=11 // pred_check_branch
          %458 = sbr.rel (%p456) target = $region20
        $region19: #{discriminator_forward.1} parent=11 // pred_region
          %s460 = ssub.s32 12288, 12288
          %461 = vsyncadd [#allocation4], %s460
          %s462 = sshll.u32 [#allocation3], 4
          %s463 = int_to_ptr.vmem [resolvable:$true] %s462
          %468 = dma.hbm_to_vmem [thread:$0]  %s2, 12288, %s463, [#allocation4], 384, 384, 24
        $region20: #{discriminator_forward.1} parent=11 // pred_fallthru
          _
        // Predicated region
        $region21: #{discriminator_forward.1} parent=11 // pred_check
          %p469 = pneg %p118
        $region22: #{discriminator_forward.1} parent=11 // pred_check_branch
          %471 = sbr.rel (%p469) target = $region24
        $region23: #{discriminator_forward.1} parent=11 // pred_region
          _
        $region24: #{discriminator_forward.1} parent=11 // pred_fallthru
          _
        // Predicated region
        $region25: #{discriminator_forward.1} parent=11 // pred_check
          %p472 = pneg %p139
        $region26: #{discriminator_forward.1} parent=11 // pred_check_branch
          %474 = sbr.rel (%p472) target = $region28
        $region27: #{discriminator_forward.1} parent=11 // pred_region
          %s476 = ssub.s32 4096, 4096
          %477 = vsyncadd [#allocation6], %s476
          %s478 = sshll.u32 [#allocation5], 4
          %s479 = int_to_ptr.vmem [resolvable:$true] %s478
          %484 = dma.hbm_to_vmem [thread:$0]  %s4, 4096, %s479, [#allocation6], 128, 128, 8
        $region28: #{discriminator_forward.1} parent=11 // pred_fallthru
          _
        // Predicated region
        $region29: #{discriminator_forward.1} parent=11 // pred_check
          %p485 = pneg %p160
        $region30: #{discriminator_forward.1} parent=11 // pred_check_branch
          %487 = sbr.rel (%p485) target = $region32
        $region31: #{discriminator_forward.1} parent=11 // pred_region
          _
        $region32: #{discriminator_forward.1} parent=11 // pred_fallthru
          _
        // Predicated region
        $region33: #{discriminator_forward.1} parent=11 // pred_check
          %p488 = pneg %p181
        $region34: #{discriminator_forward.1} parent=11 // pred_check_branch
          %490 = sbr.rel (%p488) target = $region36
        $region35: #{discriminator_forward.1} parent=11 // pred_region
          _
        $region36: #{discriminator_forward.1} parent=11 // pred_fallthru
          _
        // Predicated region
        $region37: #{discriminator_forward.1} parent=11 // pred_check
          %p491 = pneg %p202
        $region38: #{discriminator_forward.1} parent=11 // pred_check_branch
          %493 = sbr.rel (%p491) target = $region40
        $region39: #{discriminator_forward.1} parent=11 // pred_region
          _
        $region40: #{discriminator_forward.1} parent=11 // pred_fallthru
          _
        // Predicated region
        $region41: #{discriminator_forward.1} parent=11 // pred_check
          %p494 = pneg %p223
        $region42: #{discriminator_forward.1} parent=11 // pred_check_branch
          %496 = sbr.rel (%p494) target = $region44
        $region43: #{discriminator_forward.1} parent=11 // pred_region
          _
        $region44: #{discriminator_forward.1} parent=11 // pred_fallthru
          _
        // Predicated region
        $region45: #{discriminator_forward.1} parent=11 // pred_check
          %p497 = pneg %p244
        $region46: #{discriminator_forward.1} parent=11 // pred_check_branch
          %499 = sbr.rel (%p497) target = $region48
        $region47: #{discriminator_forward.1} parent=11 // pred_region
          _
        $region48: #{discriminator_forward.1} parent=11 // pred_fallthru
          _
        // Predicated region
        $region49: #{discriminator_forward.1} parent=11 // pred_check
          %p500 = pneg %p265
        $region50: #{discriminator_forward.1} parent=11 // pred_check_branch
          %502 = sbr.rel (%p500) target = $region52
        $region51: #{discriminator_forward.1} parent=11 // pred_region
          %s504 = ssub.s32 8192, 8192
          %505 = vsyncadd [#allocation6], %s504
          %s506 = sshll.u32 [#allocation7], 4
          %s507 = int_to_ptr.vmem [resolvable:$true] %s506
          %512 = dma.hbm_to_vmem [thread:$0]  %s10, 8192, %s507, [#allocation6], 128, 128, 8
        $region52: #{discriminator_forward.1} parent=11 // pred_fallthru
          _
        // Predicated region
        $region53: #{discriminator_forward.1} parent=11 // pred_check
          %p513 = pneg %p286
        $region54: #{discriminator_forward.1} parent=11 // pred_check_branch
          %515 = sbr.rel (%p513) target = $region56
        $region55: #{discriminator_forward.1} parent=11 // pred_region
          _
        $region56: #{discriminator_forward.1} parent=11 // pred_fallthru
          _
        // Predicated region
        $region57: #{discriminator_forward.1} parent=11 // pred_check
          %p516 = pneg %p307
        $region58: #{discriminator_forward.1} parent=11 // pred_check_branch
          %518 = sbr.rel (%p516) target = $region60
        $region59: #{discriminator_forward.1} parent=11 // pred_region
          _
        $region60: #{discriminator_forward.1} parent=11 // pred_fallthru
          _
        // Predicated region
        $region61: #{discriminator_forward.1} parent=11 // pred_check
          %p519 = pneg %p328
        $region62: #{discriminator_forward.1} parent=11 // pred_check_branch
          %521 = sbr.rel (%p519) target = $region64
        $region63: #{discriminator_forward.1} parent=11 // pred_region
          _
        $region64: #{discriminator_forward.1} parent=11 // pred_fallthru
          _
        // Predicated region
        $region65: #{discriminator_forward.1} parent=11 // pred_check
          %p522 = pneg %p349
        $region66: #{discriminator_forward.1} parent=11 // pred_check_branch
          %524 = sbr.rel (%p522) target = $region68
        $region67: #{discriminator_forward.1} parent=11 // pred_region
          %s526 = ssub.s32 2048, 2048
          %527 = vsyncadd [#allocation9], %s526
          %s528 = sshll.u32 [#allocation8], 4
          %s529 = int_to_ptr.vmem [resolvable:$true] %s528
          %534 = dma.hbm_to_vmem [thread:$0]  %s14, 2048, %s529, [#allocation9], 128, 128, 8
        $region68: #{discriminator_forward.1} parent=11 // pred_fallthru
          _
        // Predicated region
        $region69: #{discriminator_forward.1} parent=11 // pred_check
          %p535 = pneg %p370
        $region70: #{discriminator_forward.1} parent=11 // pred_check_branch
          %537 = sbr.rel (%p535) target = $region72
        $region71: #{discriminator_forward.1} parent=11 // pred_region
          _
        $region72: #{discriminator_forward.1} parent=11 // pred_fallthru
          _
        // Predicated region
        $region73: #{discriminator_forward.1} parent=11 // pred_check
          %p538 = pneg %p391
        $region74: #{discriminator_forward.1} parent=11 // pred_check_branch
          %540 = sbr.rel (%p538) target = $region76
        $region75: #{discriminator_forward.1} parent=11 // pred_region
          _
        $region76: #{discriminator_forward.1} parent=11 // pred_fallthru
          _
        // Predicated region
        $region77: #{discriminator_forward.1} parent=11 // pred_check
          %p541 = pneg %p412
        $region78: #{discriminator_forward.1} parent=11 // pred_check_branch
          %543 = sbr.rel (%p541) target = $region80
        $region79: #{discriminator_forward.1} parent=11 // pred_region
          _
        $region80: #{discriminator_forward.1} parent=11 // pred_fallthru
          _
      $region12: #{discriminator_forward.1} parent=5 // pred_fallthru
        _
      %p544 = scmp.lt.s32.totalorder %s29, 2
      // Predicated region
      $region81: #{discriminator_forward.1} parent=5 // pred_check
        %p545 = pneg %p544
      $region82: #{discriminator_forward.1} parent=5 // pred_check_branch
        %547 = sbr.rel (%p545) target = $region84
      $region83: #{discriminator_forward.1} parent=5 // pred_region
        // Predicated region
        $region85: #{discriminator_forward.1} parent=83 // pred_check
          %p548 = pneg %p49
        $region86: #{discriminator_forward.1} parent=83 // pred_check_branch
          %550 = sbr.rel (%p548) target = $region88
        $region87: #{discriminator_forward.1} parent=83 // pred_region
          %p551 = scmp.lt.s32.totalorder %s29, 1
          %s552 = scalar_select %p551, %s29, 1
          %s553 = smul.addr %s552, 2
          %s554 = smul.addr %s553, 8
          %s555 = scalar_lea.vmem %s0, %s554
        $region88: #{discriminator_forward.1} parent=83 // pred_fallthru
          _
      $region84: #{discriminator_forward.1} parent=5 // pred_fallthru
        _
      %p556 = scmp.le.s32.totalorder 1, %s29
      %p557 = scmp.lt.s32.totalorder %s29, 3
      %p558 = pnand %p556, %p557
      %p559 = pneg %p558
      // Predicated region
      $region89: #{discriminator_forward.1} parent=5 // pred_check
        _
      $region90: #{discriminator_forward.1} parent=5 // pred_check_branch
        %561 = sbr.rel (%p558) target = $region92
      $region91: #{discriminator_forward.1} parent=5 // pred_region
        %s562 = ssub.s32 %s29, 1
        // Predicated region
        $region93: #{discriminator_forward.1} parent=91 // pred_check
          %p563 = pneg %p97
        $region94: #{discriminator_forward.1} parent=91 // pred_check_branch
          %565 = sbr.rel (%p563) target = $region96
        $region95: #{discriminator_forward.1} parent=91 // pred_region
          %566 = dma.done [#allocation4], 12288
        $region96: #{discriminator_forward.1} parent=91 // pred_fallthru
          _
        // Predicated region
        $region97: #{discriminator_forward.1} parent=91 // pred_check
          %p567 = pneg %p139
        $region98: #{discriminator_forward.1} parent=91 // pred_check_branch
          %569 = sbr.rel (%p567) target = $region100
        $region99: #{discriminator_forward.1} parent=91 // pred_region
          %570 = dma.done [#allocation6], 4096
        $region100: #{discriminator_forward.1} parent=91 // pred_fallthru
          _
        // Predicated region
        $region101: #{discriminator_forward.1} parent=91 // pred_check
          %p571 = pneg %p265
        $region102: #{discriminator_forward.1} parent=91 // pred_check_branch
          %573 = sbr.rel (%p571) target = $region104
        $region103: #{discriminator_forward.1} parent=91 // pred_region
          %574 = dma.done [#allocation6], 8192
        $region104: #{discriminator_forward.1} parent=91 // pred_fallthru
          _
        // Predicated region
        $region105: #{discriminator_forward.1} parent=91 // pred_check
          %p575 = pneg %p349
        $region106: #{discriminator_forward.1} parent=91 // pred_check_branch
          %577 = sbr.rel (%p575) target = $region108
        $region107: #{discriminator_forward.1} parent=91 // pred_region
          %578 = dma.done [#allocation9], 2048
        $region108: #{discriminator_forward.1} parent=91 // pred_fallthru
          _
        %p579 = scmp.lt.s32.totalorder %s34, 1
        %s580 = scalar_select %p579, %s34, 1
        %s581 = smul.addr %s580, 2
        %s582 = smul.addr %s581, 8
        %s583 = scalar_lea.vmem %s0, %s582
        %p584 = pneg %p55
        %p585 = pneg %p52
        %p586 = pneg %p76
        %p587 = pneg %p73
        %p588 = pneg %p97
        %p589 = pneg %p94
        %p590 = pneg %p118
        %p591 = pneg %p115
        %p592 = pneg %p139
        %p593 = pneg %p136
        %p594 = pneg %p160
        %p595 = pneg %p157
        %p596 = pneg %p181
        %p597 = pneg %p178
        %p598 = pneg %p202
        %p599 = pneg %p199
        %p600 = pneg %p223
        %p601 = pneg %p220
        %p602 = pneg %p244
        %p603 = pneg %p241
        %p604 = pneg %p265
        %p605 = pneg %p262
        %p606 = pneg %p286
        %p607 = pneg %p283
        %p608 = pneg %p307
        %p609 = pneg %p304
        %p610 = pneg %p328
        %p611 = pneg %p325
        %p612 = pneg %p349
        %p613 = pneg %p346
        %p614 = pneg %p370
        %p615 = pneg %p367
        %p616 = pneg %p391
        %p617 = pneg %p388
        %p618 = pneg %p412
        %p619 = pneg %p409
        %p620 = pneg %p438
        %p621 = pneg %p435
        %p622 = scmp.lt.s32.totalorder %s34, 1
        %s623 = scalar_select %p622, %s34, 1
        %s624 = scalar_lea.vmem %s18, %s623
        %p625 = scmp.lt.s32.totalorder %s34, 1
        %s626 = scalar_select %p625, %s34, 1
        %s627 = smul.addr %s626, 2
        %s628 = smul.addr %s627, 8
        %s629 = scalar_lea.vmem %s0, %s628
        %p630 = scmp.lt.s32.totalorder %s34, 1
        %s631 = scalar_select %p630, %s34, 1
        %s632 = scalar_lea.vmem %s18, %s631
        %v633 = vld [vmem:[%s629] sm:$0xff]
        %v634 = vld [vmem:[%s629 + $0x8] sm:$0xff]
        %v635 = vmul.f32 %v633, 11.313708
        %v636 = vmul.f32 %v634, 11.313708
        %v637 = vld [vmem:[%s1] sm:$0xff]
        %v638 = vld [vmem:[%s1 + $0x8] sm:$0xff]
        %v639 = vadd.f32 %v635, %v637
        %v640 = vadd.f32 %v636, %v638
        %v641 = vld [vmem:[#allocation3] sm:$0xff]
        %v642 = vld [vmem:[#allocation3 + $0x8] sm:$0xff]
        %v643 = vld [vmem:[#allocation3 + $0x10] sm:$0xff]
        %v644 = vld [vmem:[#allocation3 + $0x18] sm:$0xff]
        %v645 = vld [vmem:[#allocation3 + $0x20] sm:$0xff]
        %v646 = vld [vmem:[#allocation3 + $0x28] sm:$0xff]
        %v647 = vld [vmem:[#allocation3 + $0x30] sm:$0xff]
        %v648 = vld [vmem:[#allocation3 + $0x38] sm:$0xff]
        %v649 = vld [vmem:[#allocation3 + $0x40] sm:$0xff]
        %v650 = vld [vmem:[#allocation3 + $0x48] sm:$0xff]
        %v651 = vld [vmem:[#allocation3 + $0x50] sm:$0xff]
        %v652 = vld [vmem:[#allocation3 + $0x58] sm:$0xff]
        %v653 = vld [vmem:[#allocation3 + $0x60] sm:$0xff]
        %v654 = vld [vmem:[#allocation3 + $0x68] sm:$0xff]
        %v655 = vld [vmem:[#allocation3 + $0x70] sm:$0xff]
        %v656 = vld [vmem:[#allocation3 + $0x78] sm:$0xff]
        %v657 = vld [vmem:[#allocation3 + $0x80] sm:$0xff]
        %v658 = vld [vmem:[#allocation3 + $0x88] sm:$0xff]
        %v659 = vld [vmem:[#allocation3 + $0x90] sm:$0xff]
        %v660 = vld [vmem:[#allocation3 + $0x98] sm:$0xff]
        %v661 = vld [vmem:[#allocation3 + $0xa0] sm:$0xff]
        %v662 = vld [vmem:[#allocation3 + $0xa8] sm:$0xff]
        %v663 = vld [vmem:[#allocation3 + $0xb0] sm:$0xff]
        %v664 = vld [vmem:[#allocation3 + $0xb8] sm:$0xff]
        %v665 = vld [vmem:[#allocation3 + $0xc0] sm:$0xff]
        %v666 = vld [vmem:[#allocation3 + $0xc8] sm:$0xff]
        %v667 = vld [vmem:[#allocation3 + $0xd0] sm:$0xff]
        %v668 = vld [vmem:[#allocation3 + $0xd8] sm:$0xff]
        %v669 = vld [vmem:[#allocation3 + $0xe0] sm:$0xff]
        %v670 = vld [vmem:[#allocation3 + $0xe8] sm:$0xff]
        %v671 = vld [vmem:[#allocation3 + $0xf0] sm:$0xff]
        %v672 = vld [vmem:[#allocation3 + $0xf8] sm:$0xff]
        %v673 = vld [vmem:[#allocation3 + $0x100] sm:$0xff]
        %v674 = vld [vmem:[#allocation3 + $0x108] sm:$0xff]
        %v675 = vld [vmem:[#allocation3 + $0x110] sm:$0xff]
        %v676 = vld [vmem:[#allocation3 + $0x118] sm:$0xff]
        %v677 = vld [vmem:[#allocation3 + $0x120] sm:$0xff]
        %v678 = vld [vmem:[#allocation3 + $0x128] sm:$0xff]
        %v679 = vld [vmem:[#allocation3 + $0x130] sm:$0xff]
        %v680 = vld [vmem:[#allocation3 + $0x138] sm:$0xff]
        %v681 = vld [vmem:[#allocation3 + $0x140] sm:$0xff]
        %v682 = vld [vmem:[#allocation3 + $0x148] sm:$0xff]
        %v683 = vld [vmem:[#allocation3 + $0x150] sm:$0xff]
        %v684 = vld [vmem:[#allocation3 + $0x158] sm:$0xff]
        %v685 = vld [vmem:[#allocation3 + $0x160] sm:$0xff]
        %v686 = vld [vmem:[#allocation3 + $0x168] sm:$0xff]
        %v687 = vld [vmem:[#allocation3 + $0x170] sm:$0xff]
        %v688 = vld [vmem:[#allocation3 + $0x178] sm:$0xff]
        %v689 = vld [vmem:[%s3] sm:$0x7]
        %v691 = vlaneseq
        %v692 = vshrl.u32 %v691, 7
        %v693 = vsub.s32 0, %v692
        %v694 = vrot.slane %v689, %v693
        %v695 = vlaneseq
        %v696 = vshrl.u32 %v695, 7
        %v697 = vsub.s32 1, %v696
        %v698 = vrot.slane %v689, %v697
        %v699 = vlaneseq
        %v700 = vshrl.u32 %v699, 7
        %v701 = vsub.s32 2, %v700
        %v702 = vrot.slane %v689, %v701
        %706 = vmatprep.subr.mxu0 %v687
        %707 = vmatpush1.msra.mxu0 %v686
        %708 = vmatprep.subr.mxu0 %v684
        %709 = vmatpush1.msra.mxu0 %v683
        %710 = vmatprep.subr.mxu0 %v681
        %711 = vmatpush1.msra.mxu0 %v680
        %712 = vmatprep.subr.mxu0 %v678
        %713 = vmatpush1.msra.mxu0 %v677
        %714 = vmatprep.subr.mxu0 %v675
        %715 = vmatpush1.msra.mxu0 %v674
        %716 = vmatprep.subr.mxu0 %v672
        %717 = vmatpush1.msra.mxu0 %v671
        %718 = vmatprep.subr.mxu0 %v669
        %719 = vmatpush1.msra.mxu0 %v668
        %720 = vmatprep.subr.mxu0 %v666
        %721 = vmatpush1.msra.mxu0 %v665
        %722 = vmatprep.subr.mxu0 %v663
        %723 = vmatpush1.msra.mxu0 %v662
        %724 = vmatprep.subr.mxu0 %v660
        %725 = vmatpush1.msra.mxu0 %v659
        %726 = vmatprep.subr.mxu0 %v657
        %727 = vmatpush1.msra.mxu0 %v656
        %728 = vmatprep.subr.mxu0 %v654
        %729 = vmatpush1.msra.mxu0 %v653
        %730 = vmatprep.subr.mxu0 %v651
        %731 = vmatpush1.msra.mxu0 %v650
        %732 = vmatprep.subr.mxu0 %v648
        %733 = vmatpush1.msra.mxu0 %v647
        %734 = vmatprep.subr.mxu0 %v645
        %735 = vmatpush1.msra.mxu0 %v644
        %736 = vmatprep.subr.mxu0 %v642
        %737 = vmatpush1.msra.mxu0 %v641
        %738 = vmatprep.subr.mxu0 0.0
        %739 = vmatpush2.msra.mxu0 0.0
        %740 = vmatprep.subr.mxu0 0.0
        %741 = vmatpush2.msra.mxu0 0.0
        %742 = vmatprep.subr.mxu0 0.0
        %743 = vmatpush2.msra.mxu0 0.0
        %744 = vmatprep.subr.mxu0 0.0
        %745 = vmatpush2.msra.mxu0 0.0
        %746 = vmatprep.subr.mxu0 0.0
        %747 = vmatpush2.msra.mxu0 0.0
        %748 = vmatprep.subr.mxu0 0.0
        %749 = vmatpush2.msra.mxu0 0.0
        %750 = vmatprep.subr.mxu0 0.0
        %751 = vmatpush2.msra.mxu0 0.0
        %752 = vmatprep.subr.mxu0 0.0
        %753 = vmatpush2.msra.mxu0 0.0
        %754 = vmatprep.subr.mxu0 0.0
        %755 = vmatpush2.msra.mxu0 0.0
        %756 = vmatprep.subr.mxu0 0.0
        %757 = vmatpush2.msra.mxu0 0.0
        %758 = vmatprep.subr.mxu0 0.0
        %759 = vmatpush2.msra.mxu0 0.0
        %760 = vmatprep.subr.mxu0 0.0
        %761 = vmatpush2.msra.mxu0 0.0
        %762 = vmatprep.subr.mxu0 0.0
        %763 = vmatpush2.msra.mxu0 0.0
        %764 = vmatprep.subr.mxu0 0.0
        %765 = vmatpush2.msra.mxu0 0.0
        %766 = vmatprep.subr.mxu0 0.0
        %767 = vmatpush2.msra.mxu0 0.0
        %768 = vmatprep.subr.mxu0 0.0
        %769 = vmatpush2.msra.mxu0 0.0
        %770 = vmatprep.mubr.f32.mxu0 0.0
        %771 = vmatmul.mubr.f32.gmra.mxu0 %v639
        %v772 = vpop.f32.mrf.mxu0
        %v773 = vadd.f32 %v694, %v772
        %v774 = vpop.f32.mrf.mxu0
        %v775 = vadd.f32 %v698, %v774
        %776 = vmatprep.mubr.f32.mxu0 0.0
        %777 = vmatmul.mubr.f32.gmra.mxu0 %v640
        %v778 = vpop.f32.mrf.mxu0
        %v779 = vadd.f32 %v694, %v778
        %v780 = vpop.f32.mrf.mxu0
        %v781 = vadd.f32 %v698, %v780
        %782 = vdwg.mxu0
        %783 = vmatprep.subr.mxu0 0.0
        %784 = vmatpush1.msra.mxu0 %v688
        %785 = vmatprep.subr.mxu0 0.0
        %786 = vmatpush1.msra.mxu0 %v685
        %787 = vmatprep.subr.mxu0 0.0
        %788 = vmatpush1.msra.mxu0 %v682
        %789 = vmatprep.subr.mxu0 0.0
        %790 = vmatpush1.msra.mxu0 %v679
        %791 = vmatprep.subr.mxu0 0.0
        %792 = vmatpush1.msra.mxu0 %v676
        %793 = vmatprep.subr.mxu0 0.0
        %794 = vmatpush1.msra.mxu0 %v673
        %795 = vmatprep.subr.mxu0 0.0
        %796 = vmatpush1.msra.mxu0 %v670
        %797 = vmatprep.subr.mxu0 0.0
        %798 = vmatpush1.msra.mxu0 %v667
        %799 = vmatprep.subr.mxu0 0.0
        %800 = vmatpush1.msra.mxu0 %v664
        %801 = vmatprep.subr.mxu0 0.0
        %802 = vmatpush1.msra.mxu0 %v661
        %803 = vmatprep.subr.mxu0 0.0
        %804 = vmatpush1.msra.mxu0 %v658
        %805 = vmatprep.subr.mxu0 0.0
        %806 = vmatpush1.msra.mxu0 %v655
        %807 = vmatprep.subr.mxu0 0.0
        %808 = vmatpush1.msra.mxu0 %v652
        %809 = vmatprep.subr.mxu0 0.0
        %810 = vmatpush1.msra.mxu0 %v649
        %811 = vmatprep.subr.mxu0 0.0
        %812 = vmatpush1.msra.mxu0 %v646
        %813 = vmatprep.subr.mxu0 0.0
        %814 = vmatpush1.msra.mxu0 %v643
        %815 = vmatprep.subr.mxu0 0.0
        %816 = vmatpush2.msra.mxu0 0.0
        %817 = vmatprep.subr.mxu0 0.0
        %818 = vmatpush2.msra.mxu0 0.0
        %819 = vmatprep.subr.mxu0 0.0
        %820 = vmatpush2.msra.mxu0 0.0
        %821 = vmatprep.subr.mxu0 0.0
        %822 = vmatpush2.msra.mxu0 0.0
        %823 = vmatprep.subr.mxu0 0.0
        %824 = vmatpush2.msra.mxu0 0.0
        %825 = vmatprep.subr.mxu0 0.0
        %826 = vmatpush2.msra.mxu0 0.0
        %827 = vmatprep.subr.mxu0 0.0
        %828 = vmatpush2.msra.mxu0 0.0
        %829 = vmatprep.subr.mxu0 0.0
        %830 = vmatpush2.msra.mxu0 0.0
        %831 = vmatprep.subr.mxu0 0.0
        %832 = vmatpush2.msra.mxu0 0.0
        %833 = vmatprep.subr.mxu0 0.0
        %834 = vmatpush2.msra.mxu0 0.0
        %835 = vmatprep.subr.mxu0 0.0
        %836 = vmatpush2.msra.mxu0 0.0
        %837 = vmatprep.subr.mxu0 0.0
        %838 = vmatpush2.msra.mxu0 0.0
        %839 = vmatprep.subr.mxu0 0.0
        %840 = vmatpush2.msra.mxu0 0.0
        %841 = vmatprep.subr.mxu0 0.0
        %842 = vmatpush2.msra.mxu0 0.0
        %843 = vmatprep.subr.mxu0 0.0
        %844 = vmatpush2.msra.mxu0 0.0
        %845 = vmatprep.subr.mxu0 0.0
        %846 = vmatpush2.msra.mxu0 0.0
        %847 = vmatprep.mubr.f32.mxu0 0.0
        %848 = vmatmul.mubr.f32.gmra.mxu0 %v639
        %v849 = vpop.f32.mrf.mxu0
        %v850 = vadd.f32 %v702, %v849
        %v851 = vpop.f32.mrf.mxu0
        %852 = vmatprep.mubr.f32.mxu0 0.0
        %853 = vmatmul.mubr.f32.gmra.mxu0 %v640
        %v854 = vpop.f32.mrf.mxu0
        %v855 = vadd.f32 %v702, %v854
        %v856 = vpop.f32.mrf.mxu0
        %857 = vdwg.mxu0
        %vm858 = vcmask 261120
        %v860 = vsel %vm858, %v773, 0
        %v863 = vsel %vm858, %v779, 0
        %v866 = vsel %vm858, %v775, 0
        %v869 = vsel %vm858, %v781, 0
        %871 = vmatprep.subr.mxu0 0.0
        %872 = vmatpush1.xpose.msra.mxu0 0.0
        %873 = vmatprep.subr.mxu0 0.0
        %874 = vmatpush1.xpose.msra.mxu0 0.0
        %875 = vmatprep.subr.mxu0 0.0
        %876 = vmatpush1.xpose.msra.mxu0 0.0
        %877 = vmatprep.subr.mxu0 0.0
        %878 = vmatpush1.xpose.msra.mxu0 0.0
        %879 = vmatprep.subr.mxu0 0.0
        %880 = vmatpush1.xpose.msra.mxu0 0.0
        %881 = vmatprep.subr.mxu0 0.0
        %882 = vmatpush1.xpose.msra.mxu0 0.0
        %883 = vmatprep.subr.mxu0 0.0
        %884 = vmatpush1.xpose.msra.mxu0 0.0
        %885 = vmatprep.subr.mxu0 0.0
        %886 = vmatpush1.xpose.msra.mxu0 0.0
        %887 = vmatprep.subr.mxu0 0.0
        %888 = vmatpush1.xpose.msra.mxu0 0.0
        %889 = vmatprep.subr.mxu0 0.0
        %890 = vmatpush1.xpose.msra.mxu0 0.0
        %891 = vmatprep.subr.mxu0 0.0
        %892 = vmatpush1.xpose.msra.mxu0 0.0
        %893 = vmatprep.subr.mxu0 0.0
        %894 = vmatpush1.xpose.msra.mxu0 0.0
        %895 = vmatprep.subr.mxu0 0.0
        %896 = vmatpush1.xpose.msra.mxu0 0.0
        %897 = vmatprep.subr.mxu0 0.0
        %898 = vmatpush1.xpose.msra.mxu0 0.0
        %899 = vmatprep.subr.mxu0 0.0
        %900 = vmatpush1.xpose.msra.mxu0 %v869
        %901 = vmatprep.subr.mxu0 0.0
        %902 = vmatpush1.xpose.msra.mxu0 %v866
        %903 = vmatprep.subr.mxu0 0.0
        %904 = vmatpush2.xpose.msra.mxu0 0.0
        %905 = vmatprep.subr.mxu0 0.0
        %906 = vmatpush2.xpose.msra.mxu0 0.0
        %907 = vmatprep.subr.mxu0 0.0
        %908 = vmatpush2.xpose.msra.mxu0 0.0
        %909 = vmatprep.subr.mxu0 0.0
        %910 = vmatpush2.xpose.msra.mxu0 0.0
        %911 = vmatprep.subr.mxu0 0.0
        %912 = vmatpush2.xpose.msra.mxu0 0.0
        %913 = vmatprep.subr.mxu0 0.0
        %914 = vmatpush2.xpose.msra.mxu0 0.0
        %915 = vmatprep.subr.mxu0 0.0
        %916 = vmatpush2.xpose.msra.mxu0 0.0
        %917 = vmatprep.subr.mxu0 0.0
        %918 = vmatpush2.xpose.msra.mxu0 0.0
        %919 = vmatprep.subr.mxu0 0.0
        %920 = vmatpush2.xpose.msra.mxu0 0.0
        %921 = vmatprep.subr.mxu0 0.0
        %922 = vmatpush2.xpose.msra.mxu0 0.0
        %923 = vmatprep.subr.mxu0 0.0
        %924 = vmatpush2.xpose.msra.mxu0 0.0
        %925 = vmatprep.subr.mxu0 0.0
        %926 = vmatpush2.xpose.msra.mxu0 0.0
        %927 = vmatprep.subr.mxu0 0.0
        %928 = vmatpush2.xpose.msra.mxu0 0.0
        %929 = vmatprep.subr.mxu0 0.0
        %930 = vmatpush2.xpose.msra.mxu0 0.0
        %931 = vmatprep.subr.mxu0 0.0
        %932 = vmatpush2.xpose.msra.mxu0 0.0
        %933 = vmatprep.subr.mxu0 0.0
        %934 = vmatpush2.xpose.msra.mxu0 0.0
        %935 = vmatprep.mubr.f32.mxu0 0.0
        %936 = vmatmul.mubr.f32.gmra.mxu0 %v860
        %v937 = vpop.f32.mrf.mxu0
        %v938 = vadd.f32 0.0, %v937
        %v939 = vpop.f32.mrf.mxu0
        %940 = vmatprep.mubr.f32.mxu0 0.0
        %941 = vmatmul.mubr.f32.gmra.mxu0 %v863
        %v942 = vpop.f32.mrf.mxu0
        %v943 = vadd.f32 0.0, %v942
        %v944 = vpop.f32.mrf.mxu0
        %945 = vdwg.mxu0
        %v946 = vmul.f32 %v938, 0.17677669
        %v947 = vmul.f32 %v943, 0.17677669
        %vm948 = vcmask 130048
        %v949 = vsel %vm948, %v946, -inf
        %950 = vmax.xlane.f32.xlu0 %v949
        %v951 = vpop.xlane.xlu0 %950
        %v952 = vsel %vm948, %v947, -inf
        %953 = vmax.xlane.f32.xlu0 %v952
        %v954 = vpop.xlane.xlu0 %953
        %v955 = vsub.f32 %v946, %v951
        %v956 = vsub.f32 %v947, %v954
        %v957 = vmul.f32 %v955, 1.442695
        %v958 = vpow.pop %v957
        %v959 = vmul.f32 %v956, 1.442695
        %v960 = vpow.pop %v959
        %v961 = vsel %vm948, %v958, 0.0
        %962 = vadd.xlane.f32.xlu0 %v961
        %v963 = vpop.xlane.xlu0 %962
        %v964 = vsel %vm948, %v960, 0.0
        %965 = vadd.xlane.f32.xlu0 %v964
        %v966 = vpop.xlane.xlu0 %965
        %v967 = vrcp.pop %v963
        %v968 = vmul.f32 %v958, %v967
        %v969 = vrcp.pop %v966
        %v970 = vmul.f32 %v960, %v969
        %v972 = vsel %vm948, %v968, 0
        %v975 = vsel %vm948, %v970, 0
        %977 = vmatprep.subr.mxu0 0.0
        %978 = vmatpush1.msra.mxu0 0.0
        %979 = vmatprep.subr.mxu0 0.0
        %980 = vmatpush1.msra.mxu0 0.0
        %981 = vmatprep.subr.mxu0 0.0
        %982 = vmatpush1.msra.mxu0 0.0
        %983 = vmatprep.subr.mxu0 0.0
        %984 = vmatpush1.msra.mxu0 0.0
        %985 = vmatprep.subr.mxu0 0.0
        %986 = vmatpush1.msra.mxu0 0.0
        %987 = vmatprep.subr.mxu0 0.0
        %988 = vmatpush1.msra.mxu0 0.0
        %989 = vmatprep.subr.mxu0 0.0
        %990 = vmatpush1.msra.mxu0 0.0
        %991 = vmatprep.subr.mxu0 0.0
        %992 = vmatpush1.msra.mxu0 0.0
        %993 = vmatprep.subr.mxu0 0.0
        %994 = vmatpush1.msra.mxu0 0.0
        %995 = vmatprep.subr.mxu0 0.0
        %996 = vmatpush1.msra.mxu0 0.0
        %997 = vmatprep.subr.mxu0 0.0
        %998 = vmatpush1.msra.mxu0 0.0
        %999 = vmatprep.subr.mxu0 0.0
        %1000 = vmatpush1.msra.mxu0 0.0
        %1001 = vmatprep.subr.mxu0 0.0
        %1002 = vmatpush1.msra.mxu0 0.0
        %1003 = vmatprep.subr.mxu0 0.0
        %1004 = vmatpush1.msra.mxu0 0.0
        %1005 = vmatprep.subr.mxu0 0.0
        %1006 = vmatpush1.msra.mxu0 %v855
        %1007 = vmatprep.subr.mxu0 0.0
        %1008 = vmatpush1.msra.mxu0 %v850
        %1009 = vmatprep.subr.mxu0 0.0
        %1010 = vmatpush2.msra.mxu0 0.0
        %1011 = vmatprep.subr.mxu0 0.0
        %1012 = vmatpush2.msra.mxu0 0.0
        %1013 = vmatprep.subr.mxu0 0.0
        %1014 = vmatpush2.msra.mxu0 0.0
        %1015 = vmatprep.subr.mxu0 0.0
        %1016 = vmatpush2.msra.mxu0 0.0
        %1017 = vmatprep.subr.mxu0 0.0
        %1018 = vmatpush2.msra.mxu0 0.0
        %1019 = vmatprep.subr.mxu0 0.0
        %1020 = vmatpush2.msra.mxu0 0.0
        %1021 = vmatprep.subr.mxu0 0.0
        %1022 = vmatpush2.msra.mxu0 0.0
        %1023 = vmatprep.subr.mxu0 0.0
        %1024 = vmatpush2.msra.mxu0 0.0
        %1025 = vmatprep.subr.mxu0 0.0
        %1026 = vmatpush2.msra.mxu0 0.0
        %1027 = vmatprep.subr.mxu0 0.0
        %1028 = vmatpush2.msra.mxu0 0.0
        %1029 = vmatprep.subr.mxu0 0.0
        %1030 = vmatpush2.msra.mxu0 0.0
        %1031 = vmatprep.subr.mxu0 0.0
        %1032 = vmatpush2.msra.mxu0 0.0
        %1033 = vmatprep.subr.mxu0 0.0
        %1034 = vmatpush2.msra.mxu0 0.0
        %1035 = vmatprep.subr.mxu0 0.0
        %1036 = vmatpush2.msra.mxu0 0.0
        %1037 = vmatprep.subr.mxu0 0.0
        %1038 = vmatpush2.msra.mxu0 0.0
        %1039 = vmatprep.subr.mxu0 0.0
        %1040 = vmatpush2.msra.mxu0 0.0
        %1041 = vmatprep.mubr.f32.mxu0 0.0
        %1042 = vmatmul.mubr.f32.gmra.mxu0 %v972
        %v1043 = vpop.f32.mrf.mxu0
        %v1044 = vadd.f32 0.0, %v1043
        %v1045 = vpop.f32.mrf.mxu0
        %1046 = vmatprep.mubr.f32.mxu0 0.0
        %1047 = vmatmul.mubr.f32.gmra.mxu0 %v975
        %v1048 = vpop.f32.mrf.mxu0
        %v1049 = vadd.f32 0.0, %v1048
        %v1050 = vpop.f32.mrf.mxu0
        %1051 = vdwg.mxu0
        %1052 = vrot.lane.b32.xlu0 %v773, 96
        %v1053 = vpop.permute.xlu0 %1052
        %1054 = vrot.lane.b32.xlu0 %v779, 96
        %v1055 = vpop.permute.xlu0 %1054
        %1056 = vrot.lane.b32.xlu0 %v775, 96
        %v1057 = vpop.permute.xlu0 %1056
        %1058 = vrot.lane.b32.xlu0 %v781, 96
        %v1059 = vpop.permute.xlu0 %1058
        %v1060 = vsel %vm858, %v1053, 0
        %v1062 = vsel %vm858, %v1055, 0
        %v1064 = vsel %vm858, %v1057, 0
        %v1066 = vsel %vm858, %v1059, 0
        %1068 = vmatprep.subr.mxu0 0.0
        %1069 = vmatpush1.xpose.msra.mxu0 0.0
        %1070 = vmatprep.subr.mxu0 0.0
        %1071 = vmatpush1.xpose.msra.mxu0 0.0
        %1072 = vmatprep.subr.mxu0 0.0
        %1073 = vmatpush1.xpose.msra.mxu0 0.0
        %1074 = vmatprep.subr.mxu0 0.0
        %1075 = vmatpush1.xpose.msra.mxu0 0.0
        %1076 = vmatprep.subr.mxu0 0.0
        %1077 = vmatpush1.xpose.msra.mxu0 0.0
        %1078 = vmatprep.subr.mxu0 0.0
        %1079 = vmatpush1.xpose.msra.mxu0 0.0
        %1080 = vmatprep.subr.mxu0 0.0
        %1081 = vmatpush1.xpose.msra.mxu0 0.0
        %1082 = vmatprep.subr.mxu0 0.0
        %1083 = vmatpush1.xpose.msra.mxu0 0.0
        %1084 = vmatprep.subr.mxu0 0.0
        %1085 = vmatpush1.xpose.msra.mxu0 0.0
        %1086 = vmatprep.subr.mxu0 0.0
        %1087 = vmatpush1.xpose.msra.mxu0 0.0
        %1088 = vmatprep.subr.mxu0 0.0
        %1089 = vmatpush1.xpose.msra.mxu0 0.0
        %1090 = vmatprep.subr.mxu0 0.0
        %1091 = vmatpush1.xpose.msra.mxu0 0.0
        %1092 = vmatprep.subr.mxu0 0.0
        %1093 = vmatpush1.xpose.msra.mxu0 0.0
        %1094 = vmatprep.subr.mxu0 0.0
        %1095 = vmatpush1.xpose.msra.mxu0 0.0
        %1096 = vmatprep.subr.mxu0 0.0
        %1097 = vmatpush1.xpose.msra.mxu0 %v1066
        %1098 = vmatprep.subr.mxu0 0.0
        %1099 = vmatpush1.xpose.msra.mxu0 %v1064
        %1100 = vmatprep.subr.mxu0 0.0
        %1101 = vmatpush2.xpose.msra.mxu0 0.0
        %1102 = vmatprep.subr.mxu0 0.0
        %1103 = vmatpush2.xpose.msra.mxu0 0.0
        %1104 = vmatprep.subr.mxu0 0.0
        %1105 = vmatpush2.xpose.msra.mxu0 0.0
        %1106 = vmatprep.subr.mxu0 0.0
        %1107 = vmatpush2.xpose.msra.mxu0 0.0
        %1108 = vmatprep.subr.mxu0 0.0
        %1109 = vmatpush2.xpose.msra.mxu0 0.0
        %1110 = vmatprep.subr.mxu0 0.0
        %1111 = vmatpush2.xpose.msra.mxu0 0.0
        %1112 = vmatprep.subr.mxu0 0.0
        %1113 = vmatpush2.xpose.msra.mxu0 0.0
        %1114 = vmatprep.subr.mxu0 0.0
        %1115 = vmatpush2.xpose.msra.mxu0 0.0
        %1116 = vmatprep.subr.mxu0 0.0
        %1117 = vmatpush2.xpose.msra.mxu0 0.0
        %1118 = vmatprep.subr.mxu0 0.0
        %1119 = vmatpush2.xpose.msra.mxu0 0.0
        %1120 = vmatprep.subr.mxu0 0.0
        %1121 = vmatpush2.xpose.msra.mxu0 0.0
        %1122 = vmatprep.subr.mxu0 0.0
        %1123 = vmatpush2.xpose.msra.mxu0 0.0
        %1124 = vmatprep.subr.mxu0 0.0
        %1125 = vmatpush2.xpose.msra.mxu0 0.0
        %1126 = vmatprep.subr.mxu0 0.0
        %1127 = vmatpush2.xpose.msra.mxu0 0.0
        %1128 = vmatprep.subr.mxu0 0.0
        %1129 = vmatpush2.xpose.msra.mxu0 0.0
        %1130 = vmatprep.subr.mxu0 0.0
        %1131 = vmatpush2.xpose.msra.mxu0 0.0
        %1132 = vmatprep.mubr.f32.mxu0 0.0
        %1133 = vmatmul.mubr.f32.gmra.mxu0 %v1060
        %v1134 = vpop.f32.mrf.mxu0
        %v1135 = vadd.f32 0.0, %v1134
        %v1136 = vpop.f32.mrf.mxu0
        %1137 = vmatprep.mubr.f32.mxu0 0.0
        %1138 = vmatmul.mubr.f32.gmra.mxu0 %v1062
        %v1139 = vpop.f32.mrf.mxu0
        %v1140 = vadd.f32 0.0, %v1139
        %v1141 = vpop.f32.mrf.mxu0
        %1142 = vdwg.mxu0
        %v1143 = vmul.f32 %v1135, 0.17677669
        %v1144 = vmul.f32 %v1140, 0.17677669
        %v1145 = vsel %vm948, %v1143, -inf
        %1146 = vmax.xlane.f32.xlu0 %v1145
        %v1147 = vpop.xlane.xlu0 %1146
        %v1148 = vsel %vm948, %v1144, -inf
        %1149 = vmax.xlane.f32.xlu0 %v1148
        %v1150 = vpop.xlane.xlu0 %1149
        %v1151 = vsub.f32 %v1143, %v1147
        %v1152 = vsub.f32 %v1144, %v1150
        %v1153 = vmul.f32 %v1151, 1.442695
        %v1154 = vpow.pop %v1153
        %v1155 = vmul.f32 %v1152, 1.442695
        %v1156 = vpow.pop %v1155
        %v1157 = vsel %vm948, %v1154, 0.0
        %1158 = vadd.xlane.f32.xlu0 %v1157
        %v1159 = vpop.xlane.xlu0 %1158
        %v1160 = vsel %vm948, %v1156, 0.0
        %1161 = vadd.xlane.f32.xlu0 %v1160
        %v1162 = vpop.xlane.xlu0 %1161
        %v1163 = vrcp.pop %v1159
        %v1164 = vmul.f32 %v1154, %v1163
        %v1165 = vrcp.pop %v1162
        %v1166 = vmul.f32 %v1156, %v1165
        %1169 = vrot.lane.b32.xlu0 %v850, 96
        %v1170 = vpop.permute.xlu0 %1169
        %1171 = vrot.lane.b32.xlu0 %v855, 96
        %v1172 = vpop.permute.xlu0 %1171
        %v1176 = vsel %vm948, %v1164, 0
        %v1179 = vsel %vm948, %v1166, 0
        %1181 = vmatprep.subr.mxu0 0.0
        %1182 = vmatpush1.msra.mxu0 0.0
        %1183 = vmatprep.subr.mxu0 0.0
        %1184 = vmatpush1.msra.mxu0 0.0
        %1185 = vmatprep.subr.mxu0 0.0
        %1186 = vmatpush1.msra.mxu0 0.0
        %1187 = vmatprep.subr.mxu0 0.0
        %1188 = vmatpush1.msra.mxu0 0.0
        %1189 = vmatprep.subr.mxu0 0.0
        %1190 = vmatpush1.msra.mxu0 0.0
        %1191 = vmatprep.subr.mxu0 0.0
        %1192 = vmatpush1.msra.mxu0 0.0
        %1193 = vmatprep.subr.mxu0 0.0
        %1194 = vmatpush1.msra.mxu0 0.0
        %1195 = vmatprep.subr.mxu0 0.0
        %1196 = vmatpush1.msra.mxu0 0.0
        %1197 = vmatprep.subr.mxu0 0.0
        %1198 = vmatpush1.msra.mxu0 0.0
        %1199 = vmatprep.subr.mxu0 0.0
        %1200 = vmatpush1.msra.mxu0 0.0
        %1201 = vmatprep.subr.mxu0 0.0
        %1202 = vmatpush1.msra.mxu0 0.0
        %1203 = vmatprep.subr.mxu0 0.0
        %1204 = vmatpush1.msra.mxu0 0.0
        %1205 = vmatprep.subr.mxu0 0.0
        %1206 = vmatpush1.msra.mxu0 0.0
        %1207 = vmatprep.subr.mxu0 0.0
        %1208 = vmatpush1.msra.mxu0 0.0
        %1209 = vmatprep.subr.mxu0 0.0
        %1210 = vmatpush1.msra.mxu0 %v1172
        %1211 = vmatprep.subr.mxu0 0.0
        %1212 = vmatpush1.msra.mxu0 %v1170
        %1213 = vmatprep.subr.mxu0 0.0
        %1214 = vmatpush2.msra.mxu0 0.0
        %1215 = vmatprep.subr.mxu0 0.0
        %1216 = vmatpush2.msra.mxu0 0.0
        %1217 = vmatprep.subr.mxu0 0.0
        %1218 = vmatpush2.msra.mxu0 0.0
        %1219 = vmatprep.subr.mxu0 0.0
        %1220 = vmatpush2.msra.mxu0 0.0
        %1221 = vmatprep.subr.mxu0 0.0
        %1222 = vmatpush2.msra.mxu0 0.0
        %1223 = vmatprep.subr.mxu0 0.0
        %1224 = vmatpush2.msra.mxu0 0.0
        %1225 = vmatprep.subr.mxu0 0.0
        %1226 = vmatpush2.msra.mxu0 0.0
        %1227 = vmatprep.subr.mxu0 0.0
        %1228 = vmatpush2.msra.mxu0 0.0
        %1229 = vmatprep.subr.mxu0 0.0
        %1230 = vmatpush2.msra.mxu0 0.0
        %1231 = vmatprep.subr.mxu0 0.0
        %1232 = vmatpush2.msra.mxu0 0.0
        %1233 = vmatprep.subr.mxu0 0.0
        %1234 = vmatpush2.msra.mxu0 0.0
        %1235 = vmatprep.subr.mxu0 0.0
        %1236 = vmatpush2.msra.mxu0 0.0
        %1237 = vmatprep.subr.mxu0 0.0
        %1238 = vmatpush2.msra.mxu0 0.0
        %1239 = vmatprep.subr.mxu0 0.0
        %1240 = vmatpush2.msra.mxu0 0.0
        %1241 = vmatprep.subr.mxu0 0.0
        %1242 = vmatpush2.msra.mxu0 0.0
        %1243 = vmatprep.subr.mxu0 0.0
        %1244 = vmatpush2.msra.mxu0 0.0
        %1245 = vmatprep.mubr.f32.mxu0 0.0
        %1246 = vmatmul.mubr.f32.gmra.mxu0 %v1176
        %v1247 = vpop.f32.mrf.mxu0
        %v1248 = vadd.f32 0.0, %v1247
        %v1249 = vpop.f32.mrf.mxu0
        %1250 = vmatprep.mubr.f32.mxu0 0.0
        %1251 = vmatmul.mubr.f32.gmra.mxu0 %v1179
        %v1252 = vpop.f32.mrf.mxu0
        %v1253 = vadd.f32 0.0, %v1252
        %v1254 = vpop.f32.mrf.mxu0
        %1255 = vdwg.mxu0
        %1256 = vrot.lane.b32.xlu0 %v773, 64
        %v1257 = vpop.permute.xlu0 %1256
        %1258 = vrot.lane.b32.xlu0 %v779, 64
        %v1259 = vpop.permute.xlu0 %1258
        %1260 = vrot.lane.b32.xlu0 %v775, 64
        %v1261 = vpop.permute.xlu0 %1260
        %1262 = vrot.lane.b32.xlu0 %v781, 64
        %v1263 = vpop.permute.xlu0 %1262
        %v1264 = vsel %vm858, %v1257, 0
        %v1266 = vsel %vm858, %v1259, 0
        %v1268 = vsel %vm858, %v1261, 0
        %v1270 = vsel %vm858, %v1263, 0
        %1272 = vmatprep.subr.mxu0 0.0
        %1273 = vmatpush1.xpose.msra.mxu0 0.0
        %1274 = vmatprep.subr.mxu0 0.0
        %1275 = vmatpush1.xpose.msra.mxu0 0.0
        %1276 = vmatprep.subr.mxu0 0.0
        %1277 = vmatpush1.xpose.msra.mxu0 0.0
        %1278 = vmatprep.subr.mxu0 0.0
        %1279 = vmatpush1.xpose.msra.mxu0 0.0
        %1280 = vmatprep.subr.mxu0 0.0
        %1281 = vmatpush1.xpose.msra.mxu0 0.0
        %1282 = vmatprep.subr.mxu0 0.0
        %1283 = vmatpush1.xpose.msra.mxu0 0.0
        %1284 = vmatprep.subr.mxu0 0.0
        %1285 = vmatpush1.xpose.msra.mxu0 0.0
        %1286 = vmatprep.subr.mxu0 0.0
        %1287 = vmatpush1.xpose.msra.mxu0 0.0
        %1288 = vmatprep.subr.mxu0 0.0
        %1289 = vmatpush1.xpose.msra.mxu0 0.0
        %1290 = vmatprep.subr.mxu0 0.0
        %1291 = vmatpush1.xpose.msra.mxu0 0.0
        %1292 = vmatprep.subr.mxu0 0.0
        %1293 = vmatpush1.xpose.msra.mxu0 0.0
        %1294 = vmatprep.subr.mxu0 0.0
        %1295 = vmatpush1.xpose.msra.mxu0 0.0
        %1296 = vmatprep.subr.mxu0 0.0
        %1297 = vmatpush1.xpose.msra.mxu0 0.0
        %1298 = vmatprep.subr.mxu0 0.0
        %1299 = vmatpush1.xpose.msra.mxu0 0.0
        %1300 = vmatprep.subr.mxu0 0.0
        %1301 = vmatpush1.xpose.msra.mxu0 %v1270
        %1302 = vmatprep.subr.mxu0 0.0
        %1303 = vmatpush1.xpose.msra.mxu0 %v1268
        %1304 = vmatprep.subr.mxu0 0.0
        %1305 = vmatpush2.xpose.msra.mxu0 0.0
        %1306 = vmatprep.subr.mxu0 0.0
        %1307 = vmatpush2.xpose.msra.mxu0 0.0
        %1308 = vmatprep.subr.mxu0 0.0
        %1309 = vmatpush2.xpose.msra.mxu0 0.0
        %1310 = vmatprep.subr.mxu0 0.0
        %1311 = vmatpush2.xpose.msra.mxu0 0.0
        %1312 = vmatprep.subr.mxu0 0.0
        %1313 = vmatpush2.xpose.msra.mxu0 0.0
        %1314 = vmatprep.subr.mxu0 0.0
        %1315 = vmatpush2.xpose.msra.mxu0 0.0
        %1316 = vmatprep.subr.mxu0 0.0
        %1317 = vmatpush2.xpose.msra.mxu0 0.0
        %1318 = vmatprep.subr.mxu0 0.0
        %1319 = vmatpush2.xpose.msra.mxu0 0.0
        %1320 = vmatprep.subr.mxu0 0.0
        %1321 = vmatpush2.xpose.msra.mxu0 0.0
        %1322 = vmatprep.subr.mxu0 0.0
        %1323 = vmatpush2.xpose.msra.mxu0 0.0
        %1324 = vmatprep.subr.mxu0 0.0
        %1325 = vmatpush2.xpose.msra.mxu0 0.0
        %1326 = vmatprep.subr.mxu0 0.0
        %1327 = vmatpush2.xpose.msra.mxu0 0.0
        %1328 = vmatprep.subr.mxu0 0.0
        %1329 = vmatpush2.xpose.msra.mxu0 0.0
        %1330 = vmatprep.subr.mxu0 0.0
        %1331 = vmatpush2.xpose.msra.mxu0 0.0
        %1332 = vmatprep.subr.mxu0 0.0
        %1333 = vmatpush2.xpose.msra.mxu0 0.0
        %1334 = vmatprep.subr.mxu0 0.0
        %1335 = vmatpush2.xpose.msra.mxu0 0.0
        %1336 = vmatprep.mubr.f32.mxu0 0.0
        %1337 = vmatmul.mubr.f32.gmra.mxu0 %v1264
        %v1338 = vpop.f32.mrf.mxu0
        %v1339 = vadd.f32 0.0, %v1338
        %v1340 = vpop.f32.mrf.mxu0
        %1341 = vmatprep.mubr.f32.mxu0 0.0
        %1342 = vmatmul.mubr.f32.gmra.mxu0 %v1266
        %v1343 = vpop.f32.mrf.mxu0
        %v1344 = vadd.f32 0.0, %v1343
        %v1345 = vpop.f32.mrf.mxu0
        %1346 = vdwg.mxu0
        %v1347 = vmul.f32 %v1339, 0.17677669
        %v1348 = vmul.f32 %v1344, 0.17677669
        %v1349 = vsel %vm948, %v1347, -inf
        %1350 = vmax.xlane.f32.xlu0 %v1349
        %v1351 = vpop.xlane.xlu0 %1350
        %v1352 = vsel %vm948, %v1348, -inf
        %1353 = vmax.xlane.f32.xlu0 %v1352
        %v1354 = vpop.xlane.xlu0 %1353
        %v1355 = vsub.f32 %v1347, %v1351
        %v1356 = vsub.f32 %v1348, %v1354
        %v1357 = vmul.f32 %v1355, 1.442695
        %v1358 = vpow.pop %v1357
        %v1359 = vmul.f32 %v1356, 1.442695
        %v1360 = vpow.pop %v1359
        %v1361 = vsel %vm948, %v1358, 0.0
        %1362 = vadd.xlane.f32.xlu0 %v1361
        %v1363 = vpop.xlane.xlu0 %1362
        %v1364 = vsel %vm948, %v1360, 0.0
        %1365 = vadd.xlane.f32.xlu0 %v1364
        %v1366 = vpop.xlane.xlu0 %1365
        %v1367 = vrcp.pop %v1363
        %v1368 = vmul.f32 %v1358, %v1367
        %v1369 = vrcp.pop %v1366
        %v1370 = vmul.f32 %v1360, %v1369
        %1371 = vrot.lane.b32.xlu0 %v850, 64
        %v1372 = vpop.permute.xlu0 %1371
        %1373 = vrot.lane.b32.xlu0 %v855, 64
        %v1374 = vpop.permute.xlu0 %1373
        %v1378 = vsel %vm948, %v1368, 0
        %v1381 = vsel %vm948, %v1370, 0
        %1383 = vmatprep.subr.mxu0 0.0
        %1384 = vmatpush1.msra.mxu0 0.0
        %1385 = vmatprep.subr.mxu0 0.0
        %1386 = vmatpush1.msra.mxu0 0.0
        %1387 = vmatprep.subr.mxu0 0.0
        %1388 = vmatpush1.msra.mxu0 0.0
        %1389 = vmatprep.subr.mxu0 0.0
        %1390 = vmatpush1.msra.mxu0 0.0
        %1391 = vmatprep.subr.mxu0 0.0
        %1392 = vmatpush1.msra.mxu0 0.0
        %1393 = vmatprep.subr.mxu0 0.0
        %1394 = vmatpush1.msra.mxu0 0.0
        %1395 = vmatprep.subr.mxu0 0.0
        %1396 = vmatpush1.msra.mxu0 0.0
        %1397 = vmatprep.subr.mxu0 0.0
        %1398 = vmatpush1.msra.mxu0 0.0
        %1399 = vmatprep.subr.mxu0 0.0
        %1400 = vmatpush1.msra.mxu0 0.0
        %1401 = vmatprep.subr.mxu0 0.0
        %1402 = vmatpush1.msra.mxu0 0.0
        %1403 = vmatprep.subr.mxu0 0.0
        %1404 = vmatpush1.msra.mxu0 0.0
        %1405 = vmatprep.subr.mxu0 0.0
        %1406 = vmatpush1.msra.mxu0 0.0
        %1407 = vmatprep.subr.mxu0 0.0
        %1408 = vmatpush1.msra.mxu0 0.0
        %1409 = vmatprep.subr.mxu0 0.0
        %1410 = vmatpush1.msra.mxu0 0.0
        %1411 = vmatprep.subr.mxu0 0.0
        %1412 = vmatpush1.msra.mxu0 %v1374
        %1413 = vmatprep.subr.mxu0 0.0
        %1414 = vmatpush1.msra.mxu0 %v1372
        %1415 = vmatprep.subr.mxu0 0.0
        %1416 = vmatpush2.msra.mxu0 0.0
        %1417 = vmatprep.subr.mxu0 0.0
        %1418 = vmatpush2.msra.mxu0 0.0
        %1419 = vmatprep.subr.mxu0 0.0
        %1420 = vmatpush2.msra.mxu0 0.0
        %1421 = vmatprep.subr.mxu0 0.0
        %1422 = vmatpush2.msra.mxu0 0.0
        %1423 = vmatprep.subr.mxu0 0.0
        %1424 = vmatpush2.msra.mxu0 0.0
        %1425 = vmatprep.subr.mxu0 0.0
        %1426 = vmatpush2.msra.mxu0 0.0
        %1427 = vmatprep.subr.mxu0 0.0
        %1428 = vmatpush2.msra.mxu0 0.0
        %1429 = vmatprep.subr.mxu0 0.0
        %1430 = vmatpush2.msra.mxu0 0.0
        %1431 = vmatprep.subr.mxu0 0.0
        %1432 = vmatpush2.msra.mxu0 0.0
        %1433 = vmatprep.subr.mxu0 0.0
        %1434 = vmatpush2.msra.mxu0 0.0
        %1435 = vmatprep.subr.mxu0 0.0
        %1436 = vmatpush2.msra.mxu0 0.0
        %1437 = vmatprep.subr.mxu0 0.0
        %1438 = vmatpush2.msra.mxu0 0.0
        %1439 = vmatprep.subr.mxu0 0.0
        %1440 = vmatpush2.msra.mxu0 0.0
        %1441 = vmatprep.subr.mxu0 0.0
        %1442 = vmatpush2.msra.mxu0 0.0
        %1443 = vmatprep.subr.mxu0 0.0
        %1444 = vmatpush2.msra.mxu0 0.0
        %1445 = vmatprep.subr.mxu0 0.0
        %1446 = vmatpush2.msra.mxu0 0.0
        %1447 = vmatprep.mubr.f32.mxu0 0.0
        %1448 = vmatmul.mubr.f32.gmra.mxu0 %v1378
        %v1449 = vpop.f32.mrf.mxu0
        %v1450 = vadd.f32 0.0, %v1449
        %v1451 = vpop.f32.mrf.mxu0
        %1452 = vmatprep.mubr.f32.mxu0 0.0
        %1453 = vmatmul.mubr.f32.gmra.mxu0 %v1381
        %v1454 = vpop.f32.mrf.mxu0
        %v1455 = vadd.f32 0.0, %v1454
        %v1456 = vpop.f32.mrf.mxu0
        %1457 = vdwg.mxu0
        %1458 = vrot.lane.b32.xlu0 %v773, 32
        %v1459 = vpop.permute.xlu0 %1458
        %1460 = vrot.lane.b32.xlu0 %v779, 32
        %v1461 = vpop.permute.xlu0 %1460
        %1462 = vrot.lane.b32.xlu0 %v775, 32
        %v1463 = vpop.permute.xlu0 %1462
        %1464 = vrot.lane.b32.xlu0 %v781, 32
        %v1465 = vpop.permute.xlu0 %1464
        %v1466 = vsel %vm858, %v1459, 0
        %v1468 = vsel %vm858, %v1461, 0
        %v1470 = vsel %vm858, %v1463, 0
        %v1472 = vsel %vm858, %v1465, 0
        %1474 = vmatprep.subr.mxu0 0.0
        %1475 = vmatpush1.xpose.msra.mxu0 0.0
        %1476 = vmatprep.subr.mxu0 0.0
        %1477 = vmatpush1.xpose.msra.mxu0 0.0
        %1478 = vmatprep.subr.mxu0 0.0
        %1479 = vmatpush1.xpose.msra.mxu0 0.0
        %1480 = vmatprep.subr.mxu0 0.0
        %1481 = vmatpush1.xpose.msra.mxu0 0.0
        %1482 = vmatprep.subr.mxu0 0.0
        %1483 = vmatpush1.xpose.msra.mxu0 0.0
        %1484 = vmatprep.subr.mxu0 0.0
        %1485 = vmatpush1.xpose.msra.mxu0 0.0
        %1486 = vmatprep.subr.mxu0 0.0
        %1487 = vmatpush1.xpose.msra.mxu0 0.0
        %1488 = vmatprep.subr.mxu0 0.0
        %1489 = vmatpush1.xpose.msra.mxu0 0.0
        %1490 = vmatprep.subr.mxu0 0.0
        %1491 = vmatpush1.xpose.msra.mxu0 0.0
        %1492 = vmatprep.subr.mxu0 0.0
        %1493 = vmatpush1.xpose.msra.mxu0 0.0
        %1494 = vmatprep.subr.mxu0 0.0
        %1495 = vmatpush1.xpose.msra.mxu0 0.0
        %1496 = vmatprep.subr.mxu0 0.0
        %1497 = vmatpush1.xpose.msra.mxu0 0.0
        %1498 = vmatprep.subr.mxu0 0.0
        %1499 = vmatpush1.xpose.msra.mxu0 0.0
        %1500 = vmatprep.subr.mxu0 0.0
        %1501 = vmatpush1.xpose.msra.mxu0 0.0
        %1502 = vmatprep.subr.mxu0 0.0
        %1503 = vmatpush1.xpose.msra.mxu0 %v1472
        %1504 = vmatprep.subr.mxu0 0.0
        %1505 = vmatpush1.xpose.msra.mxu0 %v1470
        %1506 = vmatprep.subr.mxu0 0.0
        %1507 = vmatpush2.xpose.msra.mxu0 0.0
        %1508 = vmatprep.subr.mxu0 0.0
        %1509 = vmatpush2.xpose.msra.mxu0 0.0
        %1510 = vmatprep.subr.mxu0 0.0
        %1511 = vmatpush2.xpose.msra.mxu0 0.0
        %1512 = vmatprep.subr.mxu0 0.0
        %1513 = vmatpush2.xpose.msra.mxu0 0.0
        %1514 = vmatprep.subr.mxu0 0.0
        %1515 = vmatpush2.xpose.msra.mxu0 0.0
        %1516 = vmatprep.subr.mxu0 0.0
        %1517 = vmatpush2.xpose.msra.mxu0 0.0
        %1518 = vmatprep.subr.mxu0 0.0
        %1519 = vmatpush2.xpose.msra.mxu0 0.0
        %1520 = vmatprep.subr.mxu0 0.0
        %1521 = vmatpush2.xpose.msra.mxu0 0.0
        %1522 = vmatprep.subr.mxu0 0.0
        %1523 = vmatpush2.xpose.msra.mxu0 0.0
        %1524 = vmatprep.subr.mxu0 0.0
        %1525 = vmatpush2.xpose.msra.mxu0 0.0
        %1526 = vmatprep.subr.mxu0 0.0
        %1527 = vmatpush2.xpose.msra.mxu0 0.0
        %1528 = vmatprep.subr.mxu0 0.0
        %1529 = vmatpush2.xpose.msra.mxu0 0.0
        %1530 = vmatprep.subr.mxu0 0.0
        %1531 = vmatpush2.xpose.msra.mxu0 0.0
        %1532 = vmatprep.subr.mxu0 0.0
        %1533 = vmatpush2.xpose.msra.mxu0 0.0
        %1534 = vmatprep.subr.mxu0 0.0
        %1535 = vmatpush2.xpose.msra.mxu0 0.0
        %1536 = vmatprep.subr.mxu0 0.0
        %1537 = vmatpush2.xpose.msra.mxu0 0.0
        %1538 = vmatprep.mubr.f32.mxu0 0.0
        %1539 = vmatmul.mubr.f32.gmra.mxu0 %v1466
        %v1540 = vpop.f32.mrf.mxu0
        %v1541 = vadd.f32 0.0, %v1540
        %v1542 = vpop.f32.mrf.mxu0
        %1543 = vmatprep.mubr.f32.mxu0 0.0
        %1544 = vmatmul.mubr.f32.gmra.mxu0 %v1468
        %v1545 = vpop.f32.mrf.mxu0
        %v1546 = vadd.f32 0.0, %v1545
        %v1547 = vpop.f32.mrf.mxu0
        %1548 = vdwg.mxu0
        %v1549 = vmul.f32 %v1541, 0.17677669
        %v1550 = vmul.f32 %v1546, 0.17677669
        %v1551 = vsel %vm948, %v1549, -inf
        %1552 = vmax.xlane.f32.xlu0 %v1551
        %v1553 = vpop.xlane.xlu0 %1552
        %v1554 = vsel %vm948, %v1550, -inf
        %1555 = vmax.xlane.f32.xlu0 %v1554
        %v1556 = vpop.xlane.xlu0 %1555
        %v1557 = vsub.f32 %v1549, %v1553
        %v1558 = vsub.f32 %v1550, %v1556
        %v1559 = vmul.f32 %v1557, 1.442695
        %v1560 = vpow.pop %v1559
        %v1561 = vmul.f32 %v1558, 1.442695
        %v1562 = vpow.pop %v1561
        %v1563 = vsel %vm948, %v1560, 0.0
        %1564 = vadd.xlane.f32.xlu0 %v1563
        %v1565 = vpop.xlane.xlu0 %1564
        %v1566 = vsel %vm948, %v1562, 0.0
        %1567 = vadd.xlane.f32.xlu0 %v1566
        %v1568 = vpop.xlane.xlu0 %1567
        %v1569 = vrcp.pop %v1565
        %v1570 = vmul.f32 %v1560, %v1569
        %v1571 = vrcp.pop %v1568
        %v1572 = vmul.f32 %v1562, %v1571
        %1573 = vrot.lane.b32.xlu0 %v850, 32
        %v1574 = vpop.permute.xlu0 %1573
        %1575 = vrot.lane.b32.xlu0 %v855, 32
        %v1576 = vpop.permute.xlu0 %1575
        %v1580 = vsel %vm948, %v1570, 0
        %v1583 = vsel %vm948, %v1572, 0
        %1585 = vmatprep.subr.mxu0 0.0
        %1586 = vmatpush1.msra.mxu0 0.0
        %1587 = vmatprep.subr.mxu0 0.0
        %1588 = vmatpush1.msra.mxu0 0.0
        %1589 = vmatprep.subr.mxu0 0.0
        %1590 = vmatpush1.msra.mxu0 0.0
        %1591 = vmatprep.subr.mxu0 0.0
        %1592 = vmatpush1.msra.mxu0 0.0
        %1593 = vmatprep.subr.mxu0 0.0
        %1594 = vmatpush1.msra.mxu0 0.0
        %1595 = vmatprep.subr.mxu0 0.0
        %1596 = vmatpush1.msra.mxu0 0.0
        %1597 = vmatprep.subr.mxu0 0.0
        %1598 = vmatpush1.msra.mxu0 0.0
        %1599 = vmatprep.subr.mxu0 0.0
        %1600 = vmatpush1.msra.mxu0 0.0
        %1601 = vmatprep.subr.mxu0 0.0
        %1602 = vmatpush1.msra.mxu0 0.0
        %1603 = vmatprep.subr.mxu0 0.0
        %1604 = vmatpush1.msra.mxu0 0.0
        %1605 = vmatprep.subr.mxu0 0.0
        %1606 = vmatpush1.msra.mxu0 0.0
        %1607 = vmatprep.subr.mxu0 0.0
        %1608 = vmatpush1.msra.mxu0 0.0
        %1609 = vmatprep.subr.mxu0 0.0
        %1610 = vmatpush1.msra.mxu0 0.0
        %1611 = vmatprep.subr.mxu0 0.0
        %1612 = vmatpush1.msra.mxu0 0.0
        %1613 = vmatprep.subr.mxu0 0.0
        %1614 = vmatpush1.msra.mxu0 %v1576
        %1615 = vmatprep.subr.mxu0 0.0
        %1616 = vmatpush1.msra.mxu0 %v1574
        %1617 = vmatprep.subr.mxu0 0.0
        %1618 = vmatpush2.msra.mxu0 0.0
        %1619 = vmatprep.subr.mxu0 0.0
        %1620 = vmatpush2.msra.mxu0 0.0
        %1621 = vmatprep.subr.mxu0 0.0
        %1622 = vmatpush2.msra.mxu0 0.0
        %1623 = vmatprep.subr.mxu0 0.0
        %1624 = vmatpush2.msra.mxu0 0.0
        %1625 = vmatprep.subr.mxu0 0.0
        %1626 = vmatpush2.msra.mxu0 0.0
        %1627 = vmatprep.subr.mxu0 0.0
        %1628 = vmatpush2.msra.mxu0 0.0
        %1629 = vmatprep.subr.mxu0 0.0
        %1630 = vmatpush2.msra.mxu0 0.0
        %1631 = vmatprep.subr.mxu0 0.0
        %1632 = vmatpush2.msra.mxu0 0.0
        %1633 = vmatprep.subr.mxu0 0.0
        %1634 = vmatpush2.msra.mxu0 0.0
        %1635 = vmatprep.subr.mxu0 0.0
        %1636 = vmatpush2.msra.mxu0 0.0
        %1637 = vmatprep.subr.mxu0 0.0
        %1638 = vmatpush2.msra.mxu0 0.0
        %1639 = vmatprep.subr.mxu0 0.0
        %1640 = vmatpush2.msra.mxu0 0.0
        %1641 = vmatprep.subr.mxu0 0.0
        %1642 = vmatpush2.msra.mxu0 0.0
        %1643 = vmatprep.subr.mxu0 0.0
        %1644 = vmatpush2.msra.mxu0 0.0
        %1645 = vmatprep.subr.mxu0 0.0
        %1646 = vmatpush2.msra.mxu0 0.0
        %1647 = vmatprep.subr.mxu0 0.0
        %1648 = vmatpush2.msra.mxu0 0.0
        %1649 = vmatprep.mubr.f32.mxu0 0.0
        %1650 = vmatmul.mubr.f32.gmra.mxu0 %v1580
        %v1651 = vpop.f32.mrf.mxu0
        %v1652 = vadd.f32 0.0, %v1651
        %v1653 = vpop.f32.mrf.mxu0
        %1654 = vmatprep.mubr.f32.mxu0 0.0
        %1655 = vmatmul.mubr.f32.gmra.mxu0 %v1583
        %v1656 = vpop.f32.mrf.mxu0
        %v1657 = vadd.f32 0.0, %v1656
        %v1658 = vpop.f32.mrf.mxu0
        %1659 = vdwg.mxu0
        %1662 = vrot.lane.b32.xlu0 %v1248, 32
        %v1663 = vpop.permute.xlu0 %1662
        %1664 = vrot.lane.b32.xlu0 %v1253, 32
        %v1665 = vpop.permute.xlu0 %1664
        %1670 = vrot.lane.b32.xlu0 %v1450, 64
        %v1671 = vpop.permute.xlu0 %1670
        %1672 = vrot.lane.b32.xlu0 %v1455, 64
        %v1673 = vpop.permute.xlu0 %1672
        %1678 = vrot.lane.b32.xlu0 %v1652, 96
        %v1679 = vpop.permute.xlu0 %1678
        %1680 = vrot.lane.b32.xlu0 %v1657, 96
        %v1681 = vpop.permute.xlu0 %1680
        %v1684 = vsel %vm858, %v1044, %v1663
        %v1685 = vsel %vm858, %v1049, %v1665
        %vm1686 = vcmask 523264
        %v1687 = vsel %vm1686, %v1684, %v1671
        %v1688 = vsel %vm1686, %v1685, %v1673
        %vm1689 = vcmask 785408
        %v1690 = vsel %vm1689, %v1687, %v1679
        %v1691 = vsel %vm1689, %v1688, %v1681
        %v1692 = vld [vmem:[#allocation5] sm:$0xff]
        %v1693 = vld [vmem:[#allocation5 + $0x8] sm:$0xff]
        %v1694 = vld [vmem:[#allocation5 + $0x10] sm:$0xff]
        %v1695 = vld [vmem:[#allocation5 + $0x18] sm:$0xff]
        %v1696 = vld [vmem:[#allocation5 + $0x20] sm:$0xff]
        %v1697 = vld [vmem:[#allocation5 + $0x28] sm:$0xff]
        %v1698 = vld [vmem:[#allocation5 + $0x30] sm:$0xff]
        %v1699 = vld [vmem:[#allocation5 + $0x38] sm:$0xff]
        %v1700 = vld [vmem:[#allocation5 + $0x40] sm:$0xff]
        %v1701 = vld [vmem:[#allocation5 + $0x48] sm:$0xff]
        %v1702 = vld [vmem:[#allocation5 + $0x50] sm:$0xff]
        %v1703 = vld [vmem:[#allocation5 + $0x58] sm:$0xff]
        %v1704 = vld [vmem:[#allocation5 + $0x60] sm:$0xff]
        %v1705 = vld [vmem:[#allocation5 + $0x68] sm:$0xff]
        %v1706 = vld [vmem:[#allocation5 + $0x70] sm:$0xff]
        %v1707 = vld [vmem:[#allocation5 + $0x78] sm:$0xff]
        %v1708 = vld [vmem:[%s5] sm:$0x1]
        %v1710 = vlaneseq
        %v1711 = vshrl.u32 %v1710, 7
        %v1712 = vsub.s32 0, %v1711
        %v1713 = vrot.slane %v1708, %v1712
        %1715 = vmatprep.subr.mxu0 0.0
        %1716 = vmatpush1.msra.mxu0 %v1707
        %1717 = vmatprep.subr.mxu0 0.0
        %1718 = vmatpush1.msra.mxu0 %v1706
        %1719 = vmatprep.subr.mxu0 0.0
        %1720 = vmatpush1.msra.mxu0 %v1705
        %1721 = vmatprep.subr.mxu0 0.0
        %1722 = vmatpush1.msra.mxu0 %v1704
        %1723 = vmatprep.subr.mxu0 0.0
        %1724 = vmatpush1.msra.mxu0 %v1703
        %1725 = vmatprep.subr.mxu0 0.0
        %1726 = vmatpush1.msra.mxu0 %v1702
        %1727 = vmatprep.subr.mxu0 0.0
        %1728 = vmatpush1.msra.mxu0 %v1701
        %1729 = vmatprep.subr.mxu0 0.0
        %1730 = vmatpush1.msra.mxu0 %v1700
        %1731 = vmatprep.subr.mxu0 0.0
        %1732 = vmatpush1.msra.mxu0 %v1699
        %1733 = vmatprep.subr.mxu0 0.0
        %1734 = vmatpush1.msra.mxu0 %v1698
        %1735 = vmatprep.subr.mxu0 0.0
        %1736 = vmatpush1.msra.mxu0 %v1697
        %1737 = vmatprep.subr.mxu0 0.0
        %1738 = vmatpush1.msra.mxu0 %v1696
        %1739 = vmatprep.subr.mxu0 0.0
        %1740 = vmatpush1.msra.mxu0 %v1695
        %1741 = vmatprep.subr.mxu0 0.0
        %1742 = vmatpush1.msra.mxu0 %v1694
        %1743 = vmatprep.subr.mxu0 0.0
        %1744 = vmatpush1.msra.mxu0 %v1693
        %1745 = vmatprep.subr.mxu0 0.0
        %1746 = vmatpush1.msra.mxu0 %v1692
        %1747 = vmatprep.subr.mxu0 0.0
        %1748 = vmatpush2.msra.mxu0 0.0
        %1749 = vmatprep.subr.mxu0 0.0
        %1750 = vmatpush2.msra.mxu0 0.0
        %1751 = vmatprep.subr.mxu0 0.0
        %1752 = vmatpush2.msra.mxu0 0.0
        %1753 = vmatprep.subr.mxu0 0.0
        %1754 = vmatpush2.msra.mxu0 0.0
        %1755 = vmatprep.subr.mxu0 0.0
        %1756 = vmatpush2.msra.mxu0 0.0
        %1757 = vmatprep.subr.mxu0 0.0
        %1758 = vmatpush2.msra.mxu0 0.0
        %1759 = vmatprep.subr.mxu0 0.0
        %1760 = vmatpush2.msra.mxu0 0.0
        %1761 = vmatprep.subr.mxu0 0.0
        %1762 = vmatpush2.msra.mxu0 0.0
        %1763 = vmatprep.subr.mxu0 0.0
        %1764 = vmatpush2.msra.mxu0 0.0
        %1765 = vmatprep.subr.mxu0 0.0
        %1766 = vmatpush2.msra.mxu0 0.0
        %1767 = vmatprep.subr.mxu0 0.0
        %1768 = vmatpush2.msra.mxu0 0.0
        %1769 = vmatprep.subr.mxu0 0.0
        %1770 = vmatpush2.msra.mxu0 0.0
        %1771 = vmatprep.subr.mxu0 0.0
        %1772 = vmatpush2.msra.mxu0 0.0
        %1773 = vmatprep.subr.mxu0 0.0
        %1774 = vmatpush2.msra.mxu0 0.0
        %1775 = vmatprep.subr.mxu0 0.0
        %1776 = vmatpush2.msra.mxu0 0.0
        %1777 = vmatprep.subr.mxu0 0.0
        %1778 = vmatpush2.msra.mxu0 0.0
        %1779 = vmatprep.mubr.f32.mxu0 0.0
        %1780 = vmatmul.mubr.f32.gmra.mxu0 %v1690
        %v1781 = vpop.f32.mrf.mxu0
        %v1782 = vadd.f32 %v1713, %v1781
        %v1783 = vpop.f32.mrf.mxu0
        %1784 = vmatprep.mubr.f32.mxu0 0.0
        %1785 = vmatmul.mubr.f32.gmra.mxu0 %v1691
        %v1786 = vpop.f32.mrf.mxu0
        %v1787 = vadd.f32 %v1713, %v1786
        %v1788 = vpop.f32.mrf.mxu0
        %1789 = vdwg.mxu0
        %v1790 = vadd.f32 %v639, %v1782
        %v1791 = vadd.f32 %v640, %v1787
        %v1792 = vld [vmem:[%s6] sm:$0x1]
        %v1793 = vld [vmem:[%s7] sm:$0x1]
        %1794 = vadd.xlane.f32.xlu0 %v1790
        %v1795 = vpop.xlane.xlu0 %1794
        %1796 = vadd.xlane.f32.xlu0 %v1791
        %v1797 = vpop.xlane.xlu0 %1796
        %v1798 = vrcp.pop 128.0
        %v1799 = vmul.f32 %v1795, %v1798
        %v1800 = vmul.f32 %v1797, %v1798
        %v1801 = vsub.f32 %v1790, %v1799
        %v1802 = vsub.f32 %v1791, %v1800
        %v1803 = vmul.f32 %v1801, %v1801
        %v1804 = vmul.f32 %v1802, %v1802
        %1805 = vadd.xlane.f32.xlu0 %v1803
        %v1806 = vpop.xlane.xlu0 %1805
        %1807 = vadd.xlane.f32.xlu0 %v1804
        %v1808 = vpop.xlane.xlu0 %1807
        %v1809 = vmul.f32 %v1806, %v1798
        %v1810 = vmul.f32 %v1808, %v1798
        %v1811 = vadd.f32 %v1809, 1e-05
        %v1812 = vadd.f32 %v1810, 1e-05
        %v1813 = vrsqrt.pop %v1811
        %v1814 = vrsqrt.pop %v1812
        %v1815 = vmul.f32 %v1801, %v1813
        %v1816 = vmul.f32 %v1802, %v1814
        %v1818 = vlaneseq
        %v1819 = vshrl.u32 %v1818, 7
        %v1820 = vsub.s32 0, %v1819
        %v1821 = vrot.slane %v1792, %v1820
        %v1823 = vmul.f32 %v1815, %v1821
        %v1824 = vmul.f32 %v1816, %v1821
        %v1826 = vlaneseq
        %v1827 = vshrl.u32 %v1826, 7
        %v1828 = vsub.s32 0, %v1827
        %v1829 = vrot.slane %v1793, %v1828
        %v1831 = vadd.f32 %v1823, %v1829
        %v1832 = vadd.f32 %v1824, %v1829
        %v1833 = vld [vmem:[%s8] sm:$0xff]
        %v1834 = vld [vmem:[%s8 + $0x8] sm:$0xff]
        %v1835 = vld [vmem:[%s8 + $0x10] sm:$0xff]
        %v1836 = vld [vmem:[%s8 + $0x18] sm:$0xff]
        %v1837 = vld [vmem:[%s8 + $0x20] sm:$0xff]
        %v1838 = vld [vmem:[%s8 + $0x28] sm:$0xff]
        %v1839 = vld [vmem:[%s8 + $0x30] sm:$0xff]
        %v1840 = vld [vmem:[%s8 + $0x38] sm:$0xff]
        %v1841 = vld [vmem:[%s8 + $0x40] sm:$0xff]
        %v1842 = vld [vmem:[%s8 + $0x48] sm:$0xff]
        %v1843 = vld [vmem:[%s8 + $0x50] sm:$0xff]
        %v1844 = vld [vmem:[%s8 + $0x58] sm:$0xff]
        %v1845 = vld [vmem:[%s8 + $0x60] sm:$0xff]
        %v1846 = vld [vmem:[%s8 + $0x68] sm:$0xff]
        %v1847 = vld [vmem:[%s8 + $0x70] sm:$0xff]
        %v1848 = vld [vmem:[%s8 + $0x78] sm:$0xff]
        %v1849 = vld [vmem:[%s8 + $0x80] sm:$0xff]
        %v1850 = vld [vmem:[%s8 + $0x88] sm:$0xff]
        %v1851 = vld [vmem:[%s8 + $0x90] sm:$0xff]
        %v1852 = vld [vmem:[%s8 + $0x98] sm:$0xff]
        %v1853 = vld [vmem:[%s8 + $0xa0] sm:$0xff]
        %v1854 = vld [vmem:[%s8 + $0xa8] sm:$0xff]
        %v1855 = vld [vmem:[%s8 + $0xb0] sm:$0xff]
        %v1856 = vld [vmem:[%s8 + $0xb8] sm:$0xff]
        %v1857 = vld [vmem:[%s8 + $0xc0] sm:$0xff]
        %v1858 = vld [vmem:[%s8 + $0xc8] sm:$0xff]
        %v1859 = vld [vmem:[%s8 + $0xd0] sm:$0xff]
        %v1860 = vld [vmem:[%s8 + $0xd8] sm:$0xff]
        %v1861 = vld [vmem:[%s8 + $0xe0] sm:$0xff]
        %v1862 = vld [vmem:[%s8 + $0xe8] sm:$0xff]
        %v1863 = vld [vmem:[%s8 + $0xf0] sm:$0xff]
        %v1864 = vld [vmem:[%s8 + $0xf8] sm:$0xff]
        %v1865 = vld [vmem:[%s9] sm:$0x3]
        %v1867 = vlaneseq
        %v1868 = vshrl.u32 %v1867, 7
        %v1869 = vsub.s32 0, %v1868
        %v1870 = vrot.slane %v1865, %v1869
        %v1871 = vlaneseq
        %v1872 = vshrl.u32 %v1871, 7
        %v1873 = vsub.s32 1, %v1872
        %v1874 = vrot.slane %v1865, %v1873
        %1877 = vmatprep.subr.mxu0 %v1864
        %1878 = vmatpush1.msra.mxu0 %v1863
        %1879 = vmatprep.subr.mxu0 %v1862
        %1880 = vmatpush1.msra.mxu0 %v1861
        %1881 = vmatprep.subr.mxu0 %v1860
        %1882 = vmatpush1.msra.mxu0 %v1859
        %1883 = vmatprep.subr.mxu0 %v1858
        %1884 = vmatpush1.msra.mxu0 %v1857
        %1885 = vmatprep.subr.mxu0 %v1856
        %1886 = vmatpush1.msra.mxu0 %v1855
        %1887 = vmatprep.subr.mxu0 %v1854
        %1888 = vmatpush1.msra.mxu0 %v1853
        %1889 = vmatprep.subr.mxu0 %v1852
        %1890 = vmatpush1.msra.mxu0 %v1851
        %1891 = vmatprep.subr.mxu0 %v1850
        %1892 = vmatpush1.msra.mxu0 %v1849
        %1893 = vmatprep.subr.mxu0 %v1848
        %1894 = vmatpush1.msra.mxu0 %v1847
        %1895 = vmatprep.subr.mxu0 %v1846
        %1896 = vmatpush1.msra.mxu0 %v1845
        %1897 = vmatprep.subr.mxu0 %v1844
        %1898 = vmatpush1.msra.mxu0 %v1843
        %1899 = vmatprep.subr.mxu0 %v1842
        %1900 = vmatpush1.msra.mxu0 %v1841
        %1901 = vmatprep.subr.mxu0 %v1840
        %1902 = vmatpush1.msra.mxu0 %v1839
        %1903 = vmatprep.subr.mxu0 %v1838
        %1904 = vmatpush1.msra.mxu0 %v1837
        %1905 = vmatprep.subr.mxu0 %v1836
        %1906 = vmatpush1.msra.mxu0 %v1835
        %1907 = vmatprep.subr.mxu0 %v1834
        %1908 = vmatpush1.msra.mxu0 %v1833
        %1909 = vmatprep.subr.mxu0 0.0
        %1910 = vmatpush2.msra.mxu0 0.0
        %1911 = vmatprep.subr.mxu0 0.0
        %1912 = vmatpush2.msra.mxu0 0.0
        %1913 = vmatprep.subr.mxu0 0.0
        %1914 = vmatpush2.msra.mxu0 0.0
        %1915 = vmatprep.subr.mxu0 0.0
        %1916 = vmatpush2.msra.mxu0 0.0
        %1917 = vmatprep.subr.mxu0 0.0
        %1918 = vmatpush2.msra.mxu0 0.0
        %1919 = vmatprep.subr.mxu0 0.0
        %1920 = vmatpush2.msra.mxu0 0.0
        %1921 = vmatprep.subr.mxu0 0.0
        %1922 = vmatpush2.msra.mxu0 0.0
        %1923 = vmatprep.subr.mxu0 0.0
        %1924 = vmatpush2.msra.mxu0 0.0
        %1925 = vmatprep.subr.mxu0 0.0
        %1926 = vmatpush2.msra.mxu0 0.0
        %1927 = vmatprep.subr.mxu0 0.0
        %1928 = vmatpush2.msra.mxu0 0.0
        %1929 = vmatprep.subr.mxu0 0.0
        %1930 = vmatpush2.msra.mxu0 0.0
        %1931 = vmatprep.subr.mxu0 0.0
        %1932 = vmatpush2.msra.mxu0 0.0
        %1933 = vmatprep.subr.mxu0 0.0
        %1934 = vmatpush2.msra.mxu0 0.0
        %1935 = vmatprep.subr.mxu0 0.0
        %1936 = vmatpush2.msra.mxu0 0.0
        %1937 = vmatprep.subr.mxu0 0.0
        %1938 = vmatpush2.msra.mxu0 0.0
        %1939 = vmatprep.subr.mxu0 0.0
        %1940 = vmatpush2.msra.mxu0 0.0
        %1941 = vmatprep.mubr.f32.mxu0 0.0
        %1942 = vmatmul.mubr.f32.gmra.mxu0 %v1831
        %v1943 = vpop.f32.mrf.mxu0
        %v1944 = vadd.f32 %v1870, %v1943
        %v1945 = vpop.f32.mrf.mxu0
        %v1946 = vadd.f32 %v1874, %v1945
        %1947 = vmatprep.mubr.f32.mxu0 0.0
        %1948 = vmatmul.mubr.f32.gmra.mxu0 %v1832
        %v1949 = vpop.f32.mrf.mxu0
        %v1950 = vadd.f32 %v1870, %v1949
        %v1951 = vpop.f32.mrf.mxu0
        %v1952 = vadd.f32 %v1874, %v1951
        %1953 = vdwg.mxu0
        %v1954 = vmax.f32 %v1944, 0.0
        %v1955 = vmax.f32 %v1946, 0.0
        %v1956 = vmax.f32 %v1950, 0.0
        %v1957 = vmax.f32 %v1952, 0.0
        %v1958 = vld [vmem:[#allocation7] sm:$0xff]
        %v1959 = vld [vmem:[#allocation7 + $0x8] sm:$0xff]
        %v1960 = vld [vmem:[#allocation7 + $0x10] sm:$0xff]
        %v1961 = vld [vmem:[#allocation7 + $0x18] sm:$0xff]
        %v1962 = vld [vmem:[#allocation7 + $0x20] sm:$0xff]
        %v1963 = vld [vmem:[#allocation7 + $0x28] sm:$0xff]
        %v1964 = vld [vmem:[#allocation7 + $0x30] sm:$0xff]
        %v1965 = vld [vmem:[#allocation7 + $0x38] sm:$0xff]
        %v1966 = vld [vmem:[#allocation7 + $0x40] sm:$0xff]
        %v1967 = vld [vmem:[#allocation7 + $0x48] sm:$0xff]
        %v1968 = vld [vmem:[#allocation7 + $0x50] sm:$0xff]
        %v1969 = vld [vmem:[#allocation7 + $0x58] sm:$0xff]
        %v1970 = vld [vmem:[#allocation7 + $0x60] sm:$0xff]
        %v1971 = vld [vmem:[#allocation7 + $0x68] sm:$0xff]
        %v1972 = vld [vmem:[#allocation7 + $0x70] sm:$0xff]
        %v1973 = vld [vmem:[#allocation7 + $0x78] sm:$0xff]
        %v1974 = vld [vmem:[#allocation7 + $0x80] sm:$0xff]
        %v1975 = vld [vmem:[#allocation7 + $0x88] sm:$0xff]
        %v1976 = vld [vmem:[#allocation7 + $0x90] sm:$0xff]
        %v1977 = vld [vmem:[#allocation7 + $0x98] sm:$0xff]
        %v1978 = vld [vmem:[#allocation7 + $0xa0] sm:$0xff]
        %v1979 = vld [vmem:[#allocation7 + $0xa8] sm:$0xff]
        %v1980 = vld [vmem:[#allocation7 + $0xb0] sm:$0xff]
        %v1981 = vld [vmem:[#allocation7 + $0xb8] sm:$0xff]
        %v1982 = vld [vmem:[#allocation7 + $0xc0] sm:$0xff]
        %v1983 = vld [vmem:[#allocation7 + $0xc8] sm:$0xff]
        %v1984 = vld [vmem:[#allocation7 + $0xd0] sm:$0xff]
        %v1985 = vld [vmem:[#allocation7 + $0xd8] sm:$0xff]
        %v1986 = vld [vmem:[#allocation7 + $0xe0] sm:$0xff]
        %v1987 = vld [vmem:[#allocation7 + $0xe8] sm:$0xff]
        %v1988 = vld [vmem:[#allocation7 + $0xf0] sm:$0xff]
        %v1989 = vld [vmem:[#allocation7 + $0xf8] sm:$0xff]
        %v1990 = vld [vmem:[%s11] sm:$0x1]
        %v1992 = vlaneseq
        %v1993 = vshrl.u32 %v1992, 7
        %v1994 = vsub.s32 0, %v1993
        %v1995 = vrot.slane %v1990, %v1994
        %1997 = vmatprep.subr.mxu0 0.0
        %1998 = vmatpush1.msra.mxu0 %v1973
        %1999 = vmatprep.subr.mxu0 0.0
        %2000 = vmatpush1.msra.mxu0 %v1972
        %2001 = vmatprep.subr.mxu0 0.0
        %2002 = vmatpush1.msra.mxu0 %v1971
        %2003 = vmatprep.subr.mxu0 0.0
        %2004 = vmatpush1.msra.mxu0 %v1970
        %2005 = vmatprep.subr.mxu0 0.0
        %2006 = vmatpush1.msra.mxu0 %v1969
        %2007 = vmatprep.subr.mxu0 0.0
        %2008 = vmatpush1.msra.mxu0 %v1968
        %2009 = vmatprep.subr.mxu0 0.0
        %2010 = vmatpush1.msra.mxu0 %v1967
        %2011 = vmatprep.subr.mxu0 0.0
        %2012 = vmatpush1.msra.mxu0 %v1966
        %2013 = vmatprep.subr.mxu0 0.0
        %2014 = vmatpush1.msra.mxu0 %v1965
        %2015 = vmatprep.subr.mxu0 0.0
        %2016 = vmatpush1.msra.mxu0 %v1964
        %2017 = vmatprep.subr.mxu0 0.0
        %2018 = vmatpush1.msra.mxu0 %v1963
        %2019 = vmatprep.subr.mxu0 0.0
        %2020 = vmatpush1.msra.mxu0 %v1962
        %2021 = vmatprep.subr.mxu0 0.0
        %2022 = vmatpush1.msra.mxu0 %v1961
        %2023 = vmatprep.subr.mxu0 0.0
        %2024 = vmatpush1.msra.mxu0 %v1960
        %2025 = vmatprep.subr.mxu0 0.0
        %2026 = vmatpush1.msra.mxu0 %v1959
        %2027 = vmatprep.subr.mxu0 0.0
        %2028 = vmatpush1.msra.mxu0 %v1958
        %2029 = vmatprep.subr.mxu0 0.0
        %2030 = vmatpush2.msra.mxu0 %v1989
        %2031 = vmatprep.subr.mxu0 0.0
        %2032 = vmatpush2.msra.mxu0 %v1988
        %2033 = vmatprep.subr.mxu0 0.0
        %2034 = vmatpush2.msra.mxu0 %v1987
        %2035 = vmatprep.subr.mxu0 0.0
        %2036 = vmatpush2.msra.mxu0 %v1986
        %2037 = vmatprep.subr.mxu0 0.0
        %2038 = vmatpush2.msra.mxu0 %v1985
        %2039 = vmatprep.subr.mxu0 0.0
        %2040 = vmatpush2.msra.mxu0 %v1984
        %2041 = vmatprep.subr.mxu0 0.0
        %2042 = vmatpush2.msra.mxu0 %v1983
        %2043 = vmatprep.subr.mxu0 0.0
        %2044 = vmatpush2.msra.mxu0 %v1982
        %2045 = vmatprep.subr.mxu0 0.0
        %2046 = vmatpush2.msra.mxu0 %v1981
        %2047 = vmatprep.subr.mxu0 0.0
        %2048 = vmatpush2.msra.mxu0 %v1980
        %2049 = vmatprep.subr.mxu0 0.0
        %2050 = vmatpush2.msra.mxu0 %v1979
        %2051 = vmatprep.subr.mxu0 0.0
        %2052 = vmatpush2.msra.mxu0 %v1978
        %2053 = vmatprep.subr.mxu0 0.0
        %2054 = vmatpush2.msra.mxu0 %v1977
        %2055 = vmatprep.subr.mxu0 0.0
        %2056 = vmatpush2.msra.mxu0 %v1976
        %2057 = vmatprep.subr.mxu0 0.0
        %2058 = vmatpush2.msra.mxu0 %v1975
        %2059 = vmatprep.subr.mxu0 0.0
        %2060 = vmatpush2.msra.mxu0 %v1974
        %2061 = vmatprep.mubr.f32.mxu0 %v1955
        %2062 = vmatmul.mubr.f32.gmra.mxu0 %v1954
        %v2063 = vpop.f32.mrf.mxu0
        %v2064 = vadd.f32 %v1995, %v2063
        %v2065 = vpop.f32.mrf.mxu0
        %2066 = vmatprep.mubr.f32.mxu0 %v1957
        %2067 = vmatmul.mubr.f32.gmra.mxu0 %v1956
        %v2068 = vpop.f32.mrf.mxu0
        %v2069 = vadd.f32 %v1995, %v2068
        %v2070 = vpop.f32.mrf.mxu0
        %2071 = vdwg.mxu0
        %v2072 = vadd.f32 %v1831, %v2064
        %v2073 = vadd.f32 %v1832, %v2069
        %v2074 = vld [vmem:[%s12] sm:$0x1]
        %v2075 = vld [vmem:[%s13] sm:$0x1]
        %2076 = vadd.xlane.f32.xlu0 %v2072
        %v2077 = vpop.xlane.xlu0 %2076
        %2078 = vadd.xlane.f32.xlu0 %v2073
        %v2079 = vpop.xlane.xlu0 %2078
        %v2080 = vmul.f32 %v2077, %v1798
        %v2081 = vmul.f32 %v2079, %v1798
        %v2082 = vsub.f32 %v2072, %v2080
        %v2083 = vsub.f32 %v2073, %v2081
        %v2084 = vmul.f32 %v2082, %v2082
        %v2085 = vmul.f32 %v2083, %v2083
        %2086 = vadd.xlane.f32.xlu0 %v2084
        %v2087 = vpop.xlane.xlu0 %2086
        %2088 = vadd.xlane.f32.xlu0 %v2085
        %v2089 = vpop.xlane.xlu0 %2088
        %v2090 = vmul.f32 %v2087, %v1798
        %v2091 = vmul.f32 %v2089, %v1798
        %v2092 = vadd.f32 %v2090, 1e-05
        %v2093 = vadd.f32 %v2091, 1e-05
        %v2094 = vrsqrt.pop %v2092
        %v2095 = vrsqrt.pop %v2093
        %v2096 = vmul.f32 %v2082, %v2094
        %v2097 = vmul.f32 %v2083, %v2095
        %v2099 = vlaneseq
        %v2100 = vshrl.u32 %v2099, 7
        %v2101 = vsub.s32 0, %v2100
        %v2102 = vrot.slane %v2074, %v2101
        %v2104 = vmul.f32 %v2096, %v2102
        %v2105 = vmul.f32 %v2097, %v2102
        %v2107 = vlaneseq
        %v2108 = vshrl.u32 %v2107, 7
        %v2109 = vsub.s32 0, %v2108
        %v2110 = vrot.slane %v2075, %v2109
        %v2112 = vadd.f32 %v2104, %v2110
        %v2113 = vadd.f32 %v2105, %v2110
        %s2114 = scalar_lea.vmem [#allocation3], 384
        %v2115 = vld [vmem:[%s2114] sm:$0xff]
        %v2116 = vld [vmem:[%s2114 + $0x8] sm:$0xff]
        %v2117 = vld [vmem:[%s2114 + $0x10] sm:$0xff]
        %v2118 = vld [vmem:[%s2114 + $0x18] sm:$0xff]
        %v2119 = vld [vmem:[%s2114 + $0x20] sm:$0xff]
        %v2120 = vld [vmem:[%s2114 + $0x28] sm:$0xff]
        %v2121 = vld [vmem:[%s2114 + $0x30] sm:$0xff]
        %v2122 = vld [vmem:[%s2114 + $0x38] sm:$0xff]
        %v2123 = vld [vmem:[%s2114 + $0x40] sm:$0xff]
        %v2124 = vld [vmem:[%s2114 + $0x48] sm:$0xff]
        %v2125 = vld [vmem:[%s2114 + $0x50] sm:$0xff]
        %v2126 = vld [vmem:[%s2114 + $0x58] sm:$0xff]
        %v2127 = vld [vmem:[%s2114 + $0x60] sm:$0xff]
        %v2128 = vld [vmem:[%s2114 + $0x68] sm:$0xff]
        %v2129 = vld [vmem:[%s2114 + $0x70] sm:$0xff]
        %v2130 = vld [vmem:[%s2114 + $0x78] sm:$0xff]
        %v2131 = vld [vmem:[%s2114 + $0x80] sm:$0xff]
        %v2132 = vld [vmem:[%s2114 + $0x88] sm:$0xff]
        %v2133 = vld [vmem:[%s2114 + $0x90] sm:$0xff]
        %v2134 = vld [vmem:[%s2114 + $0x98] sm:$0xff]
        %v2135 = vld [vmem:[%s2114 + $0xa0] sm:$0xff]
        %v2136 = vld [vmem:[%s2114 + $0xa8] sm:$0xff]
        %v2137 = vld [vmem:[%s2114 + $0xb0] sm:$0xff]
        %v2138 = vld [vmem:[%s2114 + $0xb8] sm:$0xff]
        %v2139 = vld [vmem:[%s2114 + $0xc0] sm:$0xff]
        %v2140 = vld [vmem:[%s2114 + $0xc8] sm:$0xff]
        %v2141 = vld [vmem:[%s2114 + $0xd0] sm:$0xff]
        %v2142 = vld [vmem:[%s2114 + $0xd8] sm:$0xff]
        %v2143 = vld [vmem:[%s2114 + $0xe0] sm:$0xff]
        %v2144 = vld [vmem:[%s2114 + $0xe8] sm:$0xff]
        %v2145 = vld [vmem:[%s2114 + $0xf0] sm:$0xff]
        %v2146 = vld [vmem:[%s2114 + $0xf8] sm:$0xff]
        %v2147 = vld [vmem:[%s2114 + $0x100] sm:$0xff]
        %v2148 = vld [vmem:[%s2114 + $0x108] sm:$0xff]
        %v2149 = vld [vmem:[%s2114 + $0x110] sm:$0xff]
        %v2150 = vld [vmem:[%s2114 + $0x118] sm:$0xff]
        %v2151 = vld [vmem:[%s2114 + $0x120] sm:$0xff]
        %v2152 = vld [vmem:[%s2114 + $0x128] sm:$0xff]
        %v2153 = vld [vmem:[%s2114 + $0x130] sm:$0xff]
        %v2154 = vld [vmem:[%s2114 + $0x138] sm:$0xff]
        %v2155 = vld [vmem:[%s2114 + $0x140] sm:$0xff]
        %v2156 = vld [vmem:[%s2114 + $0x148] sm:$0xff]
        %v2157 = vld [vmem:[%s2114 + $0x150] sm:$0xff]
        %v2158 = vld [vmem:[%s2114 + $0x158] sm:$0xff]
        %v2159 = vld [vmem:[%s2114 + $0x160] sm:$0xff]
        %v2160 = vld [vmem:[%s2114 + $0x168] sm:$0xff]
        %v2161 = vld [vmem:[%s2114 + $0x170] sm:$0xff]
        %v2162 = vld [vmem:[%s2114 + $0x178] sm:$0xff]
        %s2163 = scalar_lea.vmem %s3, 3
        %v2164 = vld [vmem:[%s2163] sm:$0x7]
        %v2166 = vlaneseq
        %v2167 = vshrl.u32 %v2166, 7
        %v2168 = vsub.s32 0, %v2167
        %v2169 = vrot.slane %v2164, %v2168
        %v2170 = vlaneseq
        %v2171 = vshrl.u32 %v2170, 7
        %v2172 = vsub.s32 1, %v2171
        %v2173 = vrot.slane %v2164, %v2172
        %v2174 = vlaneseq
        %v2175 = vshrl.u32 %v2174, 7
        %v2176 = vsub.s32 2, %v2175
        %v2177 = vrot.slane %v2164, %v2176
        %2181 = vmatprep.subr.mxu0 %v2161
        %2182 = vmatpush1.msra.mxu0 %v2160
        %2183 = vmatprep.subr.mxu0 %v2158
        %2184 = vmatpush1.msra.mxu0 %v2157
        %2185 = vmatprep.subr.mxu0 %v2155
        %2186 = vmatpush1.msra.mxu0 %v2154
        %2187 = vmatprep.subr.mxu0 %v2152
        %2188 = vmatpush1.msra.mxu0 %v2151
        %2189 = vmatprep.subr.mxu0 %v2149
        %2190 = vmatpush1.msra.mxu0 %v2148
        %2191 = vmatprep.subr.mxu0 %v2146
        %2192 = vmatpush1.msra.mxu0 %v2145
        %2193 = vmatprep.subr.mxu0 %v2143
        %2194 = vmatpush1.msra.mxu0 %v2142
        %2195 = vmatprep.subr.mxu0 %v2140
        %2196 = vmatpush1.msra.mxu0 %v2139
        %2197 = vmatprep.subr.mxu0 %v2137
        %2198 = vmatpush1.msra.mxu0 %v2136
        %2199 = vmatprep.subr.mxu0 %v2134
        %2200 = vmatpush1.msra.mxu0 %v2133
        %2201 = vmatprep.subr.mxu0 %v2131
        %2202 = vmatpush1.msra.mxu0 %v2130
        %2203 = vmatprep.subr.mxu0 %v2128
        %2204 = vmatpush1.msra.mxu0 %v2127
        %2205 = vmatprep.subr.mxu0 %v2125
        %2206 = vmatpush1.msra.mxu0 %v2124
        %2207 = vmatprep.subr.mxu0 %v2122
        %2208 = vmatpush1.msra.mxu0 %v2121
        %2209 = vmatprep.subr.mxu0 %v2119
        %2210 = vmatpush1.msra.mxu0 %v2118
        %2211 = vmatprep.subr.mxu0 %v2116
        %2212 = vmatpush1.msra.mxu0 %v2115
        %2213 = vmatprep.subr.mxu0 0.0
        %2214 = vmatpush2.msra.mxu0 0.0
        %2215 = vmatprep.subr.mxu0 0.0
        %2216 = vmatpush2.msra.mxu0 0.0
        %2217 = vmatprep.subr.mxu0 0.0
        %2218 = vmatpush2.msra.mxu0 0.0
        %2219 = vmatprep.subr.mxu0 0.0
        %2220 = vmatpush2.msra.mxu0 0.0
        %2221 = vmatprep.subr.mxu0 0.0
        %2222 = vmatpush2.msra.mxu0 0.0
        %2223 = vmatprep.subr.mxu0 0.0
        %2224 = vmatpush2.msra.mxu0 0.0
        %2225 = vmatprep.subr.mxu0 0.0
        %2226 = vmatpush2.msra.mxu0 0.0
        %2227 = vmatprep.subr.mxu0 0.0
        %2228 = vmatpush2.msra.mxu0 0.0
        %2229 = vmatprep.subr.mxu0 0.0
        %2230 = vmatpush2.msra.mxu0 0.0
        %2231 = vmatprep.subr.mxu0 0.0
        %2232 = vmatpush2.msra.mxu0 0.0
        %2233 = vmatprep.subr.mxu0 0.0
        %2234 = vmatpush2.msra.mxu0 0.0
        %2235 = vmatprep.subr.mxu0 0.0
        %2236 = vmatpush2.msra.mxu0 0.0
        %2237 = vmatprep.subr.mxu0 0.0
        %2238 = vmatpush2.msra.mxu0 0.0
        %2239 = vmatprep.subr.mxu0 0.0
        %2240 = vmatpush2.msra.mxu0 0.0
        %2241 = vmatprep.subr.mxu0 0.0
        %2242 = vmatpush2.msra.mxu0 0.0
        %2243 = vmatprep.subr.mxu0 0.0
        %2244 = vmatpush2.msra.mxu0 0.0
        %2245 = vmatprep.mubr.f32.mxu0 0.0
        %2246 = vmatmul.mubr.f32.gmra.mxu0 %v2112
        %v2247 = vpop.f32.mrf.mxu0
        %v2248 = vadd.f32 %v2169, %v2247
        %v2249 = vpop.f32.mrf.mxu0
        %v2250 = vadd.f32 %v2173, %v2249
        %2251 = vmatprep.mubr.f32.mxu0 0.0
        %2252 = vmatmul.mubr.f32.gmra.mxu0 %v2113
        %v2253 = vpop.f32.mrf.mxu0
        %v2254 = vadd.f32 %v2169, %v2253
        %v2255 = vpop.f32.mrf.mxu0
        %v2256 = vadd.f32 %v2173, %v2255
        %2257 = vdwg.mxu0
        %2258 = vmatprep.subr.mxu0 0.0
        %2259 = vmatpush1.msra.mxu0 %v2162
        %2260 = vmatprep.subr.mxu0 0.0
        %2261 = vmatpush1.msra.mxu0 %v2159
        %2262 = vmatprep.subr.mxu0 0.0
        %2263 = vmatpush1.msra.mxu0 %v2156
        %2264 = vmatprep.subr.mxu0 0.0
        %2265 = vmatpush1.msra.mxu0 %v2153
        %2266 = vmatprep.subr.mxu0 0.0
        %2267 = vmatpush1.msra.mxu0 %v2150
        %2268 = vmatprep.subr.mxu0 0.0
        %2269 = vmatpush1.msra.mxu0 %v2147
        %2270 = vmatprep.subr.mxu0 0.0
        %2271 = vmatpush1.msra.mxu0 %v2144
        %2272 = vmatprep.subr.mxu0 0.0
        %2273 = vmatpush1.msra.mxu0 %v2141
        %2274 = vmatprep.subr.mxu0 0.0
        %2275 = vmatpush1.msra.mxu0 %v2138
        %2276 = vmatprep.subr.mxu0 0.0
        %2277 = vmatpush1.msra.mxu0 %v2135
        %2278 = vmatprep.subr.mxu0 0.0
        %2279 = vmatpush1.msra.mxu0 %v2132
        %2280 = vmatprep.subr.mxu0 0.0
        %2281 = vmatpush1.msra.mxu0 %v2129
        %2282 = vmatprep.subr.mxu0 0.0
        %2283 = vmatpush1.msra.mxu0 %v2126
        %2284 = vmatprep.subr.mxu0 0.0
        %2285 = vmatpush1.msra.mxu0 %v2123
        %2286 = vmatprep.subr.mxu0 0.0
        %2287 = vmatpush1.msra.mxu0 %v2120
        %2288 = vmatprep.subr.mxu0 0.0
        %2289 = vmatpush1.msra.mxu0 %v2117
        %2290 = vmatprep.subr.mxu0 0.0
        %2291 = vmatpush2.msra.mxu0 0.0
        %2292 = vmatprep.subr.mxu0 0.0
        %2293 = vmatpush2.msra.mxu0 0.0
        %2294 = vmatprep.subr.mxu0 0.0
        %2295 = vmatpush2.msra.mxu0 0.0
        %2296 = vmatprep.subr.mxu0 0.0
        %2297 = vmatpush2.msra.mxu0 0.0
        %2298 = vmatprep.subr.mxu0 0.0
        %2299 = vmatpush2.msra.mxu0 0.0
        %2300 = vmatprep.subr.mxu0 0.0
        %2301 = vmatpush2.msra.mxu0 0.0
        %2302 = vmatprep.subr.mxu0 0.0
        %2303 = vmatpush2.msra.mxu0 0.0
        %2304 = vmatprep.subr.mxu0 0.0
        %2305 = vmatpush2.msra.mxu0 0.0
        %2306 = vmatprep.subr.mxu0 0.0
        %2307 = vmatpush2.msra.mxu0 0.0
        %2308 = vmatprep.subr.mxu0 0.0
        %2309 = vmatpush2.msra.mxu0 0.0
        %2310 = vmatprep.subr.mxu0 0.0
        %2311 = vmatpush2.msra.mxu0 0.0
        %2312 = vmatprep.subr.mxu0 0.0
        %2313 = vmatpush2.msra.mxu0 0.0
        %2314 = vmatprep.subr.mxu0 0.0
        %2315 = vmatpush2.msra.mxu0 0.0
        %2316 = vmatprep.subr.mxu0 0.0
        %2317 = vmatpush2.msra.mxu0 0.0
        %2318 = vmatprep.subr.mxu0 0.0
        %2319 = vmatpush2.msra.mxu0 0.0
        %2320 = vmatprep.subr.mxu0 0.0
        %2321 = vmatpush2.msra.mxu0 0.0
        %2322 = vmatprep.mubr.f32.mxu0 0.0
        %2323 = vmatmul.mubr.f32.gmra.mxu0 %v2112
        %v2324 = vpop.f32.mrf.mxu0
        %v2325 = vadd.f32 %v2177, %v2324
        %v2326 = vpop.f32.mrf.mxu0
        %2327 = vmatprep.mubr.f32.mxu0 0.0
        %2328 = vmatmul.mubr.f32.gmra.mxu0 %v2113
        %v2329 = vpop.f32.mrf.mxu0
        %v2330 = vadd.f32 %v2177, %v2329
        %v2331 = vpop.f32.mrf.mxu0
        %2332 = vdwg.mxu0
        %v2334 = vsel %vm858, %v2248, 0
        %v2337 = vsel %vm858, %v2254, 0
        %v2340 = vsel %vm858, %v2250, 0
        %v2343 = vsel %vm858, %v2256, 0
        %2345 = vmatprep.subr.mxu0 0.0
        %2346 = vmatpush1.xpose.msra.mxu0 0.0
        %2347 = vmatprep.subr.mxu0 0.0
        %2348 = vmatpush1.xpose.msra.mxu0 0.0
        %2349 = vmatprep.subr.mxu0 0.0
        %2350 = vmatpush1.xpose.msra.mxu0 0.0
        %2351 = vmatprep.subr.mxu0 0.0
        %2352 = vmatpush1.xpose.msra.mxu0 0.0
        %2353 = vmatprep.subr.mxu0 0.0
        %2354 = vmatpush1.xpose.msra.mxu0 0.0
        %2355 = vmatprep.subr.mxu0 0.0
        %2356 = vmatpush1.xpose.msra.mxu0 0.0
        %2357 = vmatprep.subr.mxu0 0.0
        %2358 = vmatpush1.xpose.msra.mxu0 0.0
        %2359 = vmatprep.subr.mxu0 0.0
        %2360 = vmatpush1.xpose.msra.mxu0 0.0
        %2361 = vmatprep.subr.mxu0 0.0
        %2362 = vmatpush1.xpose.msra.mxu0 0.0
        %2363 = vmatprep.subr.mxu0 0.0
        %2364 = vmatpush1.xpose.msra.mxu0 0.0
        %2365 = vmatprep.subr.mxu0 0.0
        %2366 = vmatpush1.xpose.msra.mxu0 0.0
        %2367 = vmatprep.subr.mxu0 0.0
        %2368 = vmatpush1.xpose.msra.mxu0 0.0
        %2369 = vmatprep.subr.mxu0 0.0
        %2370 = vmatpush1.xpose.msra.mxu0 0.0
        %2371 = vmatprep.subr.mxu0 0.0
        %2372 = vmatpush1.xpose.msra.mxu0 0.0
        %2373 = vmatprep.subr.mxu0 0.0
        %2374 = vmatpush1.xpose.msra.mxu0 %v2343
        %2375 = vmatprep.subr.mxu0 0.0
        %2376 = vmatpush1.xpose.msra.mxu0 %v2340
        %2377 = vmatprep.subr.mxu0 0.0
        %2378 = vmatpush2.xpose.msra.mxu0 0.0
        %2379 = vmatprep.subr.mxu0 0.0
        %2380 = vmatpush2.xpose.msra.mxu0 0.0
        %2381 = vmatprep.subr.mxu0 0.0
        %2382 = vmatpush2.xpose.msra.mxu0 0.0
        %2383 = vmatprep.subr.mxu0 0.0
        %2384 = vmatpush2.xpose.msra.mxu0 0.0
        %2385 = vmatprep.subr.mxu0 0.0
        %2386 = vmatpush2.xpose.msra.mxu0 0.0
        %2387 = vmatprep.subr.mxu0 0.0
        %2388 = vmatpush2.xpose.msra.mxu0 0.0
        %2389 = vmatprep.subr.mxu0 0.0
        %2390 = vmatpush2.xpose.msra.mxu0 0.0
        %2391 = vmatprep.subr.mxu0 0.0
        %2392 = vmatpush2.xpose.msra.mxu0 0.0
        %2393 = vmatprep.subr.mxu0 0.0
        %2394 = vmatpush2.xpose.msra.mxu0 0.0
        %2395 = vmatprep.subr.mxu0 0.0
        %2396 = vmatpush2.xpose.msra.mxu0 0.0
        %2397 = vmatprep.subr.mxu0 0.0
        %2398 = vmatpush2.xpose.msra.mxu0 0.0
        %2399 = vmatprep.subr.mxu0 0.0
        %2400 = vmatpush2.xpose.msra.mxu0 0.0
        %2401 = vmatprep.subr.mxu0 0.0
        %2402 = vmatpush2.xpose.msra.mxu0 0.0
        %2403 = vmatprep.subr.mxu0 0.0
        %2404 = vmatpush2.xpose.msra.mxu0 0.0
        %2405 = vmatprep.subr.mxu0 0.0
        %2406 = vmatpush2.xpose.msra.mxu0 0.0
        %2407 = vmatprep.subr.mxu0 0.0
        %2408 = vmatpush2.xpose.msra.mxu0 0.0
        %2409 = vmatprep.mubr.f32.mxu0 0.0
        %2410 = vmatmul.mubr.f32.gmra.mxu0 %v2334
        %v2411 = vpop.f32.mrf.mxu0
        %v2412 = vadd.f32 0.0, %v2411
        %v2413 = vpop.f32.mrf.mxu0
        %2414 = vmatprep.mubr.f32.mxu0 0.0
        %2415 = vmatmul.mubr.f32.gmra.mxu0 %v2337
        %v2416 = vpop.f32.mrf.mxu0
        %v2417 = vadd.f32 0.0, %v2416
        %v2418 = vpop.f32.mrf.mxu0
        %2419 = vdwg.mxu0
        %v2420 = vmul.f32 %v2412, 0.17677669
        %v2421 = vmul.f32 %v2417, 0.17677669
        %v2422 = vsel %vm948, %v2420, -inf
        %2423 = vmax.xlane.f32.xlu0 %v2422
        %v2424 = vpop.xlane.xlu0 %2423
        %v2425 = vsel %vm948, %v2421, -inf
        %2426 = vmax.xlane.f32.xlu0 %v2425
        %v2427 = vpop.xlane.xlu0 %2426
        %v2428 = vsub.f32 %v2420, %v2424
        %v2429 = vsub.f32 %v2421, %v2427
        %v2430 = vmul.f32 %v2428, 1.442695
        %v2431 = vpow.pop %v2430
        %v2432 = vmul.f32 %v2429, 1.442695
        %v2433 = vpow.pop %v2432
        %v2434 = vsel %vm948, %v2431, 0.0
        %2435 = vadd.xlane.f32.xlu0 %v2434
        %v2436 = vpop.xlane.xlu0 %2435
        %v2437 = vsel %vm948, %v2433, 0.0
        %2438 = vadd.xlane.f32.xlu0 %v2437
        %v2439 = vpop.xlane.xlu0 %2438
        %v2440 = vrcp.pop %v2436
        %v2441 = vmul.f32 %v2431, %v2440
        %v2442 = vrcp.pop %v2439
        %v2443 = vmul.f32 %v2433, %v2442
        %v2445 = vsel %vm948, %v2441, 0
        %v2448 = vsel %vm948, %v2443, 0
        %2450 = vmatprep.subr.mxu0 0.0
        %2451 = vmatpush1.msra.mxu0 0.0
        %2452 = vmatprep.subr.mxu0 0.0
        %2453 = vmatpush1.msra.mxu0 0.0
        %2454 = vmatprep.subr.mxu0 0.0
        %2455 = vmatpush1.msra.mxu0 0.0
        %2456 = vmatprep.subr.mxu0 0.0
        %2457 = vmatpush1.msra.mxu0 0.0
        %2458 = vmatprep.subr.mxu0 0.0
        %2459 = vmatpush1.msra.mxu0 0.0
        %2460 = vmatprep.subr.mxu0 0.0
        %2461 = vmatpush1.msra.mxu0 0.0
        %2462 = vmatprep.subr.mxu0 0.0
        %2463 = vmatpush1.msra.mxu0 0.0
        %2464 = vmatprep.subr.mxu0 0.0
        %2465 = vmatpush1.msra.mxu0 0.0
        %2466 = vmatprep.subr.mxu0 0.0
        %2467 = vmatpush1.msra.mxu0 0.0
        %2468 = vmatprep.subr.mxu0 0.0
        %2469 = vmatpush1.msra.mxu0 0.0
        %2470 = vmatprep.subr.mxu0 0.0
        %2471 = vmatpush1.msra.mxu0 0.0
        %2472 = vmatprep.subr.mxu0 0.0
        %2473 = vmatpush1.msra.mxu0 0.0
        %2474 = vmatprep.subr.mxu0 0.0
        %2475 = vmatpush1.msra.mxu0 0.0
        %2476 = vmatprep.subr.mxu0 0.0
        %2477 = vmatpush1.msra.mxu0 0.0
        %2478 = vmatprep.subr.mxu0 0.0
        %2479 = vmatpush1.msra.mxu0 %v2330
        %2480 = vmatprep.subr.mxu0 0.0
        %2481 = vmatpush1.msra.mxu0 %v2325
        %2482 = vmatprep.subr.mxu0 0.0
        %2483 = vmatpush2.msra.mxu0 0.0
        %2484 = vmatprep.subr.mxu0 0.0
        %2485 = vmatpush2.msra.mxu0 0.0
        %2486 = vmatprep.subr.mxu0 0.0
        %2487 = vmatpush2.msra.mxu0 0.0
        %2488 = vmatprep.subr.mxu0 0.0
        %2489 = vmatpush2.msra.mxu0 0.0
        %2490 = vmatprep.subr.mxu0 0.0
        %2491 = vmatpush2.msra.mxu0 0.0
        %2492 = vmatprep.subr.mxu0 0.0
        %2493 = vmatpush2.msra.mxu0 0.0
        %2494 = vmatprep.subr.mxu0 0.0
        %2495 = vmatpush2.msra.mxu0 0.0
        %2496 = vmatprep.subr.mxu0 0.0
        %2497 = vmatpush2.msra.mxu0 0.0
        %2498 = vmatprep.subr.mxu0 0.0
        %2499 = vmatpush2.msra.mxu0 0.0
        %2500 = vmatprep.subr.mxu0 0.0
        %2501 = vmatpush2.msra.mxu0 0.0
        %2502 = vmatprep.subr.mxu0 0.0
        %2503 = vmatpush2.msra.mxu0 0.0
        %2504 = vmatprep.subr.mxu0 0.0
        %2505 = vmatpush2.msra.mxu0 0.0
        %2506 = vmatprep.subr.mxu0 0.0
        %2507 = vmatpush2.msra.mxu0 0.0
        %2508 = vmatprep.subr.mxu0 0.0
        %2509 = vmatpush2.msra.mxu0 0.0
        %2510 = vmatprep.subr.mxu0 0.0
        %2511 = vmatpush2.msra.mxu0 0.0
        %2512 = vmatprep.subr.mxu0 0.0
        %2513 = vmatpush2.msra.mxu0 0.0
        %2514 = vmatprep.mubr.f32.mxu0 0.0
        %2515 = vmatmul.mubr.f32.gmra.mxu0 %v2445
        %v2516 = vpop.f32.mrf.mxu0
        %v2517 = vadd.f32 0.0, %v2516
        %v2518 = vpop.f32.mrf.mxu0
        %2519 = vmatprep.mubr.f32.mxu0 0.0
        %2520 = vmatmul.mubr.f32.gmra.mxu0 %v2448
        %v2521 = vpop.f32.mrf.mxu0
        %v2522 = vadd.f32 0.0, %v2521
        %v2523 = vpop.f32.mrf.mxu0
        %2524 = vdwg.mxu0
        %2525 = vrot.lane.b32.xlu0 %v2248, 96
        %v2526 = vpop.permute.xlu0 %2525
        %2527 = vrot.lane.b32.xlu0 %v2254, 96
        %v2528 = vpop.permute.xlu0 %2527
        %2529 = vrot.lane.b32.xlu0 %v2250, 96
        %v2530 = vpop.permute.xlu0 %2529
        %2531 = vrot.lane.b32.xlu0 %v2256, 96
        %v2532 = vpop.permute.xlu0 %2531
        %v2533 = vsel %vm858, %v2526, 0
        %v2535 = vsel %vm858, %v2528, 0
        %v2537 = vsel %vm858, %v2530, 0
        %v2539 = vsel %vm858, %v2532, 0
        %2541 = vmatprep.subr.mxu0 0.0
        %2542 = vmatpush1.xpose.msra.mxu0 0.0
        %2543 = vmatprep.subr.mxu0 0.0
        %2544 = vmatpush1.xpose.msra.mxu0 0.0
        %2545 = vmatprep.subr.mxu0 0.0
        %2546 = vmatpush1.xpose.msra.mxu0 0.0
        %2547 = vmatprep.subr.mxu0 0.0
        %2548 = vmatpush1.xpose.msra.mxu0 0.0
        %2549 = vmatprep.subr.mxu0 0.0
        %2550 = vmatpush1.xpose.msra.mxu0 0.0
        %2551 = vmatprep.subr.mxu0 0.0
        %2552 = vmatpush1.xpose.msra.mxu0 0.0
        %2553 = vmatprep.subr.mxu0 0.0
        %2554 = vmatpush1.xpose.msra.mxu0 0.0
        %2555 = vmatprep.subr.mxu0 0.0
        %2556 = vmatpush1.xpose.msra.mxu0 0.0
        %2557 = vmatprep.subr.mxu0 0.0
        %2558 = vmatpush1.xpose.msra.mxu0 0.0
        %2559 = vmatprep.subr.mxu0 0.0
        %2560 = vmatpush1.xpose.msra.mxu0 0.0
        %2561 = vmatprep.subr.mxu0 0.0
        %2562 = vmatpush1.xpose.msra.mxu0 0.0
        %2563 = vmatprep.subr.mxu0 0.0
        %2564 = vmatpush1.xpose.msra.mxu0 0.0
        %2565 = vmatprep.subr.mxu0 0.0
        %2566 = vmatpush1.xpose.msra.mxu0 0.0
        %2567 = vmatprep.subr.mxu0 0.0
        %2568 = vmatpush1.xpose.msra.mxu0 0.0
        %2569 = vmatprep.subr.mxu0 0.0
        %2570 = vmatpush1.xpose.msra.mxu0 %v2539
        %2571 = vmatprep.subr.mxu0 0.0
        %2572 = vmatpush1.xpose.msra.mxu0 %v2537
        %2573 = vmatprep.subr.mxu0 0.0
        %2574 = vmatpush2.xpose.msra.mxu0 0.0
        %2575 = vmatprep.subr.mxu0 0.0
        %2576 = vmatpush2.xpose.msra.mxu0 0.0
        %2577 = vmatprep.subr.mxu0 0.0
        %2578 = vmatpush2.xpose.msra.mxu0 0.0
        %2579 = vmatprep.subr.mxu0 0.0
        %2580 = vmatpush2.xpose.msra.mxu0 0.0
        %2581 = vmatprep.subr.mxu0 0.0
        %2582 = vmatpush2.xpose.msra.mxu0 0.0
        %2583 = vmatprep.subr.mxu0 0.0
        %2584 = vmatpush2.xpose.msra.mxu0 0.0
        %2585 = vmatprep.subr.mxu0 0.0
        %2586 = vmatpush2.xpose.msra.mxu0 0.0
        %2587 = vmatprep.subr.mxu0 0.0
        %2588 = vmatpush2.xpose.msra.mxu0 0.0
        %2589 = vmatprep.subr.mxu0 0.0
        %2590 = vmatpush2.xpose.msra.mxu0 0.0
        %2591 = vmatprep.subr.mxu0 0.0
        %2592 = vmatpush2.xpose.msra.mxu0 0.0
        %2593 = vmatprep.subr.mxu0 0.0
        %2594 = vmatpush2.xpose.msra.mxu0 0.0
        %2595 = vmatprep.subr.mxu0 0.0
        %2596 = vmatpush2.xpose.msra.mxu0 0.0
        %2597 = vmatprep.subr.mxu0 0.0
        %2598 = vmatpush2.xpose.msra.mxu0 0.0
        %2599 = vmatprep.subr.mxu0 0.0
        %2600 = vmatpush2.xpose.msra.mxu0 0.0
        %2601 = vmatprep.subr.mxu0 0.0
        %2602 = vmatpush2.xpose.msra.mxu0 0.0
        %2603 = vmatprep.subr.mxu0 0.0
        %2604 = vmatpush2.xpose.msra.mxu0 0.0
        %2605 = vmatprep.mubr.f32.mxu0 0.0
        %2606 = vmatmul.mubr.f32.gmra.mxu0 %v2533
        %v2607 = vpop.f32.mrf.mxu0
        %v2608 = vadd.f32 0.0, %v2607
        %v2609 = vpop.f32.mrf.mxu0
        %2610 = vmatprep.mubr.f32.mxu0 0.0
        %2611 = vmatmul.mubr.f32.gmra.mxu0 %v2535
        %v2612 = vpop.f32.mrf.mxu0
        %v2613 = vadd.f32 0.0, %v2612
        %v2614 = vpop.f32.mrf.mxu0
        %2615 = vdwg.mxu0
        %v2616 = vmul.f32 %v2608, 0.17677669
        %v2617 = vmul.f32 %v2613, 0.17677669
        %v2618 = vsel %vm948, %v2616, -inf
        %2619 = vmax.xlane.f32.xlu0 %v2618
        %v2620 = vpop.xlane.xlu0 %2619
        %v2621 = vsel %vm948, %v2617, -inf
        %2622 = vmax.xlane.f32.xlu0 %v2621
        %v2623 = vpop.xlane.xlu0 %2622
        %v2624 = vsub.f32 %v2616, %v2620
        %v2625 = vsub.f32 %v2617, %v2623
        %v2626 = vmul.f32 %v2624, 1.442695
        %v2627 = vpow.pop %v2626
        %v2628 = vmul.f32 %v2625, 1.442695
        %v2629 = vpow.pop %v2628
        %v2630 = vsel %vm948, %v2627, 0.0
        %2631 = vadd.xlane.f32.xlu0 %v2630
        %v2632 = vpop.xlane.xlu0 %2631
        %v2633 = vsel %vm948, %v2629, 0.0
        %2634 = vadd.xlane.f32.xlu0 %v2633
        %v2635 = vpop.xlane.xlu0 %2634
        %v2636 = vrcp.pop %v2632
        %v2637 = vmul.f32 %v2627, %v2636
        %v2638 = vrcp.pop %v2635
        %v2639 = vmul.f32 %v2629, %v2638
        %2642 = vrot.lane.b32.xlu0 %v2325, 96
        %v2643 = vpop.permute.xlu0 %2642
        %2644 = vrot.lane.b32.xlu0 %v2330, 96
        %v2645 = vpop.permute.xlu0 %2644
        %v2649 = vsel %vm948, %v2637, 0
        %v2652 = vsel %vm948, %v2639, 0
        %2654 = vmatprep.subr.mxu0 0.0
        %2655 = vmatpush1.msra.mxu0 0.0
        %2656 = vmatprep.subr.mxu0 0.0
        %2657 = vmatpush1.msra.mxu0 0.0
        %2658 = vmatprep.subr.mxu0 0.0
        %2659 = vmatpush1.msra.mxu0 0.0
        %2660 = vmatprep.subr.mxu0 0.0
        %2661 = vmatpush1.msra.mxu0 0.0
        %2662 = vmatprep.subr.mxu0 0.0
        %2663 = vmatpush1.msra.mxu0 0.0
        %2664 = vmatprep.subr.mxu0 0.0
        %2665 = vmatpush1.msra.mxu0 0.0
        %2666 = vmatprep.subr.mxu0 0.0
        %2667 = vmatpush1.msra.mxu0 0.0
        %2668 = vmatprep.subr.mxu0 0.0
        %2669 = vmatpush1.msra.mxu0 0.0
        %2670 = vmatprep.subr.mxu0 0.0
        %2671 = vmatpush1.msra.mxu0 0.0
        %2672 = vmatprep.subr.mxu0 0.0
        %2673 = vmatpush1.msra.mxu0 0.0
        %2674 = vmatprep.subr.mxu0 0.0
        %2675 = vmatpush1.msra.mxu0 0.0
        %2676 = vmatprep.subr.mxu0 0.0
        %2677 = vmatpush1.msra.mxu0 0.0
        %2678 = vmatprep.subr.mxu0 0.0
        %2679 = vmatpush1.msra.mxu0 0.0
        %2680 = vmatprep.subr.mxu0 0.0
        %2681 = vmatpush1.msra.mxu0 0.0
        %2682 = vmatprep.subr.mxu0 0.0
        %2683 = vmatpush1.msra.mxu0 %v2645
        %2684 = vmatprep.subr.mxu0 0.0
        %2685 = vmatpush1.msra.mxu0 %v2643
        %2686 = vmatprep.subr.mxu0 0.0
        %2687 = vmatpush2.msra.mxu0 0.0
        %2688 = vmatprep.subr.mxu0 0.0
        %2689 = vmatpush2.msra.mxu0 0.0
        %2690 = vmatprep.subr.mxu0 0.0
        %2691 = vmatpush2.msra.mxu0 0.0
        %2692 = vmatprep.subr.mxu0 0.0
        %2693 = vmatpush2.msra.mxu0 0.0
        %2694 = vmatprep.subr.mxu0 0.0
        %2695 = vmatpush2.msra.mxu0 0.0
        %2696 = vmatprep.subr.mxu0 0.0
        %2697 = vmatpush2.msra.mxu0 0.0
        %2698 = vmatprep.subr.mxu0 0.0
        %2699 = vmatpush2.msra.mxu0 0.0
        %2700 = vmatprep.subr.mxu0 0.0
        %2701 = vmatpush2.msra.mxu0 0.0
        %2702 = vmatprep.subr.mxu0 0.0
        %2703 = vmatpush2.msra.mxu0 0.0
        %2704 = vmatprep.subr.mxu0 0.0
        %2705 = vmatpush2.msra.mxu0 0.0
        %2706 = vmatprep.subr.mxu0 0.0
        %2707 = vmatpush2.msra.mxu0 0.0
        %2708 = vmatprep.subr.mxu0 0.0
        %2709 = vmatpush2.msra.mxu0 0.0
        %2710 = vmatprep.subr.mxu0 0.0
        %2711 = vmatpush2.msra.mxu0 0.0
        %2712 = vmatprep.subr.mxu0 0.0
        %2713 = vmatpush2.msra.mxu0 0.0
        %2714 = vmatprep.subr.mxu0 0.0
        %2715 = vmatpush2.msra.mxu0 0.0
        %2716 = vmatprep.subr.mxu0 0.0
        %2717 = vmatpush2.msra.mxu0 0.0
        %2718 = vmatprep.mubr.f32.mxu0 0.0
        %2719 = vmatmul.mubr.f32.gmra.mxu0 %v2649
        %v2720 = vpop.f32.mrf.mxu0
        %v2721 = vadd.f32 0.0, %v2720
        %v2722 = vpop.f32.mrf.mxu0
        %2723 = vmatprep.mubr.f32.mxu0 0.0
        %2724 = vmatmul.mubr.f32.gmra.mxu0 %v2652
        %v2725 = vpop.f32.mrf.mxu0
        %v2726 = vadd.f32 0.0, %v2725
        %v2727 = vpop.f32.mrf.mxu0
        %2728 = vdwg.mxu0
        %2729 = vrot.lane.b32.xlu0 %v2248, 64
        %v2730 = vpop.permute.xlu0 %2729
        %2731 = vrot.lane.b32.xlu0 %v2254, 64
        %v2732 = vpop.permute.xlu0 %2731
        %2733 = vrot.lane.b32.xlu0 %v2250, 64
        %v2734 = vpop.permute.xlu0 %2733
        %2735 = vrot.lane.b32.xlu0 %v2256, 64
        %v2736 = vpop.permute.xlu0 %2735
        %v2737 = vsel %vm858, %v2730, 0
        %v2739 = vsel %vm858, %v2732, 0
        %v2741 = vsel %vm858, %v2734, 0
        %v2743 = vsel %vm858, %v2736, 0
        %2745 = vmatprep.subr.mxu0 0.0
        %2746 = vmatpush1.xpose.msra.mxu0 0.0
        %2747 = vmatprep.subr.mxu0 0.0
        %2748 = vmatpush1.xpose.msra.mxu0 0.0
        %2749 = vmatprep.subr.mxu0 0.0
        %2750 = vmatpush1.xpose.msra.mxu0 0.0
        %2751 = vmatprep.subr.mxu0 0.0
        %2752 = vmatpush1.xpose.msra.mxu0 0.0
        %2753 = vmatprep.subr.mxu0 0.0
        %2754 = vmatpush1.xpose.msra.mxu0 0.0
        %2755 = vmatprep.subr.mxu0 0.0
        %2756 = vmatpush1.xpose.msra.mxu0 0.0
        %2757 = vmatprep.subr.mxu0 0.0
        %2758 = vmatpush1.xpose.msra.mxu0 0.0
        %2759 = vmatprep.subr.mxu0 0.0
        %2760 = vmatpush1.xpose.msra.mxu0 0.0
        %2761 = vmatprep.subr.mxu0 0.0
        %2762 = vmatpush1.xpose.msra.mxu0 0.0
        %2763 = vmatprep.subr.mxu0 0.0
        %2764 = vmatpush1.xpose.msra.mxu0 0.0
        %2765 = vmatprep.subr.mxu0 0.0
        %2766 = vmatpush1.xpose.msra.mxu0 0.0
        %2767 = vmatprep.subr.mxu0 0.0
        %2768 = vmatpush1.xpose.msra.mxu0 0.0
        %2769 = vmatprep.subr.mxu0 0.0
        %2770 = vmatpush1.xpose.msra.mxu0 0.0
        %2771 = vmatprep.subr.mxu0 0.0
        %2772 = vmatpush1.xpose.msra.mxu0 0.0
        %2773 = vmatprep.subr.mxu0 0.0
        %2774 = vmatpush1.xpose.msra.mxu0 %v2743
        %2775 = vmatprep.subr.mxu0 0.0
        %2776 = vmatpush1.xpose.msra.mxu0 %v2741
        %2777 = vmatprep.subr.mxu0 0.0
        %2778 = vmatpush2.xpose.msra.mxu0 0.0
        %2779 = vmatprep.subr.mxu0 0.0
        %2780 = vmatpush2.xpose.msra.mxu0 0.0
        %2781 = vmatprep.subr.mxu0 0.0
        %2782 = vmatpush2.xpose.msra.mxu0 0.0
        %2783 = vmatprep.subr.mxu0 0.0
        %2784 = vmatpush2.xpose.msra.mxu0 0.0
        %2785 = vmatprep.subr.mxu0 0.0
        %2786 = vmatpush2.xpose.msra.mxu0 0.0
        %2787 = vmatprep.subr.mxu0 0.0
        %2788 = vmatpush2.xpose.msra.mxu0 0.0
        %2789 = vmatprep.subr.mxu0 0.0
        %2790 = vmatpush2.xpose.msra.mxu0 0.0
        %2791 = vmatprep.subr.mxu0 0.0
        %2792 = vmatpush2.xpose.msra.mxu0 0.0
        %2793 = vmatprep.subr.mxu0 0.0
        %2794 = vmatpush2.xpose.msra.mxu0 0.0
        %2795 = vmatprep.subr.mxu0 0.0
        %2796 = vmatpush2.xpose.msra.mxu0 0.0
        %2797 = vmatprep.subr.mxu0 0.0
        %2798 = vmatpush2.xpose.msra.mxu0 0.0
        %2799 = vmatprep.subr.mxu0 0.0
        %2800 = vmatpush2.xpose.msra.mxu0 0.0
        %2801 = vmatprep.subr.mxu0 0.0
        %2802 = vmatpush2.xpose.msra.mxu0 0.0
        %2803 = vmatprep.subr.mxu0 0.0
        %2804 = vmatpush2.xpose.msra.mxu0 0.0
        %2805 = vmatprep.subr.mxu0 0.0
        %2806 = vmatpush2.xpose.msra.mxu0 0.0
        %2807 = vmatprep.subr.mxu0 0.0
        %2808 = vmatpush2.xpose.msra.mxu0 0.0
        %2809 = vmatprep.mubr.f32.mxu0 0.0
        %2810 = vmatmul.mubr.f32.gmra.mxu0 %v2737
        %v2811 = vpop.f32.mrf.mxu0
        %v2812 = vadd.f32 0.0, %v2811
        %v2813 = vpop.f32.mrf.mxu0
        %2814 = vmatprep.mubr.f32.mxu0 0.0
        %2815 = vmatmul.mubr.f32.gmra.mxu0 %v2739
        %v2816 = vpop.f32.mrf.mxu0
        %v2817 = vadd.f32 0.0, %v2816
        %v2818 = vpop.f32.mrf.mxu0
        %2819 = vdwg.mxu0
        %v2820 = vmul.f32 %v2812, 0.17677669
        %v2821 = vmul.f32 %v2817, 0.17677669
        %v2822 = vsel %vm948, %v2820, -inf
        %2823 = vmax.xlane.f32.xlu0 %v2822
        %v2824 = vpop.xlane.xlu0 %2823
        %v2825 = vsel %vm948, %v2821, -inf
        %2826 = vmax.xlane.f32.xlu0 %v2825
        %v2827 = vpop.xlane.xlu0 %2826
        %v2828 = vsub.f32 %v2820, %v2824
        %v2829 = vsub.f32 %v2821, %v2827
        %v2830 = vmul.f32 %v2828, 1.442695
        %v2831 = vpow.pop %v2830
        %v2832 = vmul.f32 %v2829, 1.442695
        %v2833 = vpow.pop %v2832
        %v2834 = vsel %vm948, %v2831, 0.0
        %2835 = vadd.xlane.f32.xlu0 %v2834
        %v2836 = vpop.xlane.xlu0 %2835
        %v2837 = vsel %vm948, %v2833, 0.0
        %2838 = vadd.xlane.f32.xlu0 %v2837
        %v2839 = vpop.xlane.xlu0 %2838
        %v2840 = vrcp.pop %v2836
        %v2841 = vmul.f32 %v2831, %v2840
        %v2842 = vrcp.pop %v2839
        %v2843 = vmul.f32 %v2833, %v2842
        %2844 = vrot.lane.b32.xlu0 %v2325, 64
        %v2845 = vpop.permute.xlu0 %2844
        %2846 = vrot.lane.b32.xlu0 %v2330, 64
        %v2847 = vpop.permute.xlu0 %2846
        %v2851 = vsel %vm948, %v2841, 0
        %v2854 = vsel %vm948, %v2843, 0
        %2856 = vmatprep.subr.mxu0 0.0
        %2857 = vmatpush1.msra.mxu0 0.0
        %2858 = vmatprep.subr.mxu0 0.0
        %2859 = vmatpush1.msra.mxu0 0.0
        %2860 = vmatprep.subr.mxu0 0.0
        %2861 = vmatpush1.msra.mxu0 0.0
        %2862 = vmatprep.subr.mxu0 0.0
        %2863 = vmatpush1.msra.mxu0 0.0
        %2864 = vmatprep.subr.mxu0 0.0
        %2865 = vmatpush1.msra.mxu0 0.0
        %2866 = vmatprep.subr.mxu0 0.0
        %2867 = vmatpush1.msra.mxu0 0.0
        %2868 = vmatprep.subr.mxu0 0.0
        %2869 = vmatpush1.msra.mxu0 0.0
        %2870 = vmatprep.subr.mxu0 0.0
        %2871 = vmatpush1.msra.mxu0 0.0
        %2872 = vmatprep.subr.mxu0 0.0
        %2873 = vmatpush1.msra.mxu0 0.0
        %2874 = vmatprep.subr.mxu0 0.0
        %2875 = vmatpush1.msra.mxu0 0.0
        %2876 = vmatprep.subr.mxu0 0.0
        %2877 = vmatpush1.msra.mxu0 0.0
        %2878 = vmatprep.subr.mxu0 0.0
        %2879 = vmatpush1.msra.mxu0 0.0
        %2880 = vmatprep.subr.mxu0 0.0
        %2881 = vmatpush1.msra.mxu0 0.0
        %2882 = vmatprep.subr.mxu0 0.0
        %2883 = vmatpush1.msra.mxu0 0.0
        %2884 = vmatprep.subr.mxu0 0.0
        %2885 = vmatpush1.msra.mxu0 %v2847
        %2886 = vmatprep.subr.mxu0 0.0
        %2887 = vmatpush1.msra.mxu0 %v2845
        %2888 = vmatprep.subr.mxu0 0.0
        %2889 = vmatpush2.msra.mxu0 0.0
        %2890 = vmatprep.subr.mxu0 0.0
        %2891 = vmatpush2.msra.mxu0 0.0
        %2892 = vmatprep.subr.mxu0 0.0
        %2893 = vmatpush2.msra.mxu0 0.0
        %2894 = vmatprep.subr.mxu0 0.0
        %2895 = vmatpush2.msra.mxu0 0.0
        %2896 = vmatprep.subr.mxu0 0.0
        %2897 = vmatpush2.msra.mxu0 0.0
        %2898 = vmatprep.subr.mxu0 0.0
        %2899 = vmatpush2.msra.mxu0 0.0
        %2900 = vmatprep.subr.mxu0 0.0
        %2901 = vmatpush2.msra.mxu0 0.0
        %2902 = vmatprep.subr.mxu0 0.0
        %2903 = vmatpush2.msra.mxu0 0.0
        %2904 = vmatprep.subr.mxu0 0.0
        %2905 = vmatpush2.msra.mxu0 0.0
        %2906 = vmatprep.subr.mxu0 0.0
        %2907 = vmatpush2.msra.mxu0 0.0
        %2908 = vmatprep.subr.mxu0 0.0
        %2909 = vmatpush2.msra.mxu0 0.0
        %2910 = vmatprep.subr.mxu0 0.0
        %2911 = vmatpush2.msra.mxu0 0.0
        %2912 = vmatprep.subr.mxu0 0.0
        %2913 = vmatpush2.msra.mxu0 0.0
        %2914 = vmatprep.subr.mxu0 0.0
        %2915 = vmatpush2.msra.mxu0 0.0
        %2916 = vmatprep.subr.mxu0 0.0
        %2917 = vmatpush2.msra.mxu0 0.0
        %2918 = vmatprep.subr.mxu0 0.0
        %2919 = vmatpush2.msra.mxu0 0.0
        %2920 = vmatprep.mubr.f32.mxu0 0.0
        %2921 = vmatmul.mubr.f32.gmra.mxu0 %v2851
        %v2922 = vpop.f32.mrf.mxu0
        %v2923 = vadd.f32 0.0, %v2922
        %v2924 = vpop.f32.mrf.mxu0
        %2925 = vmatprep.mubr.f32.mxu0 0.0
        %2926 = vmatmul.mubr.f32.gmra.mxu0 %v2854
        %v2927 = vpop.f32.mrf.mxu0
        %v2928 = vadd.f32 0.0, %v2927
        %v2929 = vpop.f32.mrf.mxu0
        %2930 = vdwg.mxu0
        %2931 = vrot.lane.b32.xlu0 %v2248, 32
        %v2932 = vpop.permute.xlu0 %2931
        %2933 = vrot.lane.b32.xlu0 %v2254, 32
        %v2934 = vpop.permute.xlu0 %2933
        %2935 = vrot.lane.b32.xlu0 %v2250, 32
        %v2936 = vpop.permute.xlu0 %2935
        %2937 = vrot.lane.b32.xlu0 %v2256, 32
        %v2938 = vpop.permute.xlu0 %2937
        %v2939 = vsel %vm858, %v2932, 0
        %v2941 = vsel %vm858, %v2934, 0
        %v2943 = vsel %vm858, %v2936, 0
        %v2945 = vsel %vm858, %v2938, 0
        %2947 = vmatprep.subr.mxu0 0.0
        %2948 = vmatpush1.xpose.msra.mxu0 0.0
        %2949 = vmatprep.subr.mxu0 0.0
        %2950 = vmatpush1.xpose.msra.mxu0 0.0
        %2951 = vmatprep.subr.mxu0 0.0
        %2952 = vmatpush1.xpose.msra.mxu0 0.0
        %2953 = vmatprep.subr.mxu0 0.0
        %2954 = vmatpush1.xpose.msra.mxu0 0.0
        %2955 = vmatprep.subr.mxu0 0.0
        %2956 = vmatpush1.xpose.msra.mxu0 0.0
        %2957 = vmatprep.subr.mxu0 0.0
        %2958 = vmatpush1.xpose.msra.mxu0 0.0
        %2959 = vmatprep.subr.mxu0 0.0
        %2960 = vmatpush1.xpose.msra.mxu0 0.0
        %2961 = vmatprep.subr.mxu0 0.0
        %2962 = vmatpush1.xpose.msra.mxu0 0.0
        %2963 = vmatprep.subr.mxu0 0.0
        %2964 = vmatpush1.xpose.msra.mxu0 0.0
        %2965 = vmatprep.subr.mxu0 0.0
        %2966 = vmatpush1.xpose.msra.mxu0 0.0
        %2967 = vmatprep.subr.mxu0 0.0
        %2968 = vmatpush1.xpose.msra.mxu0 0.0
        %2969 = vmatprep.subr.mxu0 0.0
        %2970 = vmatpush1.xpose.msra.mxu0 0.0
        %2971 = vmatprep.subr.mxu0 0.0
        %2972 = vmatpush1.xpose.msra.mxu0 0.0
        %2973 = vmatprep.subr.mxu0 0.0
        %2974 = vmatpush1.xpose.msra.mxu0 0.0
        %2975 = vmatprep.subr.mxu0 0.0
        %2976 = vmatpush1.xpose.msra.mxu0 %v2945
        %2977 = vmatprep.subr.mxu0 0.0
        %2978 = vmatpush1.xpose.msra.mxu0 %v2943
        %2979 = vmatprep.subr.mxu0 0.0
        %2980 = vmatpush2.xpose.msra.mxu0 0.0
        %2981 = vmatprep.subr.mxu0 0.0
        %2982 = vmatpush2.xpose.msra.mxu0 0.0
        %2983 = vmatprep.subr.mxu0 0.0
        %2984 = vmatpush2.xpose.msra.mxu0 0.0
        %2985 = vmatprep.subr.mxu0 0.0
        %2986 = vmatpush2.xpose.msra.mxu0 0.0
        %2987 = vmatprep.subr.mxu0 0.0
        %2988 = vmatpush2.xpose.msra.mxu0 0.0
        %2989 = vmatprep.subr.mxu0 0.0
        %2990 = vmatpush2.xpose.msra.mxu0 0.0
        %2991 = vmatprep.subr.mxu0 0.0
        %2992 = vmatpush2.xpose.msra.mxu0 0.0
        %2993 = vmatprep.subr.mxu0 0.0
        %2994 = vmatpush2.xpose.msra.mxu0 0.0
        %2995 = vmatprep.subr.mxu0 0.0
        %2996 = vmatpush2.xpose.msra.mxu0 0.0
        %2997 = vmatprep.subr.mxu0 0.0
        %2998 = vmatpush2.xpose.msra.mxu0 0.0
        %2999 = vmatprep.subr.mxu0 0.0
        %3000 = vmatpush2.xpose.msra.mxu0 0.0
        %3001 = vmatprep.subr.mxu0 0.0
        %3002 = vmatpush2.xpose.msra.mxu0 0.0
        %3003 = vmatprep.subr.mxu0 0.0
        %3004 = vmatpush2.xpose.msra.mxu0 0.0
        %3005 = vmatprep.subr.mxu0 0.0
        %3006 = vmatpush2.xpose.msra.mxu0 0.0
        %3007 = vmatprep.subr.mxu0 0.0
        %3008 = vmatpush2.xpose.msra.mxu0 0.0
        %3009 = vmatprep.subr.mxu0 0.0
        %3010 = vmatpush2.xpose.msra.mxu0 0.0
        %3011 = vmatprep.mubr.f32.mxu0 0.0
        %3012 = vmatmul.mubr.f32.gmra.mxu0 %v2939
        %v3013 = vpop.f32.mrf.mxu0
        %v3014 = vadd.f32 0.0, %v3013
        %v3015 = vpop.f32.mrf.mxu0
        %3016 = vmatprep.mubr.f32.mxu0 0.0
        %3017 = vmatmul.mubr.f32.gmra.mxu0 %v2941
        %v3018 = vpop.f32.mrf.mxu0
        %v3019 = vadd.f32 0.0, %v3018
        %v3020 = vpop.f32.mrf.mxu0
        %3021 = vdwg.mxu0
        %v3022 = vmul.f32 %v3014, 0.17677669
        %v3023 = vmul.f32 %v3019, 0.17677669
        %v3024 = vsel %vm948, %v3022, -inf
        %3025 = vmax.xlane.f32.xlu0 %v3024
        %v3026 = vpop.xlane.xlu0 %3025
        %v3027 = vsel %vm948, %v3023, -inf
        %3028 = vmax.xlane.f32.xlu0 %v3027
        %v3029 = vpop.xlane.xlu0 %3028
        %v3030 = vsub.f32 %v3022, %v3026
        %v3031 = vsub.f32 %v3023, %v3029
        %v3032 = vmul.f32 %v3030, 1.442695
        %v3033 = vpow.pop %v3032
        %v3034 = vmul.f32 %v3031, 1.442695
        %v3035 = vpow.pop %v3034
        %v3036 = vsel %vm948, %v3033, 0.0
        %3037 = vadd.xlane.f32.xlu0 %v3036
        %v3038 = vpop.xlane.xlu0 %3037
        %v3039 = vsel %vm948, %v3035, 0.0
        %3040 = vadd.xlane.f32.xlu0 %v3039
        %v3041 = vpop.xlane.xlu0 %3040
        %v3042 = vrcp.pop %v3038
        %v3043 = vmul.f32 %v3033, %v3042
        %v3044 = vrcp.pop %v3041
        %v3045 = vmul.f32 %v3035, %v3044
        %3046 = vrot.lane.b32.xlu0 %v2325, 32
        %v3047 = vpop.permute.xlu0 %3046
        %3048 = vrot.lane.b32.xlu0 %v2330, 32
        %v3049 = vpop.permute.xlu0 %3048
        %v3053 = vsel %vm948, %v3043, 0
        %v3056 = vsel %vm948, %v3045, 0
        %3058 = vmatprep.subr.mxu0 0.0
        %3059 = vmatpush1.msra.mxu0 0.0
        %3060 = vmatprep.subr.mxu0 0.0
        %3061 = vmatpush1.msra.mxu0 0.0
        %3062 = vmatprep.subr.mxu0 0.0
        %3063 = vmatpush1.msra.mxu0 0.0
        %3064 = vmatprep.subr.mxu0 0.0
        %3065 = vmatpush1.msra.mxu0 0.0
        %3066 = vmatprep.subr.mxu0 0.0
        %3067 = vmatpush1.msra.mxu0 0.0
        %3068 = vmatprep.subr.mxu0 0.0
        %3069 = vmatpush1.msra.mxu0 0.0
        %3070 = vmatprep.subr.mxu0 0.0
        %3071 = vmatpush1.msra.mxu0 0.0
        %3072 = vmatprep.subr.mxu0 0.0
        %3073 = vmatpush1.msra.mxu0 0.0
        %3074 = vmatprep.subr.mxu0 0.0
        %3075 = vmatpush1.msra.mxu0 0.0
        %3076 = vmatprep.subr.mxu0 0.0
        %3077 = vmatpush1.msra.mxu0 0.0
        %3078 = vmatprep.subr.mxu0 0.0
        %3079 = vmatpush1.msra.mxu0 0.0
        %3080 = vmatprep.subr.mxu0 0.0
        %3081 = vmatpush1.msra.mxu0 0.0
        %3082 = vmatprep.subr.mxu0 0.0
        %3083 = vmatpush1.msra.mxu0 0.0
        %3084 = vmatprep.subr.mxu0 0.0
        %3085 = vmatpush1.msra.mxu0 0.0
        %3086 = vmatprep.subr.mxu0 0.0
        %3087 = vmatpush1.msra.mxu0 %v3049
        %3088 = vmatprep.subr.mxu0 0.0
        %3089 = vmatpush1.msra.mxu0 %v3047
        %3090 = vmatprep.subr.mxu0 0.0
        %3091 = vmatpush2.msra.mxu0 0.0
        %3092 = vmatprep.subr.mxu0 0.0
        %3093 = vmatpush2.msra.mxu0 0.0
        %3094 = vmatprep.subr.mxu0 0.0
        %3095 = vmatpush2.msra.mxu0 0.0
        %3096 = vmatprep.subr.mxu0 0.0
        %3097 = vmatpush2.msra.mxu0 0.0
        %3098 = vmatprep.subr.mxu0 0.0
        %3099 = vmatpush2.msra.mxu0 0.0
        %3100 = vmatprep.subr.mxu0 0.0
        %3101 = vmatpush2.msra.mxu0 0.0
        %3102 = vmatprep.subr.mxu0 0.0
        %3103 = vmatpush2.msra.mxu0 0.0
        %3104 = vmatprep.subr.mxu0 0.0
        %3105 = vmatpush2.msra.mxu0 0.0
        %3106 = vmatprep.subr.mxu0 0.0
        %3107 = vmatpush2.msra.mxu0 0.0
        %3108 = vmatprep.subr.mxu0 0.0
        %3109 = vmatpush2.msra.mxu0 0.0
        %3110 = vmatprep.subr.mxu0 0.0
        %3111 = vmatpush2.msra.mxu0 0.0
        %3112 = vmatprep.subr.mxu0 0.0
        %3113 = vmatpush2.msra.mxu0 0.0
        %3114 = vmatprep.subr.mxu0 0.0
        %3115 = vmatpush2.msra.mxu0 0.0
        %3116 = vmatprep.subr.mxu0 0.0
        %3117 = vmatpush2.msra.mxu0 0.0
        %3118 = vmatprep.subr.mxu0 0.0
        %3119 = vmatpush2.msra.mxu0 0.0
        %3120 = vmatprep.subr.mxu0 0.0
        %3121 = vmatpush2.msra.mxu0 0.0
        %3122 = vmatprep.mubr.f32.mxu0 0.0
        %3123 = vmatmul.mubr.f32.gmra.mxu0 %v3053
        %v3124 = vpop.f32.mrf.mxu0
        %v3125 = vadd.f32 0.0, %v3124
        %v3126 = vpop.f32.mrf.mxu0
        %3127 = vmatprep.mubr.f32.mxu0 0.0
        %3128 = vmatmul.mubr.f32.gmra.mxu0 %v3056
        %v3129 = vpop.f32.mrf.mxu0
        %v3130 = vadd.f32 0.0, %v3129
        %v3131 = vpop.f32.mrf.mxu0
        %3132 = vdwg.mxu0
        %3135 = vrot.lane.b32.xlu0 %v2721, 32
        %v3136 = vpop.permute.xlu0 %3135
        %3137 = vrot.lane.b32.xlu0 %v2726, 32
        %v3138 = vpop.permute.xlu0 %3137
        %3143 = vrot.lane.b32.xlu0 %v2923, 64
        %v3144 = vpop.permute.xlu0 %3143
        %3145 = vrot.lane.b32.xlu0 %v2928, 64
        %v3146 = vpop.permute.xlu0 %3145
        %3151 = vrot.lane.b32.xlu0 %v3125, 96
        %v3152 = vpop.permute.xlu0 %3151
        %3153 = vrot.lane.b32.xlu0 %v3130, 96
        %v3154 = vpop.permute.xlu0 %3153
        %v3157 = vsel %vm858, %v2517, %v3136
        %v3158 = vsel %vm858, %v2522, %v3138
        %v3159 = vsel %vm1686, %v3157, %v3144
        %v3160 = vsel %vm1686, %v3158, %v3146
        %v3161 = vsel %vm1689, %v3159, %v3152
        %v3162 = vsel %vm1689, %v3160, %v3154
        %s3163 = scalar_lea.vmem [#allocation5], 128
        %v3164 = vld [vmem:[%s3163] sm:$0xff]
        %v3165 = vld [vmem:[%s3163 + $0x8] sm:$0xff]
        %v3166 = vld [vmem:[%s3163 + $0x10] sm:$0xff]
        %v3167 = vld [vmem:[%s3163 + $0x18] sm:$0xff]
        %v3168 = vld [vmem:[%s3163 + $0x20] sm:$0xff]
        %v3169 = vld [vmem:[%s3163 + $0x28] sm:$0xff]
        %v3170 = vld [vmem:[%s3163 + $0x30] sm:$0xff]
        %v3171 = vld [vmem:[%s3163 + $0x38] sm:$0xff]
        %v3172 = vld [vmem:[%s3163 + $0x40] sm:$0xff]
        %v3173 = vld [vmem:[%s3163 + $0x48] sm:$0xff]
        %v3174 = vld [vmem:[%s3163 + $0x50] sm:$0xff]
        %v3175 = vld [vmem:[%s3163 + $0x58] sm:$0xff]
        %v3176 = vld [vmem:[%s3163 + $0x60] sm:$0xff]
        %v3177 = vld [vmem:[%s3163 + $0x68] sm:$0xff]
        %v3178 = vld [vmem:[%s3163 + $0x70] sm:$0xff]
        %v3179 = vld [vmem:[%s3163 + $0x78] sm:$0xff]
        %s3180 = scalar_lea.vmem %s5, 1
        %v3181 = vld [vmem:[%s3180] sm:$0x1]
        %v3183 = vlaneseq
        %v3184 = vshrl.u32 %v3183, 7
        %v3185 = vsub.s32 0, %v3184
        %v3186 = vrot.slane %v3181, %v3185
        %3188 = vmatprep.subr.mxu0 0.0
        %3189 = vmatpush1.msra.mxu0 %v3179
        %3190 = vmatprep.subr.mxu0 0.0
        %3191 = vmatpush1.msra.mxu0 %v3178
        %3192 = vmatprep.subr.mxu0 0.0
        %3193 = vmatpush1.msra.mxu0 %v3177
        %3194 = vmatprep.subr.mxu0 0.0
        %3195 = vmatpush1.msra.mxu0 %v3176
        %3196 = vmatprep.subr.mxu0 0.0
        %3197 = vmatpush1.msra.mxu0 %v3175
        %3198 = vmatprep.subr.mxu0 0.0
        %3199 = vmatpush1.msra.mxu0 %v3174
        %3200 = vmatprep.subr.mxu0 0.0
        %3201 = vmatpush1.msra.mxu0 %v3173
        %3202 = vmatprep.subr.mxu0 0.0
        %3203 = vmatpush1.msra.mxu0 %v3172
        %3204 = vmatprep.subr.mxu0 0.0
        %3205 = vmatpush1.msra.mxu0 %v3171
        %3206 = vmatprep.subr.mxu0 0.0
        %3207 = vmatpush1.msra.mxu0 %v3170
        %3208 = vmatprep.subr.mxu0 0.0
        %3209 = vmatpush1.msra.mxu0 %v3169
        %3210 = vmatprep.subr.mxu0 0.0
        %3211 = vmatpush1.msra.mxu0 %v3168
        %3212 = vmatprep.subr.mxu0 0.0
        %3213 = vmatpush1.msra.mxu0 %v3167
        %3214 = vmatprep.subr.mxu0 0.0
        %3215 = vmatpush1.msra.mxu0 %v3166
        %3216 = vmatprep.subr.mxu0 0.0
        %3217 = vmatpush1.msra.mxu0 %v3165
        %3218 = vmatprep.subr.mxu0 0.0
        %3219 = vmatpush1.msra.mxu0 %v3164
        %3220 = vmatprep.subr.mxu0 0.0
        %3221 = vmatpush2.msra.mxu0 0.0
        %3222 = vmatprep.subr.mxu0 0.0
        %3223 = vmatpush2.msra.mxu0 0.0
        %3224 = vmatprep.subr.mxu0 0.0
        %3225 = vmatpush2.msra.mxu0 0.0
        %3226 = vmatprep.subr.mxu0 0.0
        %3227 = vmatpush2.msra.mxu0 0.0
        %3228 = vmatprep.subr.mxu0 0.0
        %3229 = vmatpush2.msra.mxu0 0.0
        %3230 = vmatprep.subr.mxu0 0.0
        %3231 = vmatpush2.msra.mxu0 0.0
        %3232 = vmatprep.subr.mxu0 0.0
        %3233 = vmatpush2.msra.mxu0 0.0
        %3234 = vmatprep.subr.mxu0 0.0
        %3235 = vmatpush2.msra.mxu0 0.0
        %3236 = vmatprep.subr.mxu0 0.0
        %3237 = vmatpush2.msra.mxu0 0.0
        %3238 = vmatprep.subr.mxu0 0.0
        %3239 = vmatpush2.msra.mxu0 0.0
        %3240 = vmatprep.subr.mxu0 0.0
        %3241 = vmatpush2.msra.mxu0 0.0
        %3242 = vmatprep.subr.mxu0 0.0
        %3243 = vmatpush2.msra.mxu0 0.0
        %3244 = vmatprep.subr.mxu0 0.0
        %3245 = vmatpush2.msra.mxu0 0.0
        %3246 = vmatprep.subr.mxu0 0.0
        %3247 = vmatpush2.msra.mxu0 0.0
        %3248 = vmatprep.subr.mxu0 0.0
        %3249 = vmatpush2.msra.mxu0 0.0
        %3250 = vmatprep.subr.mxu0 0.0
        %3251 = vmatpush2.msra.mxu0 0.0
        %3252 = vmatprep.mubr.f32.mxu0 0.0
        %3253 = vmatmul.mubr.f32.gmra.mxu0 %v3161
        %v3254 = vpop.f32.mrf.mxu0
        %v3255 = vadd.f32 %v3186, %v3254
        %v3256 = vpop.f32.mrf.mxu0
        %3257 = vmatprep.mubr.f32.mxu0 0.0
        %3258 = vmatmul.mubr.f32.gmra.mxu0 %v3162
        %v3259 = vpop.f32.mrf.mxu0
        %v3260 = vadd.f32 %v3186, %v3259
        %v3261 = vpop.f32.mrf.mxu0
        %3262 = vdwg.mxu0
        %v3263 = vadd.f32 %v2112, %v3255
        %v3264 = vadd.f32 %v2113, %v3260
        %s3265 = scalar_lea.vmem %s6, 1
        %v3266 = vld [vmem:[%s3265] sm:$0x1]
        %s3267 = scalar_lea.vmem %s7, 1
        %v3268 = vld [vmem:[%s3267] sm:$0x1]
        %3269 = vadd.xlane.f32.xlu0 %v3263
        %v3270 = vpop.xlane.xlu0 %3269
        %3271 = vadd.xlane.f32.xlu0 %v3264
        %v3272 = vpop.xlane.xlu0 %3271
        %v3273 = vmul.f32 %v3270, %v1798
        %v3274 = vmul.f32 %v3272, %v1798
        %v3275 = vsub.f32 %v3263, %v3273
        %v3276 = vsub.f32 %v3264, %v3274
        %v3277 = vmul.f32 %v3275, %v3275
        %v3278 = vmul.f32 %v3276, %v3276
        %3279 = vadd.xlane.f32.xlu0 %v3277
        %v3280 = vpop.xlane.xlu0 %3279
        %3281 = vadd.xlane.f32.xlu0 %v3278
        %v3282 = vpop.xlane.xlu0 %3281
        %v3283 = vmul.f32 %v3280, %v1798
        %v3284 = vmul.f32 %v3282, %v1798
        %v3285 = vadd.f32 %v3283, 1e-05
        %v3286 = vadd.f32 %v3284, 1e-05
        %v3287 = vrsqrt.pop %v3285
        %v3288 = vrsqrt.pop %v3286
        %v3289 = vmul.f32 %v3275, %v3287
        %v3290 = vmul.f32 %v3276, %v3288
        %v3292 = vlaneseq
        %v3293 = vshrl.u32 %v3292, 7
        %v3294 = vsub.s32 0, %v3293
        %v3295 = vrot.slane %v3266, %v3294
        %v3297 = vmul.f32 %v3289, %v3295
        %v3298 = vmul.f32 %v3290, %v3295
        %v3300 = vlaneseq
        %v3301 = vshrl.u32 %v3300, 7
        %v3302 = vsub.s32 0, %v3301
        %v3303 = vrot.slane %v3268, %v3302
        %v3305 = vadd.f32 %v3297, %v3303
        %v3306 = vadd.f32 %v3298, %v3303
        %s3307 = scalar_lea.vmem %s8, 256
        %v3308 = vld [vmem:[%s3307] sm:$0xff]
        %v3309 = vld [vmem:[%s3307 + $0x8] sm:$0xff]
        %v3310 = vld [vmem:[%s3307 + $0x10] sm:$0xff]
        %v3311 = vld [vmem:[%s3307 + $0x18] sm:$0xff]
        %v3312 = vld [vmem:[%s3307 + $0x20] sm:$0xff]
        %v3313 = vld [vmem:[%s3307 + $0x28] sm:$0xff]
        %v3314 = vld [vmem:[%s3307 + $0x30] sm:$0xff]
        %v3315 = vld [vmem:[%s3307 + $0x38] sm:$0xff]
        %v3316 = vld [vmem:[%s3307 + $0x40] sm:$0xff]
        %v3317 = vld [vmem:[%s3307 + $0x48] sm:$0xff]
        %v3318 = vld [vmem:[%s3307 + $0x50] sm:$0xff]
        %v3319 = vld [vmem:[%s3307 + $0x58] sm:$0xff]
        %v3320 = vld [vmem:[%s3307 + $0x60] sm:$0xff]
        %v3321 = vld [vmem:[%s3307 + $0x68] sm:$0xff]
        %v3322 = vld [vmem:[%s3307 + $0x70] sm:$0xff]
        %v3323 = vld [vmem:[%s3307 + $0x78] sm:$0xff]
        %v3324 = vld [vmem:[%s3307 + $0x80] sm:$0xff]
        %v3325 = vld [vmem:[%s3307 + $0x88] sm:$0xff]
        %v3326 = vld [vmem:[%s3307 + $0x90] sm:$0xff]
        %v3327 = vld [vmem:[%s3307 + $0x98] sm:$0xff]
        %v3328 = vld [vmem:[%s3307 + $0xa0] sm:$0xff]
        %v3329 = vld [vmem:[%s3307 + $0xa8] sm:$0xff]
        %v3330 = vld [vmem:[%s3307 + $0xb0] sm:$0xff]
        %v3331 = vld [vmem:[%s3307 + $0xb8] sm:$0xff]
        %v3332 = vld [vmem:[%s3307 + $0xc0] sm:$0xff]
        %v3333 = vld [vmem:[%s3307 + $0xc8] sm:$0xff]
        %v3334 = vld [vmem:[%s3307 + $0xd0] sm:$0xff]
        %v3335 = vld [vmem:[%s3307 + $0xd8] sm:$0xff]
        %v3336 = vld [vmem:[%s3307 + $0xe0] sm:$0xff]
        %v3337 = vld [vmem:[%s3307 + $0xe8] sm:$0xff]
        %v3338 = vld [vmem:[%s3307 + $0xf0] sm:$0xff]
        %v3339 = vld [vmem:[%s3307 + $0xf8] sm:$0xff]
        %s3340 = scalar_lea.vmem %s9, 2
        %v3341 = vld [vmem:[%s3340] sm:$0x3]
        %v3343 = vlaneseq
        %v3344 = vshrl.u32 %v3343, 7
        %v3345 = vsub.s32 0, %v3344
        %v3346 = vrot.slane %v3341, %v3345
        %v3347 = vlaneseq
        %v3348 = vshrl.u32 %v3347, 7
        %v3349 = vsub.s32 1, %v3348
        %v3350 = vrot.slane %v3341, %v3349
        %3353 = vmatprep.subr.mxu0 %v3339
        %3354 = vmatpush1.msra.mxu0 %v3338
        %3355 = vmatprep.subr.mxu0 %v3337
        %3356 = vmatpush1.msra.mxu0 %v3336
        %3357 = vmatprep.subr.mxu0 %v3335
        %3358 = vmatpush1.msra.mxu0 %v3334
        %3359 = vmatprep.subr.mxu0 %v3333
        %3360 = vmatpush1.msra.mxu0 %v3332
        %3361 = vmatprep.subr.mxu0 %v3331
        %3362 = vmatpush1.msra.mxu0 %v3330
        %3363 = vmatprep.subr.mxu0 %v3329
        %3364 = vmatpush1.msra.mxu0 %v3328
        %3365 = vmatprep.subr.mxu0 %v3327
        %3366 = vmatpush1.msra.mxu0 %v3326
        %3367 = vmatprep.subr.mxu0 %v3325
        %3368 = vmatpush1.msra.mxu0 %v3324
        %3369 = vmatprep.subr.mxu0 %v3323
        %3370 = vmatpush1.msra.mxu0 %v3322
        %3371 = vmatprep.subr.mxu0 %v3321
        %3372 = vmatpush1.msra.mxu0 %v3320
        %3373 = vmatprep.subr.mxu0 %v3319
        %3374 = vmatpush1.msra.mxu0 %v3318
        %3375 = vmatprep.subr.mxu0 %v3317
        %3376 = vmatpush1.msra.mxu0 %v3316
        %3377 = vmatprep.subr.mxu0 %v3315
        %3378 = vmatpush1.msra.mxu0 %v3314
        %3379 = vmatprep.subr.mxu0 %v3313
        %3380 = vmatpush1.msra.mxu0 %v3312
        %3381 = vmatprep.subr.mxu0 %v3311
        %3382 = vmatpush1.msra.mxu0 %v3310
        %3383 = vmatprep.subr.mxu0 %v3309
        %3384 = vmatpush1.msra.mxu0 %v3308
        %3385 = vmatprep.subr.mxu0 0.0
        %3386 = vmatpush2.msra.mxu0 0.0
        %3387 = vmatprep.subr.mxu0 0.0
        %3388 = vmatpush2.msra.mxu0 0.0
        %3389 = vmatprep.subr.mxu0 0.0
        %3390 = vmatpush2.msra.mxu0 0.0
        %3391 = vmatprep.subr.mxu0 0.0
        %3392 = vmatpush2.msra.mxu0 0.0
        %3393 = vmatprep.subr.mxu0 0.0
        %3394 = vmatpush2.msra.mxu0 0.0
        %3395 = vmatprep.subr.mxu0 0.0
        %3396 = vmatpush2.msra.mxu0 0.0
        %3397 = vmatprep.subr.mxu0 0.0
        %3398 = vmatpush2.msra.mxu0 0.0
        %3399 = vmatprep.subr.mxu0 0.0
        %3400 = vmatpush2.msra.mxu0 0.0
        %3401 = vmatprep.subr.mxu0 0.0
        %3402 = vmatpush2.msra.mxu0 0.0
        %3403 = vmatprep.subr.mxu0 0.0
        %3404 = vmatpush2.msra.mxu0 0.0
        %3405 = vmatprep.subr.mxu0 0.0
        %3406 = vmatpush2.msra.mxu0 0.0
        %3407 = vmatprep.subr.mxu0 0.0
        %3408 = vmatpush2.msra.mxu0 0.0
        %3409 = vmatprep.subr.mxu0 0.0
        %3410 = vmatpush2.msra.mxu0 0.0
        %3411 = vmatprep.subr.mxu0 0.0
        %3412 = vmatpush2.msra.mxu0 0.0
        %3413 = vmatprep.subr.mxu0 0.0
        %3414 = vmatpush2.msra.mxu0 0.0
        %3415 = vmatprep.subr.mxu0 0.0
        %3416 = vmatpush2.msra.mxu0 0.0
        %3417 = vmatprep.mubr.f32.mxu0 0.0
        %3418 = vmatmul.mubr.f32.gmra.mxu0 %v3305
        %v3419 = vpop.f32.mrf.mxu0
        %v3420 = vadd.f32 %v3346, %v3419
        %v3421 = vpop.f32.mrf.mxu0
        %v3422 = vadd.f32 %v3350, %v3421
        %3423 = vmatprep.mubr.f32.mxu0 0.0
        %3424 = vmatmul.mubr.f32.gmra.mxu0 %v3306
        %v3425 = vpop.f32.mrf.mxu0
        %v3426 = vadd.f32 %v3346, %v3425
        %v3427 = vpop.f32.mrf.mxu0
        %v3428 = vadd.f32 %v3350, %v3427
        %3429 = vdwg.mxu0
        %v3430 = vmax.f32 %v3420, 0.0
        %v3431 = vmax.f32 %v3422, 0.0
        %v3432 = vmax.f32 %v3426, 0.0
        %v3433 = vmax.f32 %v3428, 0.0
        %s3434 = scalar_lea.vmem [#allocation7], 256
        %v3435 = vld [vmem:[%s3434] sm:$0xff]
        %v3436 = vld [vmem:[%s3434 + $0x8] sm:$0xff]
        %v3437 = vld [vmem:[%s3434 + $0x10] sm:$0xff]
        %v3438 = vld [vmem:[%s3434 + $0x18] sm:$0xff]
        %v3439 = vld [vmem:[%s3434 + $0x20] sm:$0xff]
        %v3440 = vld [vmem:[%s3434 + $0x28] sm:$0xff]
        %v3441 = vld [vmem:[%s3434 + $0x30] sm:$0xff]
        %v3442 = vld [vmem:[%s3434 + $0x38] sm:$0xff]
        %v3443 = vld [vmem:[%s3434 + $0x40] sm:$0xff]
        %v3444 = vld [vmem:[%s3434 + $0x48] sm:$0xff]
        %v3445 = vld [vmem:[%s3434 + $0x50] sm:$0xff]
        %v3446 = vld [vmem:[%s3434 + $0x58] sm:$0xff]
        %v3447 = vld [vmem:[%s3434 + $0x60] sm:$0xff]
        %v3448 = vld [vmem:[%s3434 + $0x68] sm:$0xff]
        %v3449 = vld [vmem:[%s3434 + $0x70] sm:$0xff]
        %v3450 = vld [vmem:[%s3434 + $0x78] sm:$0xff]
        %v3451 = vld [vmem:[%s3434 + $0x80] sm:$0xff]
        %v3452 = vld [vmem:[%s3434 + $0x88] sm:$0xff]
        %v3453 = vld [vmem:[%s3434 + $0x90] sm:$0xff]
        %v3454 = vld [vmem:[%s3434 + $0x98] sm:$0xff]
        %v3455 = vld [vmem:[%s3434 + $0xa0] sm:$0xff]
        %v3456 = vld [vmem:[%s3434 + $0xa8] sm:$0xff]
        %v3457 = vld [vmem:[%s3434 + $0xb0] sm:$0xff]
        %v3458 = vld [vmem:[%s3434 + $0xb8] sm:$0xff]
        %v3459 = vld [vmem:[%s3434 + $0xc0] sm:$0xff]
        %v3460 = vld [vmem:[%s3434 + $0xc8] sm:$0xff]
        %v3461 = vld [vmem:[%s3434 + $0xd0] sm:$0xff]
        %v3462 = vld [vmem:[%s3434 + $0xd8] sm:$0xff]
        %v3463 = vld [vmem:[%s3434 + $0xe0] sm:$0xff]
        %v3464 = vld [vmem:[%s3434 + $0xe8] sm:$0xff]
        %v3465 = vld [vmem:[%s3434 + $0xf0] sm:$0xff]
        %v3466 = vld [vmem:[%s3434 + $0xf8] sm:$0xff]
        %s3467 = scalar_lea.vmem %s11, 1
        %v3468 = vld [vmem:[%s3467] sm:$0x1]
        %v3470 = vlaneseq
        %v3471 = vshrl.u32 %v3470, 7
        %v3472 = vsub.s32 0, %v3471
        %v3473 = vrot.slane %v3468, %v3472
        %3475 = vmatprep.subr.mxu0 0.0
        %3476 = vmatpush1.msra.mxu0 %v3450
        %3477 = vmatprep.subr.mxu0 0.0
        %3478 = vmatpush1.msra.mxu0 %v3449
        %3479 = vmatprep.subr.mxu0 0.0
        %3480 = vmatpush1.msra.mxu0 %v3448
        %3481 = vmatprep.subr.mxu0 0.0
        %3482 = vmatpush1.msra.mxu0 %v3447
        %3483 = vmatprep.subr.mxu0 0.0
        %3484 = vmatpush1.msra.mxu0 %v3446
        %3485 = vmatprep.subr.mxu0 0.0
        %3486 = vmatpush1.msra.mxu0 %v3445
        %3487 = vmatprep.subr.mxu0 0.0
        %3488 = vmatpush1.msra.mxu0 %v3444
        %3489 = vmatprep.subr.mxu0 0.0
        %3490 = vmatpush1.msra.mxu0 %v3443
        %3491 = vmatprep.subr.mxu0 0.0
        %3492 = vmatpush1.msra.mxu0 %v3442
        %3493 = vmatprep.subr.mxu0 0.0
        %3494 = vmatpush1.msra.mxu0 %v3441
        %3495 = vmatprep.subr.mxu0 0.0
        %3496 = vmatpush1.msra.mxu0 %v3440
        %3497 = vmatprep.subr.mxu0 0.0
        %3498 = vmatpush1.msra.mxu0 %v3439
        %3499 = vmatprep.subr.mxu0 0.0
        %3500 = vmatpush1.msra.mxu0 %v3438
        %3501 = vmatprep.subr.mxu0 0.0
        %3502 = vmatpush1.msra.mxu0 %v3437
        %3503 = vmatprep.subr.mxu0 0.0
        %3504 = vmatpush1.msra.mxu0 %v3436
        %3505 = vmatprep.subr.mxu0 0.0
        %3506 = vmatpush1.msra.mxu0 %v3435
        %3507 = vmatprep.subr.mxu0 0.0
        %3508 = vmatpush2.msra.mxu0 %v3466
        %3509 = vmatprep.subr.mxu0 0.0
        %3510 = vmatpush2.msra.mxu0 %v3465
        %3511 = vmatprep.subr.mxu0 0.0
        %3512 = vmatpush2.msra.mxu0 %v3464
        %3513 = vmatprep.subr.mxu0 0.0
        %3514 = vmatpush2.msra.mxu0 %v3463
        %3515 = vmatprep.subr.mxu0 0.0
        %3516 = vmatpush2.msra.mxu0 %v3462
        %3517 = vmatprep.subr.mxu0 0.0
        %3518 = vmatpush2.msra.mxu0 %v3461
        %3519 = vmatprep.subr.mxu0 0.0
        %3520 = vmatpush2.msra.mxu0 %v3460
        %3521 = vmatprep.subr.mxu0 0.0
        %3522 = vmatpush2.msra.mxu0 %v3459
        %3523 = vmatprep.subr.mxu0 0.0
        %3524 = vmatpush2.msra.mxu0 %v3458
        %3525 = vmatprep.subr.mxu0 0.0
        %3526 = vmatpush2.msra.mxu0 %v3457
        %3527 = vmatprep.subr.mxu0 0.0
        %3528 = vmatpush2.msra.mxu0 %v3456
        %3529 = vmatprep.subr.mxu0 0.0
        %3530 = vmatpush2.msra.mxu0 %v3455
        %3531 = vmatprep.subr.mxu0 0.0
        %3532 = vmatpush2.msra.mxu0 %v3454
        %3533 = vmatprep.subr.mxu0 0.0
        %3534 = vmatpush2.msra.mxu0 %v3453
        %3535 = vmatprep.subr.mxu0 0.0
        %3536 = vmatpush2.msra.mxu0 %v3452
        %3537 = vmatprep.subr.mxu0 0.0
        %3538 = vmatpush2.msra.mxu0 %v3451
        %3539 = vmatprep.mubr.f32.mxu0 %v3431
        %3540 = vmatmul.mubr.f32.gmra.mxu0 %v3430
        %v3541 = vpop.f32.mrf.mxu0
        %v3542 = vadd.f32 %v3473, %v3541
        %v3543 = vpop.f32.mrf.mxu0
        %3544 = vmatprep.mubr.f32.mxu0 %v3433
        %3545 = vmatmul.mubr.f32.gmra.mxu0 %v3432
        %v3546 = vpop.f32.mrf.mxu0
        %v3547 = vadd.f32 %v3473, %v3546
        %v3548 = vpop.f32.mrf.mxu0
        %3549 = vdwg.mxu0
        %v3550 = vadd.f32 %v3305, %v3542
        %v3551 = vadd.f32 %v3306, %v3547
        %s3552 = scalar_lea.vmem %s12, 1
        %v3553 = vld [vmem:[%s3552] sm:$0x1]
        %s3554 = scalar_lea.vmem %s13, 1
        %v3555 = vld [vmem:[%s3554] sm:$0x1]
        %3556 = vadd.xlane.f32.xlu0 %v3550
        %v3557 = vpop.xlane.xlu0 %3556
        %3558 = vadd.xlane.f32.xlu0 %v3551
        %v3559 = vpop.xlane.xlu0 %3558
        %v3560 = vmul.f32 %v3557, %v1798
        %v3561 = vmul.f32 %v3559, %v1798
        %v3562 = vsub.f32 %v3550, %v3560
        %v3563 = vsub.f32 %v3551, %v3561
        %v3564 = vmul.f32 %v3562, %v3562
        %v3565 = vmul.f32 %v3563, %v3563
        %3566 = vadd.xlane.f32.xlu0 %v3564
        %v3567 = vpop.xlane.xlu0 %3566
        %3568 = vadd.xlane.f32.xlu0 %v3565
        %v3569 = vpop.xlane.xlu0 %3568
        %v3570 = vmul.f32 %v3567, %v1798
        %v3571 = vmul.f32 %v3569, %v1798
        %v3572 = vadd.f32 %v3570, 1e-05
        %v3573 = vadd.f32 %v3571, 1e-05
        %v3574 = vrsqrt.pop %v3572
        %v3575 = vrsqrt.pop %v3573
        %v3576 = vmul.f32 %v3562, %v3574
        %v3577 = vmul.f32 %v3563, %v3575
        %v3579 = vlaneseq
        %v3580 = vshrl.u32 %v3579, 7
        %v3581 = vsub.s32 0, %v3580
        %v3582 = vrot.slane %v3553, %v3581
        %v3584 = vmul.f32 %v3576, %v3582
        %v3585 = vmul.f32 %v3577, %v3582
        %v3587 = vlaneseq
        %v3588 = vshrl.u32 %v3587, 7
        %v3589 = vsub.s32 0, %v3588
        %v3590 = vrot.slane %v3555, %v3589
        %v3592 = vadd.f32 %v3584, %v3590
        %v3593 = vadd.f32 %v3585, %v3590
        %v3594 = vadd.f32 %v3592, %v3593
        %v3595 = vrot.slane %v3594, 4
        %v3596 = vadd.f32 %v3594, %v3595
        %v3597 = vrot.slane %v3596, 2
        %v3598 = vadd.f32 %v3596, %v3597
        %v3599 = vrot.slane %v3598, 1
        %v3600 = vadd.f32 %v3598, %v3599
        %v3601 = vrcp.pop 16.0
        %v3602 = vmul.f32 %v3600, %v3601
        %v3603 = vld [vmem:[#allocation8] sm:$0xff]
        %v3604 = vld [vmem:[#allocation8 + $0x8] sm:$0xff]
        %v3605 = vld [vmem:[#allocation8 + $0x10] sm:$0xff]
        %v3606 = vld [vmem:[#allocation8 + $0x18] sm:$0xff]
        %v3607 = vld [vmem:[#allocation8 + $0x20] sm:$0xff]
        %v3608 = vld [vmem:[#allocation8 + $0x28] sm:$0xff]
        %v3609 = vld [vmem:[#allocation8 + $0x30] sm:$0xff]
        %v3610 = vld [vmem:[#allocation8 + $0x38] sm:$0xff]
        %v3611 = vld [vmem:[#allocation8 + $0x40] sm:$0xff]
        %v3612 = vld [vmem:[#allocation8 + $0x48] sm:$0xff]
        %v3613 = vld [vmem:[#allocation8 + $0x50] sm:$0xff]
        %v3614 = vld [vmem:[#allocation8 + $0x58] sm:$0xff]
        %v3615 = vld [vmem:[#allocation8 + $0x60] sm:$0xff]
        %v3616 = vld [vmem:[#allocation8 + $0x68] sm:$0xff]
        %v3617 = vld [vmem:[#allocation8 + $0x70] sm:$0xff]
        %v3618 = vld [vmem:[#allocation8 + $0x78] sm:$0xff]
        %v3619 = vld [vmem:[%s15] sm:$0x1]
        %3620 = vmatprep.subr.mxu0 0.0
        %3621 = vmatpush1.msra.mxu0 %v3618
        %3622 = vmatprep.subr.mxu0 0.0
        %3623 = vmatpush1.msra.mxu0 %v3617
        %3624 = vmatprep.subr.mxu0 0.0
        %3625 = vmatpush1.msra.mxu0 %v3616
        %3626 = vmatprep.subr.mxu0 0.0
        %3627 = vmatpush1.msra.mxu0 %v3615
        %3628 = vmatprep.subr.mxu0 0.0
        %3629 = vmatpush1.msra.mxu0 %v3614
        %3630 = vmatprep.subr.mxu0 0.0
        %3631 = vmatpush1.msra.mxu0 %v3613
        %3632 = vmatprep.subr.mxu0 0.0
        %3633 = vmatpush1.msra.mxu0 %v3612
        %3634 = vmatprep.subr.mxu0 0.0
        %3635 = vmatpush1.msra.mxu0 %v3611
        %3636 = vmatprep.subr.mxu0 0.0
        %3637 = vmatpush1.msra.mxu0 %v3610
        %3638 = vmatprep.subr.mxu0 0.0
        %3639 = vmatpush1.msra.mxu0 %v3609
        %3640 = vmatprep.subr.mxu0 0.0
        %3641 = vmatpush1.msra.mxu0 %v3608
        %3642 = vmatprep.subr.mxu0 0.0
        %3643 = vmatpush1.msra.mxu0 %v3607
        %3644 = vmatprep.subr.mxu0 0.0
        %3645 = vmatpush1.msra.mxu0 %v3606
        %3646 = vmatprep.subr.mxu0 0.0
        %3647 = vmatpush1.msra.mxu0 %v3605
        %3648 = vmatprep.subr.mxu0 0.0
        %3649 = vmatpush1.msra.mxu0 %v3604
        %3650 = vmatprep.subr.mxu0 0.0
        %3651 = vmatpush1.msra.mxu0 %v3603
        %3652 = vmatprep.subr.mxu0 0.0
        %3653 = vmatpush2.msra.mxu0 0.0
        %3654 = vmatprep.subr.mxu0 0.0
        %3655 = vmatpush2.msra.mxu0 0.0
        %3656 = vmatprep.subr.mxu0 0.0
        %3657 = vmatpush2.msra.mxu0 0.0
        %3658 = vmatprep.subr.mxu0 0.0
        %3659 = vmatpush2.msra.mxu0 0.0
        %3660 = vmatprep.subr.mxu0 0.0
        %3661 = vmatpush2.msra.mxu0 0.0
        %3662 = vmatprep.subr.mxu0 0.0
        %3663 = vmatpush2.msra.mxu0 0.0
        %3664 = vmatprep.subr.mxu0 0.0
        %3665 = vmatpush2.msra.mxu0 0.0
        %3666 = vmatprep.subr.mxu0 0.0
        %3667 = vmatpush2.msra.mxu0 0.0
        %3668 = vmatprep.subr.mxu0 0.0
        %3669 = vmatpush2.msra.mxu0 0.0
        %3670 = vmatprep.subr.mxu0 0.0
        %3671 = vmatpush2.msra.mxu0 0.0
        %3672 = vmatprep.subr.mxu0 0.0
        %3673 = vmatpush2.msra.mxu0 0.0
        %3674 = vmatprep.subr.mxu0 0.0
        %3675 = vmatpush2.msra.mxu0 0.0
        %3676 = vmatprep.subr.mxu0 0.0
        %3677 = vmatpush2.msra.mxu0 0.0
        %3678 = vmatprep.subr.mxu0 0.0
        %3679 = vmatpush2.msra.mxu0 0.0
        %3680 = vmatprep.subr.mxu0 0.0
        %3681 = vmatpush2.msra.mxu0 0.0
        %3682 = vmatprep.subr.mxu0 0.0
        %3683 = vmatpush2.msra.mxu0 0.0
        %3684 = vmatprep.mubr.f32.mxu0 0.0
        %3685 = vmatmul.mubr.f32.gmra.mxu0 %v3602
        %v3686 = vpop.f32.mrf.mxu0
        %v3687 = vadd.f32 %v3619, %v3686
        %v3688 = vpop.f32.mrf.mxu0
        %3689 = vdwg.mxu0
        %v3690 = vld [vmem:[%s16] sm:$0xff]
        %v3691 = vld [vmem:[%s16 + $0x8] sm:$0xff]
        %v3692 = vld [vmem:[%s16 + $0x10] sm:$0xff]
        %v3693 = vld [vmem:[%s16 + $0x18] sm:$0xff]
        %v3694 = vld [vmem:[%s16 + $0x20] sm:$0xff]
        %v3695 = vld [vmem:[%s16 + $0x28] sm:$0xff]
        %v3696 = vld [vmem:[%s16 + $0x30] sm:$0xff]
        %v3697 = vld [vmem:[%s16 + $0x38] sm:$0xff]
        %v3698 = vld [vmem:[%s16 + $0x40] sm:$0xff]
        %v3699 = vld [vmem:[%s16 + $0x48] sm:$0xff]
        %v3700 = vld [vmem:[%s16 + $0x50] sm:$0xff]
        %v3701 = vld [vmem:[%s16 + $0x58] sm:$0xff]
        %v3702 = vld [vmem:[%s16 + $0x60] sm:$0xff]
        %v3703 = vld [vmem:[%s16 + $0x68] sm:$0xff]
        %v3704 = vld [vmem:[%s16 + $0x70] sm:$0xff]
        %v3705 = vld [vmem:[%s16 + $0x78] sm:$0xff]
        %v3706 = vld [vmem:[#allocation2] sm:$0x1]
        %3707 = vmatprep.subr.mxu0 0.0
        %3708 = vmatpush1.msra.mxu0 %v3705
        %3709 = vmatprep.subr.mxu0 0.0
        %3710 = vmatpush1.msra.mxu0 %v3704
        %3711 = vmatprep.subr.mxu0 0.0
        %3712 = vmatpush1.msra.mxu0 %v3703
        %3713 = vmatprep.subr.mxu0 0.0
        %3714 = vmatpush1.msra.mxu0 %v3702
        %3715 = vmatprep.subr.mxu0 0.0
        %3716 = vmatpush1.msra.mxu0 %v3701
        %3717 = vmatprep.subr.mxu0 0.0
        %3718 = vmatpush1.msra.mxu0 %v3700
        %3719 = vmatprep.subr.mxu0 0.0
        %3720 = vmatpush1.msra.mxu0 %v3699
        %3721 = vmatprep.subr.mxu0 0.0
        %3722 = vmatpush1.msra.mxu0 %v3698
        %3723 = vmatprep.subr.mxu0 0.0
        %3724 = vmatpush1.msra.mxu0 %v3697
        %3725 = vmatprep.subr.mxu0 0.0
        %3726 = vmatpush1.msra.mxu0 %v3696
        %3727 = vmatprep.subr.mxu0 0.0
        %3728 = vmatpush1.msra.mxu0 %v3695
        %3729 = vmatprep.subr.mxu0 0.0
        %3730 = vmatpush1.msra.mxu0 %v3694
        %3731 = vmatprep.subr.mxu0 0.0
        %3732 = vmatpush1.msra.mxu0 %v3693
        %3733 = vmatprep.subr.mxu0 0.0
        %3734 = vmatpush1.msra.mxu0 %v3692
        %3735 = vmatprep.subr.mxu0 0.0
        %3736 = vmatpush1.msra.mxu0 %v3691
        %3737 = vmatprep.subr.mxu0 0.0
        %3738 = vmatpush1.msra.mxu0 %v3690
        %3739 = vmatprep.subr.mxu0 0.0
        %3740 = vmatpush2.msra.mxu0 0.0
        %3741 = vmatprep.subr.mxu0 0.0
        %3742 = vmatpush2.msra.mxu0 0.0
        %3743 = vmatprep.subr.mxu0 0.0
        %3744 = vmatpush2.msra.mxu0 0.0
        %3745 = vmatprep.subr.mxu0 0.0
        %3746 = vmatpush2.msra.mxu0 0.0
        %3747 = vmatprep.subr.mxu0 0.0
        %3748 = vmatpush2.msra.mxu0 0.0
        %3749 = vmatprep.subr.mxu0 0.0
        %3750 = vmatpush2.msra.mxu0 0.0
        %3751 = vmatprep.subr.mxu0 0.0
        %3752 = vmatpush2.msra.mxu0 0.0
        %3753 = vmatprep.subr.mxu0 0.0
        %3754 = vmatpush2.msra.mxu0 0.0
        %3755 = vmatprep.subr.mxu0 0.0
        %3756 = vmatpush2.msra.mxu0 0.0
        %3757 = vmatprep.subr.mxu0 0.0
        %3758 = vmatpush2.msra.mxu0 0.0
        %3759 = vmatprep.subr.mxu0 0.0
        %3760 = vmatpush2.msra.mxu0 0.0
        %3761 = vmatprep.subr.mxu0 0.0
        %3762 = vmatpush2.msra.mxu0 0.0
        %3763 = vmatprep.subr.mxu0 0.0
        %3764 = vmatpush2.msra.mxu0 0.0
        %3765 = vmatprep.subr.mxu0 0.0
        %3766 = vmatpush2.msra.mxu0 0.0
        %3767 = vmatprep.subr.mxu0 0.0
        %3768 = vmatpush2.msra.mxu0 0.0
        %3769 = vmatprep.subr.mxu0 0.0
        %3770 = vmatpush2.msra.mxu0 0.0
        %3771 = vmatprep.mubr.f32.mxu0 0.0
        %3772 = vmatmul.mubr.f32.gmra.mxu0 %v3687
        %v3773 = vpop.f32.mrf.mxu0
        %v3774 = vadd.f32 %v3706, %v3773
        %v3775 = vpop.f32.mrf.mxu0
        %3776 = vdwg.mxu0
        %v3777 = vxor.u32 %v3774, 2147483648
        %v3778 = vmul.f32 %v3777, 1.442695
        %v3779 = vpow.pop %v3778
        %v3780 = vadd.f32 %v3779, 1.0
        %v3781 = vrcp.pop %v3780
        %v3782 = vmul.f32 1.0, %v3781
        %vm3783 = vcmask 0
        %3784 = vst.msk [vmem:[%s632] sm:$0x1] %vm3783, %v3782
        %p3785 = scmp.lt.s32.totalorder %s34, 1
        %s3786 = scalar_select %p3785, %s34, 1
        %s3787 = scalar_lea.vmem %s18, %s3786
        // Predicated region
        $region109: #{discriminator_forward.1} parent=91 // pred_check
          %p3788 = pneg %p435
        $region110: #{discriminator_forward.1} parent=91 // pred_check_branch
          %3790 = sbr.rel (%p3788) target = $region112
        $region111: #{discriminator_forward.1} parent=91 // pred_region
          _
        $region112: #{discriminator_forward.1} parent=91 // pred_fallthru
          _
      $region92: #{discriminator_forward.1} parent=5 // pred_fallthru
        _
      %p3791 = scmp.le.s32.totalorder 2, %s29
      // Predicated region
      $region113: #{discriminator_forward.1} parent=5 // pred_check
        %p3792 = pneg %p3791
      $region114: #{discriminator_forward.1} parent=5 // pred_check_branch
        %3794 = sbr.rel (%p3792) target = $region116
      $region115: #{discriminator_forward.1} parent=5 // pred_region
        %s3795 = ssub.s32 %s29, 2
        // Predicated region
        $region117: #{discriminator_forward.1} parent=115 // pred_check
          %p3796 = pneg %p441
        $region118: #{discriminator_forward.1} parent=115 // pred_check_branch
          %3798 = sbr.rel (%p3796) target = $region120
        $region119: #{discriminator_forward.1} parent=115 // pred_region
          %p3799 = scmp.lt.s32.totalorder %s35, 1
          %s3800 = scalar_select %p3799, %s35, 1
          %s3801 = scalar_lea.vmem %s18, %s3800
        $region120: #{discriminator_forward.1} parent=115 // pred_fallthru
          _
      $region116: #{discriminator_forward.1} parent=5 // pred_fallthru
        _
    $region6: #{discriminator_forward.1} parent=1 // loop_footer
      %s33 = sadd.s32 1, %s29
    $region7: #{discriminator_forward.1} parent=1 // loop_footer_branch
      %28 = sbr.rel target = $region3
    $region8: #{discriminator_forward.1} parent=1 // loop_exit
      _
    %3802 = vsyncpa [#allocation4], 1
    %s3803 = scalar_lea.sflag [#allocation4], 1
    %3804 = vsyncpa %s3803, 1
    %3805 = vsyncpa [#allocation6], 1
    %3806 = vsyncpa [#allocation9], 1

</llo_original>
